<compile_context>
chip_gen: v6e
topology: v6e:2x2x1
jax: 0.10.0
libtpu: 0.0.40
codegen_flags: <defaults>
</compile_context>

<pallas_src>
import functools

import jax
import jax.numpy as jnp
import numpy as np
from jax import lax
from jax.experimental import pallas as pl
from jax.experimental.pallas import tpu as pltpu

MIN_STD_DEV = 0.1


# ----------------------------------------------------------------------------
# Kernel: entire recurrence for all T steps, single invocation, VMEM resident.
# ----------------------------------------------------------------------------
def _shtm_kernel(prev_state_ref, prev_belief_ref, inpre_ref, nzp_ref, nzr_ref,
                 w_es_ref, b_es_ref, w_ih_ref, b_ih_ref, w_hh_ref, b_hh_ref,
                 w_bel_ref, w_st_ref, b_st_ref,
                 out_ref):
    T = out_ref.shape[0]
    S = prev_state_ref.shape[1]
    BEL = prev_belief_ref.shape[1]

    post = prev_state_ref[...]
    prior = prev_state_ref[...]
    belief = prev_belief_ref[...]

    # load weights once (hoisted out of the unrolled loop)
    w_es = w_es_ref[...]; b_es = b_es_ref[...]
    w_ih = w_ih_ref[...]; b_ih = b_ih_ref[...]
    w_hh = w_hh_ref[...]; b_hh = b_hh_ref[...]
    w_bel = w_bel_ref[...]
    w_st = w_st_ref[...]; b_st = b_st_ref[...]

    for t in range(T):  # static unrolled serial loop (T is small)
        # hidden = relu(fc_embed_state(cat([post, prior])))
        emb = jnp.maximum(
            jnp.dot(jnp.concatenate([post, prior], axis=1), w_es,
                    preferred_element_type=jnp.float32) + b_es, 0.0)

        # GRUCell(belief_size, belief_size), PyTorch gate order r, z, n
        gx = jnp.dot(emb, w_ih, preferred_element_type=jnp.float32) + b_ih
        gh = jnp.dot(belief, w_hh, preferred_element_type=jnp.float32) + b_hh
        r = jax.nn.sigmoid(gx[:, :BEL] + gh[:, :BEL])
        z = jax.nn.sigmoid(gx[:, BEL:2 * BEL] + gh[:, BEL:2 * BEL])
        n = jnp.tanh(gx[:, 2 * BEL:] + r * gh[:, 2 * BEL:])
        belief = (1.0 - z) * n + z * belief

        # fused posterior+prior "embed belief" layer: the obs/pose halves (and
        # their biases) were precomputed per step into inpre_ref.
        hid_cat = jnp.maximum(
            jnp.dot(belief, w_bel, preferred_element_type=jnp.float32)
            + inpre_ref[t], 0.0)                      # (B, 2H)

        # fused posterior+prior state heads (block-diagonal weight)
        out_cat = jnp.dot(hid_cat, w_st,
                          preferred_element_type=jnp.float32) + b_st  # (B, 4S)

        post_mean = out_cat[:, :S]
        post_std = jax.nn.softplus(out_cat[:, S:2 * S]) + MIN_STD_DEV
        post = post_mean + post_std * nzp_ref[t]

        prior_mean = out_cat[:, 2 * S:3 * S]
        prior_std = jax.nn.softplus(out_cat[:, 3 * S:]) + MIN_STD_DEV
        prior = prior_mean + prior_std * nzr_ref[t]

        # one lane-dense packed store per step (BEL + 6S lanes)
        out_ref[t] = jnp.concatenate(
            [belief, prior, prior_mean, prior_std, post, post_mean, post_std],
            axis=1)


# ----------------------------------------------------------------------------
# Wrapper
# ----------------------------------------------------------------------------
def single_hidden_transition(params, prev_state, prev_belief, poses,
                             observations, noise_post, noise_prior, pose_tiles):
    """
    prev_state:   (B, S)
    prev_belief:  (B, BEL)
    poses:        (T, B, 6)       (use_pose_model == False path)
    observations: (T, B, E)
    noise_*:      (T, B, S)       (randn_like replacements)
    Returns the 7 stacked (T, B, ·) tensors of the torch forward.
    """
    T, B, E = observations.shape
    S = prev_state.shape[1]
    BEL = prev_belief.shape[1]
    H = params["w_sp"].shape[0]

    # ---- split embed-belief weights into recurrent (belief) and input halves
    w_bp_bel = params["w_bp"][:BEL]                      # (BEL, H)
    w_bp_obs = params["w_bp"][BEL:]                      # (E,   H)
    w_br_bel = params["w_br"][:BEL]                      # (BEL, H)
    w_br_pose = params["w_br"][BEL:]                     # (6*pose_tiles, H)
    # fold _pose.repeat(1, pose_tiles) into the weight (exact identity)
    w_br_pose = w_br_pose.reshape(pose_tiles, 6, H).sum(axis=0)   # (6, H)

    # ---- hoisted input-side matmuls for all T steps (biases folded in)
    obs_pre = (observations.reshape(T * B, E) @ w_bp_obs).reshape(T, B, H) \
        + params["b_bp"]
    pose_pre = (poses.reshape(T * B, 6) @ w_br_pose).reshape(T, B, H) \
        + params["b_br"]
    inpre = jnp.concatenate([obs_pre, pose_pre], axis=-1)          # (T, B, 2H)

    # ---- fuse the two belief-path matmuls (shared operand)
    w_bel_cat = jnp.concatenate([w_bp_bel, w_br_bel], axis=1)      # (BEL, 2H)

    # ---- fuse the two state heads via a block-diagonal weight
    w_st = jnp.zeros((2 * H, 4 * S), jnp.float32)
    w_st = w_st.at[:H, :2 * S].set(params["w_sp"])
    w_st = w_st.at[H:, 2 * S:].set(params["w_sr"])
    b_st = jnp.concatenate([params["b_sp"], params["b_sr"]], axis=1)  # (1, 4S)

    out_width = BEL + 6 * S   # 128 lanes at the test sizes -> unmasked stores
    vmem = pl.BlockSpec(memory_space=pltpu.MemorySpace.VMEM)

    out = pl.pallas_call(
        _shtm_kernel,
        out_shape=jax.ShapeDtypeStruct((T, B, out_width), jnp.float32),
        in_specs=[vmem] * 14,
        out_specs=vmem,
    )(prev_state, prev_belief, inpre, noise_post, noise_prior,
      params["w_es"], params["b_es"],
      params["w_ih"], params["b_ih"], params["w_hh"], params["b_hh"],
      w_bel_cat, w_st, b_st)

    # ---- unpack the lane-dense output (free layout plumbing)
    o = 0
    beliefs = out[..., o:o + BEL]; o += BEL
    prior_states = out[..., o:o + S]; o += S
    prior_means = out[..., o:o + S]; o += S
    prior_std_devs = out[..., o:o + S]; o += S
    posterior_states = out[..., o:o + S]; o += S
    posterior_means = out[..., o:o + S]; o += S
    posterior_std_devs = out[..., o:o + S]; o += S
    return (beliefs, prior_states, prior_means, prior_std_devs,
            posterior_states, posterior_means, posterior_std_devs)


# ----------------------------------------------------------------------------
# Pure-JAX reference (mirrors the PyTorch forward, unfused) for verification
# ----------------------------------------------------------------------------
def _gru_cell_ref(x, h, w_ih, w_hh, b_ih, b_hh):
    BEL = h.shape[1]
    gx = x @ w_ih + b_ih
    gh = h @ w_hh + b_hh
    r = jax.nn.sigmoid(gx[:, :BEL] + gh[:, :BEL])
    z = jax.nn.sigmoid(gx[:, BEL:2 * BEL] + gh[:, BEL:2 * BEL])
    n = jnp.tanh(gx[:, 2 * BEL:] + r * gh[:, 2 * BEL:])
    return (1.0 - z) * n + z * h


def reference_forward(params, prev_state, prev_belief, poses, observations,
                      noise_post, noise_prior, pose_tiles):
    S = prev_state.shape[1]

    def step(carry, xs):
        post, prior, belief = carry
        obs_t, pose_t, nzp, nzr = xs

        emb = jax.nn.relu(jnp.concatenate([post, prior], axis=1)
                          @ params["w_es"] + params["b_es"])
        belief = _gru_cell_ref(emb, belief, params["w_ih"], params["w_hh"],
                               params["b_ih"], params["b_hh"])

        hid_p = jax.nn.relu(jnp.concatenate([belief, obs_t], axis=1)
                            @ params["w_bp"] + params["b_bp"])
        out_p = hid_p @ params["w_sp"] + params["b_sp"]
        post_mean = out_p[:, :S]
        post_std = jax.nn.softplus(out_p[:, S:]) + MIN_STD_DEV
        post = post_mean + post_std * nzp

        pose_tiled = jnp.tile(pose_t, (1, pose_tiles))
        hid_r = jax.nn.relu(jnp.concatenate([belief, pose_tiled], axis=1)
                            @ params["w_br"] + params["b_br"])
        out_r = hid_r @ params["w_sr"] + params["b_sr"]
        prior_mean = out_r[:, :S]
        prior_std = jax.nn.softplus(out_r[:, S:]) + MIN_STD_DEV
        prior = prior_mean + prior_std * nzr

        outs = (belief, prior, prior_mean, prior_std, post, post_mean, post_std)
        return (post, prior, belief), outs

    _, outs = lax.scan(step, (prev_state, prev_state, prev_belief),
                       (observations, poses, noise_post, noise_prior))
    return outs


# ----------------------------------------------------------------------------
# Main
# ----------------------------------------------------------------------------
if __name__ == "__main__":
    # args: clip_length=7 (=> 7 transition steps), pose_tiles=2,
    #       belief_rnn='gru', use_pose_model=False
    B = 8            # batch
    S = 16           # state_size
    BEL = 32         # belief_size
    H = 32           # hidden_size
    E = 24           # embedding_size
    POSE_TILES = 2
    P = 6 * POSE_TILES
    T = 7            # number of transition steps (clip_length)

    key = jax.random.PRNGKey(0)
    ks = jax.random.split(key, 24)

    def uinit(k, shape, fan_in):
        bound = 1.0 / np.sqrt(fan_in)
        return jax.random.uniform(k, shape, jnp.float32, -bound, bound)

    params = {
        # fc_embed_state: Linear(2S, BEL)       (weights stored as (in, out))
        "w_es": uinit(ks[0], (2 * S, BEL), 2 * S),
        "b_es": uinit(ks[1], (1, BEL), 2 * S),
        # rnn: GRUCell(BEL, BEL)                (weights stored as (in, 3*hidden))
        "w_ih": uinit(ks[2], (BEL, 3 * BEL), BEL),
        "b_ih": uinit(ks[3], (1, 3 * BEL), BEL),
        "w_hh": uinit(ks[4], (BEL, 3 * BEL), BEL),
        "b_hh": uinit(ks[5], (1, 3 * BEL), BEL),
        # fc_embed_belief_posterior: Linear(BEL + E, H)
        "w_bp": uinit(ks[6], (BEL + E, H), BEL + E),
        "b_bp": uinit(ks[7], (1, H), BEL + E),
        # fc_state_posterior: Linear(H, 2S)
        "w_sp": uinit(ks[8], (H, 2 * S), H),
        "b_sp": uinit(ks[9], (1, 2 * S), H),
        # fc_embed_belief_prior: Linear(BEL + 6*pose_tiles, H)
        "w_br": uinit(ks[10], (BEL + P, H), BEL + P),
        "b_br": uinit(ks[11], (1, H), BEL + P),
        # fc_state_prior: Linear(H, 2S)
        "w_sr": uinit(ks[12], (H, 2 * S), H),
        "b_sr": uinit(ks[13], (1, 2 * S), H),
    }

    prev_state = jax.random.normal(ks[14], (B, S), jnp.float32)
    prev_belief = jax.random.normal(ks[15], (B, BEL), jnp.float32)
    observations = jax.random.normal(ks[16], (T, B, E), jnp.float32)
    poses = jax.random.normal(ks[17], (T, B, 6), jnp.float32)
    # torch.randn_like replacements, pre-sampled for determinism
    noise_post = jax.random.normal(ks[18], (T, B, S), jnp.float32)
    noise_prior = jax.random.normal(ks[19], (T, B, S), jnp.float32)

    run = jax.jit(functools.partial(single_hidden_transition,
                                    pose_tiles=POSE_TILES))
    outs = run(params, prev_state, prev_belief, poses, observations,
               noise_post, noise_prior)
    outs = jax.block_until_ready(outs)

    ref = reference_forward(params, prev_state, prev_belief, poses,
                            observations, noise_post, noise_prior, POSE_TILES)
    ref = jax.block_until_ready(ref)

    names = ["beliefs", "prior_states", "prior_means", "prior_std_devs",
             "posterior_states", "posterior_means", "posterior_std_devs"]
    for name, a, b in zip(names, outs, ref):
        assert a.shape == b.shape, (name, a.shape, b.shape)
        np.testing.assert_allclose(np.asarray(a), np.asarray(b),
                                   rtol=1e-2, atol=1e-2, err_msg=name)

    print("KERNEL_OK")
</pallas_src>

<mosaic_0001>
module attributes {stable_mosaic.version = 11 : i64} {
  func.func @_shtm_kernel(%arg0: memref<8x16xf32, #tpu.memory_space<vmem>>, %arg1: memref<8x32xf32, #tpu.memory_space<vmem>>, %arg2: memref<7x8x64xf32, #tpu.memory_space<vmem>>, %arg3: memref<7x8x16xf32, #tpu.memory_space<vmem>>, %arg4: memref<7x8x16xf32, #tpu.memory_space<vmem>>, %arg5: memref<32x32xf32, #tpu.memory_space<vmem>>, %arg6: memref<1x32xf32, #tpu.memory_space<vmem>>, %arg7: memref<32x96xf32, #tpu.memory_space<vmem>>, %arg8: memref<1x96xf32, #tpu.memory_space<vmem>>, %arg9: memref<32x96xf32, #tpu.memory_space<vmem>>, %arg10: memref<1x96xf32, #tpu.memory_space<vmem>>, %arg11: memref<32x64xf32, #tpu.memory_space<vmem>>, %arg12: memref<64x64xf32, #tpu.memory_space<vmem>>, %arg13: memref<1x64xf32, #tpu.memory_space<vmem>>, %arg14: memref<7x8x128xf32, #tpu.memory_space<vmem>>) attributes {dimension_semantics = [], scalar_prefetch = 0 : i64, scratch_operands = 0 : i64, tpu.core_type = #tpu.core_type<tc>} {
    %c0 = arith.constant 0 : index
    %c0_0 = arith.constant 0 : index
    %0 = vector.load %arg0[%c0, %c0_0] : memref<8x16xf32, #tpu.memory_space<vmem>>, vector<8x16xf32>
    %c0_1 = arith.constant 0 : index
    %c0_2 = arith.constant 0 : index
    %1 = vector.load %arg0[%c0_1, %c0_2] : memref<8x16xf32, #tpu.memory_space<vmem>>, vector<8x16xf32>
    %c0_3 = arith.constant 0 : index
    %c0_4 = arith.constant 0 : index
    %2 = vector.load %arg1[%c0_3, %c0_4] : memref<8x32xf32, #tpu.memory_space<vmem>>, vector<8x32xf32>
    %c0_5 = arith.constant 0 : index
    %c0_6 = arith.constant 0 : index
    %3 = vector.load %arg5[%c0_5, %c0_6] : memref<32x32xf32, #tpu.memory_space<vmem>>, vector<32x32xf32>
    %c0_7 = arith.constant 0 : index
    %c0_8 = arith.constant 0 : index
    %4 = vector.load %arg6[%c0_7, %c0_8] : memref<1x32xf32, #tpu.memory_space<vmem>>, vector<1x32xf32>
    %c0_9 = arith.constant 0 : index
    %c0_10 = arith.constant 0 : index
    %5 = vector.load %arg7[%c0_9, %c0_10] : memref<32x96xf32, #tpu.memory_space<vmem>>, vector<32x96xf32>
    %c0_11 = arith.constant 0 : index
    %c0_12 = arith.constant 0 : index
    %6 = vector.load %arg8[%c0_11, %c0_12] : memref<1x96xf32, #tpu.memory_space<vmem>>, vector<1x96xf32>
    %c0_13 = arith.constant 0 : index
    %c0_14 = arith.constant 0 : index
    %7 = vector.load %arg9[%c0_13, %c0_14] : memref<32x96xf32, #tpu.memory_space<vmem>>, vector<32x96xf32>
    %c0_15 = arith.constant 0 : index
    %c0_16 = arith.constant 0 : index
    %8 = vector.load %arg10[%c0_15, %c0_16] : memref<1x96xf32, #tpu.memory_space<vmem>>, vector<1x96xf32>
    %c0_17 = arith.constant 0 : index
    %c0_18 = arith.constant 0 : index
    %9 = vector.load %arg11[%c0_17, %c0_18] : memref<32x64xf32, #tpu.memory_space<vmem>>, vector<32x64xf32>
    %c0_19 = arith.constant 0 : index
    %c0_20 = arith.constant 0 : index
    %10 = vector.load %arg12[%c0_19, %c0_20] : memref<64x64xf32, #tpu.memory_space<vmem>>, vector<64x64xf32>
    %c0_21 = arith.constant 0 : index
    %c0_22 = arith.constant 0 : index
    %11 = vector.load %arg13[%c0_21, %c0_22] : memref<1x64xf32, #tpu.memory_space<vmem>>, vector<1x64xf32>
    %12 = tpu.concatenate %0, %1 in 1 : vector<8x16xf32>, vector<8x16xf32> -> vector<8x32xf32>
    %cst = arith.constant dense<0.000000e+00> : vector<8x32xf32>
    %13 = tpu.matmul %12, %3, %cst {dimension_numbers = #tpu.dot_dimension_numbers<[1], [0], [0], [1], [0, 0, 1, 1], [], []>} : vector<8x32xf32>, vector<32x32xf32>, vector<8x32xf32> -> vector<8x32xf32>
    %14 = vector.broadcast %4 : vector<1x32xf32> to vector<8x32xf32>
    %15 = arith.addf %13, %14 : vector<8x32xf32>
    %cst_23 = arith.constant 0.000000e+00 : f32
    %16 = vector.broadcast %cst_23 : f32 to vector<8x32xf32>
    %17 = arith.maximumf %15, %16 : vector<8x32xf32>
    %cst_24 = arith.constant dense<0.000000e+00> : vector<8x96xf32>
    %18 = tpu.matmul %17, %5, %cst_24 {dimension_numbers = #tpu.dot_dimension_numbers<[1], [0], [0], [1], [0, 0, 1, 1], [], []>} : vector<8x32xf32>, vector<32x96xf32>, vector<8x96xf32> -> vector<8x96xf32>
    %19 = vector.broadcast %6 : vector<1x96xf32> to vector<8x96xf32>
    %20 = arith.addf %18, %19 : vector<8x96xf32>
    %cst_25 = arith.constant dense<0.000000e+00> : vector<8x96xf32>
    %21 = tpu.matmul %2, %7, %cst_25 {dimension_numbers = #tpu.dot_dimension_numbers<[1], [0], [0], [1], [0, 0, 1, 1], [], []>} : vector<8x32xf32>, vector<32x96xf32>, vector<8x96xf32> -> vector<8x96xf32>
    %22 = vector.broadcast %8 : vector<1x96xf32> to vector<8x96xf32>
    %23 = arith.addf %21, %22 : vector<8x96xf32>
    %24 = vector.extract_strided_slice %20 {offsets = [0, 0], sizes = [8, 32], strides = [1, 1]} : vector<8x96xf32> to vector<8x32xf32>
    %25 = vector.extract_strided_slice %23 {offsets = [0, 0], sizes = [8, 32], strides = [1, 1]} : vector<8x96xf32> to vector<8x32xf32>
    %26 = arith.addf %24, %25 : vector<8x32xf32>
    %27 = arith.negf %26 : vector<8x32xf32>
    %28 = math.exp %27 : vector<8x32xf32>
    %cst_26 = arith.constant 1.000000e+00 : f32
    %29 = vector.broadcast %cst_26 : f32 to vector<8x32xf32>
    %30 = arith.addf %29, %28 : vector<8x32xf32>
    %31 = arith.divf %29, %30 : vector<8x32xf32>
    %32 = vector.extract_strided_slice %20 {offsets = [0, 32], sizes = [8, 32], strides = [1, 1]} : vector<8x96xf32> to vector<8x32xf32>
    %33 = vector.extract_strided_slice %23 {offsets = [0, 32], sizes = [8, 32], strides = [1, 1]} : vector<8x96xf32> to vector<8x32xf32>
    %34 = arith.addf %32, %33 : vector<8x32xf32>
    %35 = arith.negf %34 : vector<8x32xf32>
    %36 = math.exp %35 : vector<8x32xf32>
    %cst_27 = arith.constant 1.000000e+00 : f32
    %37 = vector.broadcast %cst_27 : f32 to vector<8x32xf32>
    %38 = arith.addf %37, %36 : vector<8x32xf32>
    %39 = arith.divf %37, %38 : vector<8x32xf32>
    %40 = vector.extract_strided_slice %20 {offsets = [0, 64], sizes = [8, 32], strides = [1, 1]} : vector<8x96xf32> to vector<8x32xf32>
    %41 = vector.extract_strided_slice %23 {offsets = [0, 64], sizes = [8, 32], strides = [1, 1]} : vector<8x96xf32> to vector<8x32xf32>
    %42 = arith.mulf %31, %41 : vector<8x32xf32>
    %43 = arith.addf %40, %42 : vector<8x32xf32>
    %44 = math.tanh %43 : vector<8x32xf32>
    %cst_28 = arith.constant 1.000000e+00 : f32
    %45 = vector.broadcast %cst_28 : f32 to vector<8x32xf32>
    %46 = arith.subf %45, %39 : vector<8x32xf32>
    %47 = arith.mulf %46, %44 : vector<8x32xf32>
    %48 = arith.mulf %39, %2 : vector<8x32xf32>
    %49 = arith.addf %47, %48 : vector<8x32xf32>
    %cst_29 = arith.constant dense<0.000000e+00> : vector<8x64xf32>
    %50 = tpu.matmul %49, %9, %cst_29 {dimension_numbers = #tpu.dot_dimension_numbers<[1], [0], [0], [1], [0, 0, 1, 1], [], []>} : vector<8x32xf32>, vector<32x64xf32>, vector<8x64xf32> -> vector<8x64xf32>
    %c0_30 = arith.constant 0 : index
    %c0_31 = arith.constant 0 : index
    %c0_32 = arith.constant 0 : index
    %51 = vector.load %arg2[%c0_30, %c0_31, %c0_32] : memref<7x8x64xf32, #tpu.memory_space<vmem>>, vector<1x8x64xf32>
    %52 = vector.shape_cast %51 : vector<1x8x64xf32> to vector<8x64xf32>
    %53 = arith.addf %50, %52 : vector<8x64xf32>
    %cst_33 = arith.constant 0.000000e+00 : f32
    %54 = vector.broadcast %cst_33 : f32 to vector<8x64xf32>
    %55 = arith.maximumf %53, %54 : vector<8x64xf32>
    %cst_34 = arith.constant dense<0.000000e+00> : vector<8x64xf32>
    %56 = tpu.matmul %55, %10, %cst_34 {dimension_numbers = #tpu.dot_dimension_numbers<[1], [0], [0], [1], [0, 0, 1, 1], [], []>} : vector<8x64xf32>, vector<64x64xf32>, vector<8x64xf32> -> vector<8x64xf32>
    %57 = vector.broadcast %11 : vector<1x64xf32> to vector<8x64xf32>
    %58 = arith.addf %56, %57 : vector<8x64xf32>
    %59 = vector.extract_strided_slice %58 {offsets = [0, 0], sizes = [8, 16], strides = [1, 1]} : vector<8x64xf32> to vector<8x16xf32>
    %60 = vector.extract_strided_slice %58 {offsets = [0, 16], sizes = [8, 16], strides = [1, 1]} : vector<8x64xf32> to vector<8x16xf32>
    %cst_35 = arith.constant 0.000000e+00 : f32
    %61 = vector.broadcast %cst_35 : f32 to vector<8x16xf32>
    %62 = arith.maximumf %60, %61 : vector<8x16xf32>
    %63 = vector.broadcast %cst_35 : f32 to vector<8x16xf32>
    %64 = arith.subf %60, %63 : vector<8x16xf32>
    %65 = arith.cmpf one, %64, %64 : vector<8x16xf32>
    %66 = vector.broadcast %cst_35 : f32 to vector<8x16xf32>
    %67 = arith.addf %60, %66 : vector<8x16xf32>
    %68 = math.absf %64 : vector<8x16xf32>
    %cst_36 = arith.constant 0.000000e+00 : f32
    %69 = vector.broadcast %cst_36 : f32 to vector<8x16xf32>
    %70 = arith.subf %69, %68 : vector<8x16xf32>
    %71 = math.exp %70 : vector<8x16xf32>
    %72 = math.log1p %71 : vector<8x16xf32>
    %73 = arith.addf %62, %72 : vector<8x16xf32>
    %74 = arith.select %65, %67, %73 : vector<8x16xi1>, vector<8x16xf32>
    %cst_37 = arith.constant 1.000000e-01 : f32
    %75 = vector.broadcast %cst_37 : f32 to vector<8x16xf32>
    %76 = arith.addf %74, %75 : vector<8x16xf32>
    %c0_38 = arith.constant 0 : index
    %c0_39 = arith.constant 0 : index
    %c0_40 = arith.constant 0 : index
    %77 = vector.load %arg3[%c0_38, %c0_39, %c0_40] : memref<7x8x16xf32, #tpu.memory_space<vmem>>, vector<1x8x16xf32>
    %78 = vector.shape_cast %77 : vector<1x8x16xf32> to vector<8x16xf32>
    %79 = arith.mulf %76, %78 : vector<8x16xf32>
    %80 = arith.addf %59, %79 : vector<8x16xf32>
    %81 = vector.extract_strided_slice %58 {offsets = [0, 32], sizes = [8, 16], strides = [1, 1]} : vector<8x64xf32> to vector<8x16xf32>
    %82 = vector.extract_strided_slice %58 {offsets = [0, 48], sizes = [8, 16], strides = [1, 1]} : vector<8x64xf32> to vector<8x16xf32>
    %cst_41 = arith.constant 0.000000e+00 : f32
    %83 = vector.broadcast %cst_41 : f32 to vector<8x16xf32>
    %84 = arith.maximumf %82, %83 : vector<8x16xf32>
    %85 = vector.broadcast %cst_41 : f32 to vector<8x16xf32>
    %86 = arith.subf %82, %85 : vector<8x16xf32>
    %87 = arith.cmpf one, %86, %86 : vector<8x16xf32>
    %88 = vector.broadcast %cst_41 : f32 to vector<8x16xf32>
    %89 = arith.addf %82, %88 : vector<8x16xf32>
    %90 = math.absf %86 : vector<8x16xf32>
    %cst_42 = arith.constant 0.000000e+00 : f32
    %91 = vector.broadcast %cst_42 : f32 to vector<8x16xf32>
    %92 = arith.subf %91, %90 : vector<8x16xf32>
    %93 = math.exp %92 : vector<8x16xf32>
    %94 = math.log1p %93 : vector<8x16xf32>
    %95 = arith.addf %84, %94 : vector<8x16xf32>
    %96 = arith.select %87, %89, %95 : vector<8x16xi1>, vector<8x16xf32>
    %cst_43 = arith.constant 1.000000e-01 : f32
    %97 = vector.broadcast %cst_43 : f32 to vector<8x16xf32>
    %98 = arith.addf %96, %97 : vector<8x16xf32>
    %c0_44 = arith.constant 0 : index
    %c0_45 = arith.constant 0 : index
    %c0_46 = arith.constant 0 : index
    %99 = vector.load %arg4[%c0_44, %c0_45, %c0_46] : memref<7x8x16xf32, #tpu.memory_space<vmem>>, vector<1x8x16xf32>
    %100 = vector.shape_cast %99 : vector<1x8x16xf32> to vector<8x16xf32>
    %101 = arith.mulf %98, %100 : vector<8x16xf32>
    %102 = arith.addf %81, %101 : vector<8x16xf32>
    %103 = tpu.concatenate %49, %102, %81, %98, %80, %59, %76 in 1 : vector<8x32xf32>, vector<8x16xf32>, vector<8x16xf32>, vector<8x16xf32>, vector<8x16xf32>, vector<8x16xf32>, vector<8x16xf32> -> vector<8x128xf32>
    %c0_47 = arith.constant 0 : index
    %c0_48 = arith.constant 0 : index
    %c0_49 = arith.constant 0 : index
    %104 = vector.load %arg14[%c0_47, %c0_48, %c0_49] : memref<7x8x128xf32, #tpu.memory_space<vmem>>, vector<1x8x128xf32>
    %105 = vector.shape_cast %104 : vector<1x8x128xf32> to vector<8x128xf32>
    %106 = vector.shape_cast %103 : vector<8x128xf32> to vector<1x8x128xf32>
    tpu.vector_store %arg14[%c0_47, %c0_48, %c0_49], %106 {strides = array<i32>} : memref<7x8x128xf32, #tpu.memory_space<vmem>>, vector<1x8x128xf32>,
    %107 = tpu.concatenate %80, %102 in 1 : vector<8x16xf32>, vector<8x16xf32> -> vector<8x32xf32>
    %cst_50 = arith.constant dense<0.000000e+00> : vector<8x32xf32>
    %108 = tpu.matmul %107, %3, %cst_50 {dimension_numbers = #tpu.dot_dimension_numbers<[1], [0], [0], [1], [0, 0, 1, 1], [], []>} : vector<8x32xf32>, vector<32x32xf32>, vector<8x32xf32> -> vector<8x32xf32>
    %109 = vector.broadcast %4 : vector<1x32xf32> to vector<8x32xf32>
    %110 = arith.addf %108, %109 : vector<8x32xf32>
    %cst_51 = arith.constant 0.000000e+00 : f32
    %111 = vector.broadcast %cst_51 : f32 to vector<8x32xf32>
    %112 = arith.maximumf %110, %111 : vector<8x32xf32>
    %cst_52 = arith.constant dense<0.000000e+00> : vector<8x96xf32>
    %113 = tpu.matmul %112, %5, %cst_52 {dimension_numbers = #tpu.dot_dimension_numbers<[1], [0], [0], [1], [0, 0, 1, 1], [], []>} : vector<8x32xf32>, vector<32x96xf32>, vector<8x96xf32> -> vector<8x96xf32>
    %114 = vector.broadcast %6 : vector<1x96xf32> to vector<8x96xf32>
    %115 = arith.addf %113, %114 : vector<8x96xf32>
    %cst_53 = arith.constant dense<0.000000e+00> : vector<8x96xf32>
    %116 = tpu.matmul %49, %7, %cst_53 {dimension_numbers = #tpu.dot_dimension_numbers<[1], [0], [0], [1], [0, 0, 1, 1], [], []>} : vector<8x32xf32>, vector<32x96xf32>, vector<8x96xf32> -> vector<8x96xf32>
    %117 = vector.broadcast %8 : vector<1x96xf32> to vector<8x96xf32>
    %118 = arith.addf %116, %117 : vector<8x96xf32>
    %119 = vector.extract_strided_slice %115 {offsets = [0, 0], sizes = [8, 32], strides = [1, 1]} : vector<8x96xf32> to vector<8x32xf32>
    %120 = vector.extract_strided_slice %118 {offsets = [0, 0], sizes = [8, 32], strides = [1, 1]} : vector<8x96xf32> to vector<8x32xf32>
    %121 = arith.addf %119, %120 : vector<8x32xf32>
    %122 = arith.negf %121 : vector<8x32xf32>
    %123 = math.exp %122 : vector<8x32xf32>
    %cst_54 = arith.constant 1.000000e+00 : f32
    %124 = vector.broadcast %cst_54 : f32 to vector<8x32xf32>
    %125 = arith.addf %124, %123 : vector<8x32xf32>
    %126 = arith.divf %124, %125 : vector<8x32xf32>
    %127 = vector.extract_strided_slice %115 {offsets = [0, 32], sizes = [8, 32], strides = [1, 1]} : vector<8x96xf32> to vector<8x32xf32>
    %128 = vector.extract_strided_slice %118 {offsets = [0, 32], sizes = [8, 32], strides = [1, 1]} : vector<8x96xf32> to vector<8x32xf32>
    %129 = arith.addf %127, %128 : vector<8x32xf32>
    %130 = arith.negf %129 : vector<8x32xf32>
    %131 = math.exp %130 : vector<8x32xf32>
    %cst_55 = arith.constant 1.000000e+00 : f32
    %132 = vector.broadcast %cst_55 : f32 to vector<8x32xf32>
    %133 = arith.addf %132, %131 : vector<8x32xf32>
    %134 = arith.divf %132, %133 : vector<8x32xf32>
    %135 = vector.extract_strided_slice %115 {offsets = [0, 64], sizes = [8, 32], strides = [1, 1]} : vector<8x96xf32> to vector<8x32xf32>
    %136 = vector.extract_strided_slice %118 {offsets = [0, 64], sizes = [8, 32], strides = [1, 1]} : vector<8x96xf32> to vector<8x32xf32>
    %137 = arith.mulf %126, %136 : vector<8x32xf32>
    %138 = arith.addf %135, %137 : vector<8x32xf32>
    %139 = math.tanh %138 : vector<8x32xf32>
    %cst_56 = arith.constant 1.000000e+00 : f32
    %140 = vector.broadcast %cst_56 : f32 to vector<8x32xf32>
    %141 = arith.subf %140, %134 : vector<8x32xf32>
    %142 = arith.mulf %141, %139 : vector<8x32xf32>
    %143 = arith.mulf %134, %49 : vector<8x32xf32>
    %144 = arith.addf %142, %143 : vector<8x32xf32>
    %cst_57 = arith.constant dense<0.000000e+00> : vector<8x64xf32>
    %145 = tpu.matmul %144, %9, %cst_57 {dimension_numbers = #tpu.dot_dimension_numbers<[1], [0], [0], [1], [0, 0, 1, 1], [], []>} : vector<8x32xf32>, vector<32x64xf32>, vector<8x64xf32> -> vector<8x64xf32>
    %c1 = arith.constant 1 : index
    %c0_58 = arith.constant 0 : index
    %c0_59 = arith.constant 0 : index
    %146 = vector.load %arg2[%c1, %c0_58, %c0_59] : memref<7x8x64xf32, #tpu.memory_space<vmem>>, vector<1x8x64xf32>
    %147 = vector.shape_cast %146 : vector<1x8x64xf32> to vector<8x64xf32>
    %148 = arith.addf %145, %147 : vector<8x64xf32>
    %cst_60 = arith.constant 0.000000e+00 : f32
    %149 = vector.broadcast %cst_60 : f32 to vector<8x64xf32>
    %150 = arith.maximumf %148, %149 : vector<8x64xf32>
    %cst_61 = arith.constant dense<0.000000e+00> : vector<8x64xf32>
    %151 = tpu.matmul %150, %10, %cst_61 {dimension_numbers = #tpu.dot_dimension_numbers<[1], [0], [0], [1], [0, 0, 1, 1], [], []>} : vector<8x64xf32>, vector<64x64xf32>, vector<8x64xf32> -> vector<8x64xf32>
    %152 = vector.broadcast %11 : vector<1x64xf32> to vector<8x64xf32>
    %153 = arith.addf %151, %152 : vector<8x64xf32>
    %154 = vector.extract_strided_slice %153 {offsets = [0, 0], sizes = [8, 16], strides = [1, 1]} : vector<8x64xf32> to vector<8x16xf32>
    %155 = vector.extract_strided_slice %153 {offsets = [0, 16], sizes = [8, 16], strides = [1, 1]} : vector<8x64xf32> to vector<8x16xf32>
    %cst_62 = arith.constant 0.000000e+00 : f32
    %156 = vector.broadcast %cst_62 : f32 to vector<8x16xf32>
    %157 = arith.maximumf %155, %156 : vector<8x16xf32>
    %158 = vector.broadcast %cst_62 : f32 to vector<8x16xf32>
    %159 = arith.subf %155, %158 : vector<8x16xf32>
    %160 = arith.cmpf one, %159, %159 : vector<8x16xf32>
    %161 = vector.broadcast %cst_62 : f32 to vector<8x16xf32>
    %162 = arith.addf %155, %161 : vector<8x16xf32>
    %163 = math.absf %159 : vector<8x16xf32>
    %cst_63 = arith.constant 0.000000e+00 : f32
    %164 = vector.broadcast %cst_63 : f32 to vector<8x16xf32>
    %165 = arith.subf %164, %163 : vector<8x16xf32>
    %166 = math.exp %165 : vector<8x16xf32>
    %167 = math.log1p %166 : vector<8x16xf32>
    %168 = arith.addf %157, %167 : vector<8x16xf32>
    %169 = arith.select %160, %162, %168 : vector<8x16xi1>, vector<8x16xf32>
    %cst_64 = arith.constant 1.000000e-01 : f32
    %170 = vector.broadcast %cst_64 : f32 to vector<8x16xf32>
    %171 = arith.addf %169, %170 : vector<8x16xf32>
    %c1_65 = arith.constant 1 : index
    %c0_66 = arith.constant 0 : index
    %c0_67 = arith.constant 0 : index
    %172 = vector.load %arg3[%c1_65, %c0_66, %c0_67] : memref<7x8x16xf32, #tpu.memory_space<vmem>>, vector<1x8x16xf32>
    %173 = vector.shape_cast %172 : vector<1x8x16xf32> to vector<8x16xf32>
    %174 = arith.mulf %171, %173 : vector<8x16xf32>
    %175 = arith.addf %154, %174 : vector<8x16xf32>
    %176 = vector.extract_strided_slice %153 {offsets = [0, 32], sizes = [8, 16], strides = [1, 1]} : vector<8x64xf32> to vector<8x16xf32>
    %177 = vector.extract_strided_slice %153 {offsets = [0, 48], sizes = [8, 16], strides = [1, 1]} : vector<8x64xf32> to vector<8x16xf32>
    %cst_68 = arith.constant 0.000000e+00 : f32
    %178 = vector.broadcast %cst_68 : f32 to vector<8x16xf32>
    %179 = arith.maximumf %177, %178 : vector<8x16xf32>
    %180 = vector.broadcast %cst_68 : f32 to vector<8x16xf32>
    %181 = arith.subf %177, %180 : vector<8x16xf32>
    %182 = arith.cmpf one, %181, %181 : vector<8x16xf32>
    %183 = vector.broadcast %cst_68 : f32 to vector<8x16xf32>
    %184 = arith.addf %177, %183 : vector<8x16xf32>
    %185 = math.absf %181 : vector<8x16xf32>
    %cst_69 = arith.constant 0.000000e+00 : f32
    %186 = vector.broadcast %cst_69 : f32 to vector<8x16xf32>
    %187 = arith.subf %186, %185 : vector<8x16xf32>
    %188 = math.exp %187 : vector<8x16xf32>
    %189 = math.log1p %188 : vector<8x16xf32>
    %190 = arith.addf %179, %189 : vector<8x16xf32>
    %191 = arith.select %182, %184, %190 : vector<8x16xi1>, vector<8x16xf32>
    %cst_70 = arith.constant 1.000000e-01 : f32
    %192 = vector.broadcast %cst_70 : f32 to vector<8x16xf32>
    %193 = arith.addf %191, %192 : vector<8x16xf32>
    %c1_71 = arith.constant 1 : index
    %c0_72 = arith.constant 0 : index
    %c0_73 = arith.constant 0 : index
    %194 = vector.load %arg4[%c1_71, %c0_72, %c0_73] : memref<7x8x16xf32, #tpu.memory_space<vmem>>, vector<1x8x16xf32>
    %195 = vector.shape_cast %194 : vector<1x8x16xf32> to vector<8x16xf32>
    %196 = arith.mulf %193, %195 : vector<8x16xf32>
    %197 = arith.addf %176, %196 : vector<8x16xf32>
    %198 = tpu.concatenate %144, %197, %176, %193, %175, %154, %171 in 1 : vector<8x32xf32>, vector<8x16xf32>, vector<8x16xf32>, vector<8x16xf32>, vector<8x16xf32>, vector<8x16xf32>, vector<8x16xf32> -> vector<8x128xf32>
    %c1_74 = arith.constant 1 : index
    %c0_75 = arith.constant 0 : index
    %c0_76 = arith.constant 0 : index
    %199 = vector.load %arg14[%c1_74, %c0_75, %c0_76] : memref<7x8x128xf32, #tpu.memory_space<vmem>>, vector<1x8x128xf32>
    %200 = vector.shape_cast %199 : vector<1x8x128xf32> to vector<8x128xf32>
    %201 = vector.shape_cast %198 : vector<8x128xf32> to vector<1x8x128xf32>
    tpu.vector_store %arg14[%c1_74, %c0_75, %c0_76], %201 {strides = array<i32>} : memref<7x8x128xf32, #tpu.memory_space<vmem>>, vector<1x8x128xf32>,
    %202 = tpu.concatenate %175, %197 in 1 : vector<8x16xf32>, vector<8x16xf32> -> vector<8x32xf32>
    %cst_77 = arith.constant dense<0.000000e+00> : vector<8x32xf32>
    %203 = tpu.matmul %202, %3, %cst_77 {dimension_numbers = #tpu.dot_dimension_numbers<[1], [0], [0], [1], [0, 0, 1, 1], [], []>} : vector<8x32xf32>, vector<32x32xf32>, vector<8x32xf32> -> vector<8x32xf32>
    %204 = vector.broadcast %4 : vector<1x32xf32> to vector<8x32xf32>
    %205 = arith.addf %203, %204 : vector<8x32xf32>
    %cst_78 = arith.constant 0.000000e+00 : f32
    %206 = vector.broadcast %cst_78 : f32 to vector<8x32xf32>
    %207 = arith.maximumf %205, %206 : vector<8x32xf32>
    %cst_79 = arith.constant dense<0.000000e+00> : vector<8x96xf32>
    %208 = tpu.matmul %207, %5, %cst_79 {dimension_numbers = #tpu.dot_dimension_numbers<[1], [0], [0], [1], [0, 0, 1, 1], [], []>} : vector<8x32xf32>, vector<32x96xf32>, vector<8x96xf32> -> vector<8x96xf32>
    %209 = vector.broadcast %6 : vector<1x96xf32> to vector<8x96xf32>
    %210 = arith.addf %208, %209 : vector<8x96xf32>
    %cst_80 = arith.constant dense<0.000000e+00> : vector<8x96xf32>
    %211 = tpu.matmul %144, %7, %cst_80 {dimension_numbers = #tpu.dot_dimension_numbers<[1], [0], [0], [1], [0, 0, 1, 1], [], []>} : vector<8x32xf32>, vector<32x96xf32>, vector<8x96xf32> -> vector<8x96xf32>
    %212 = vector.broadcast %8 : vector<1x96xf32> to vector<8x96xf32>
    %213 = arith.addf %211, %212 : vector<8x96xf32>
    %214 = vector.extract_strided_slice %210 {offsets = [0, 0], sizes = [8, 32], strides = [1, 1]} : vector<8x96xf32> to vector<8x32xf32>
    %215 = vector.extract_strided_slice %213 {offsets = [0, 0], sizes = [8, 32], strides = [1, 1]} : vector<8x96xf32> to vector<8x32xf32>
    %216 = arith.addf %214, %215 : vector<8x32xf32>
    %217 = arith.negf %216 : vector<8x32xf32>
    %218 = math.exp %217 : vector<8x32xf32>
    %cst_81 = arith.constant 1.000000e+00 : f32
    %219 = vector.broadcast %cst_81 : f32 to vector<8x32xf32>
    %220 = arith.addf %219, %218 : vector<8x32xf32>
    %221 = arith.divf %219, %220 : vector<8x32xf32>
    %222 = vector.extract_strided_slice %210 {offsets = [0, 32], sizes = [8, 32], strides = [1, 1]} : vector<8x96xf32> to vector<8x32xf32>
    %223 = vector.extract_strided_slice %213 {offsets = [0, 32], sizes = [8, 32], strides = [1, 1]} : vector<8x96xf32> to vector<8x32xf32>
    %224 = arith.addf %222, %223 : vector<8x32xf32>
    %225 = arith.negf %224 : vector<8x32xf32>
    %226 = math.exp %225 : vector<8x32xf32>
    %cst_82 = arith.constant 1.000000e+00 : f32
    %227 = vector.broadcast %cst_82 : f32 to vector<8x32xf32>
    %228 = arith.addf %227, %226 : vector<8x32xf32>
    %229 = arith.divf %227, %228 : vector<8x32xf32>
    %230 = vector.extract_strided_slice %210 {offsets = [0, 64], sizes = [8, 32], strides = [1, 1]} : vector<8x96xf32> to vector<8x32xf32>
    %231 = vector.extract_strided_slice %213 {offsets = [0, 64], sizes = [8, 32], strides = [1, 1]} : vector<8x96xf32> to vector<8x32xf32>
    %232 = arith.mulf %221, %231 : vector<8x32xf32>
    %233 = arith.addf %230, %232 : vector<8x32xf32>
    %234 = math.tanh %233 : vector<8x32xf32>
    %cst_83 = arith.constant 1.000000e+00 : f32
    %235 = vector.broadcast %cst_83 : f32 to vector<8x32xf32>
    %236 = arith.subf %235, %229 : vector<8x32xf32>
    %237 = arith.mulf %236, %234 : vector<8x32xf32>
    %238 = arith.mulf %229, %144 : vector<8x32xf32>
    %239 = arith.addf %237, %238 : vector<8x32xf32>
    %cst_84 = arith.constant dense<0.000000e+00> : vector<8x64xf32>
    %240 = tpu.matmul %239, %9, %cst_84 {dimension_numbers = #tpu.dot_dimension_numbers<[1], [0], [0], [1], [0, 0, 1, 1], [], []>} : vector<8x32xf32>, vector<32x64xf32>, vector<8x64xf32> -> vector<8x64xf32>
    %c2 = arith.constant 2 : index
    %c0_85 = arith.constant 0 : index
    %c0_86 = arith.constant 0 : index
    %241 = vector.load %arg2[%c2, %c0_85, %c0_86] : memref<7x8x64xf32, #tpu.memory_space<vmem>>, vector<1x8x64xf32>
    %242 = vector.shape_cast %241 : vector<1x8x64xf32> to vector<8x64xf32>
    %243 = arith.addf %240, %242 : vector<8x64xf32>
    %cst_87 = arith.constant 0.000000e+00 : f32
    %244 = vector.broadcast %cst_87 : f32 to vector<8x64xf32>
    %245 = arith.maximumf %243, %244 : vector<8x64xf32>
    %cst_88 = arith.constant dense<0.000000e+00> : vector<8x64xf32>
    %246 = tpu.matmul %245, %10, %cst_88 {dimension_numbers = #tpu.dot_dimension_numbers<[1], [0], [0], [1], [0, 0, 1, 1], [], []>} : vector<8x64xf32>, vector<64x64xf32>, vector<8x64xf32> -> vector<8x64xf32>
    %247 = vector.broadcast %11 : vector<1x64xf32> to vector<8x64xf32>
    %248 = arith.addf %246, %247 : vector<8x64xf32>
    %249 = vector.extract_strided_slice %248 {offsets = [0, 0], sizes = [8, 16], strides = [1, 1]} : vector<8x64xf32> to vector<8x16xf32>
    %250 = vector.extract_strided_slice %248 {offsets = [0, 16], sizes = [8, 16], strides = [1, 1]} : vector<8x64xf32> to vector<8x16xf32>
    %cst_89 = arith.constant 0.000000e+00 : f32
    %251 = vector.broadcast %cst_89 : f32 to vector<8x16xf32>
    %252 = arith.maximumf %250, %251 : vector<8x16xf32>
    %253 = vector.broadcast %cst_89 : f32 to vector<8x16xf32>
    %254 = arith.subf %250, %253 : vector<8x16xf32>
    %255 = arith.cmpf one, %254, %254 : vector<8x16xf32>
    %256 = vector.broadcast %cst_89 : f32 to vector<8x16xf32>
    %257 = arith.addf %250, %256 : vector<8x16xf32>
    %258 = math.absf %254 : vector<8x16xf32>
    %cst_90 = arith.constant 0.000000e+00 : f32
    %259 = vector.broadcast %cst_90 : f32 to vector<8x16xf32>
    %260 = arith.subf %259, %258 : vector<8x16xf32>
    %261 = math.exp %260 : vector<8x16xf32>
    %262 = math.log1p %261 : vector<8x16xf32>
    %263 = arith.addf %252, %262 : vector<8x16xf32>
    %264 = arith.select %255, %257, %263 : vector<8x16xi1>, vector<8x16xf32>
    %cst_91 = arith.constant 1.000000e-01 : f32
    %265 = vector.broadcast %cst_91 : f32 to vector<8x16xf32>
    %266 = arith.addf %264, %265 : vector<8x16xf32>
    %c2_92 = arith.constant 2 : index
    %c0_93 = arith.constant 0 : index
    %c0_94 = arith.constant 0 : index
    %267 = vector.load %arg3[%c2_92, %c0_93, %c0_94] : memref<7x8x16xf32, #tpu.memory_space<vmem>>, vector<1x8x16xf32>
    %268 = vector.shape_cast %267 : vector<1x8x16xf32> to vector<8x16xf32>
    %269 = arith.mulf %266, %268 : vector<8x16xf32>
    %270 = arith.addf %249, %269 : vector<8x16xf32>
    %271 = vector.extract_strided_slice %248 {offsets = [0, 32], sizes = [8, 16], strides = [1, 1]} : vector<8x64xf32> to vector<8x16xf32>
    %272 = vector.extract_strided_slice %248 {offsets = [0, 48], sizes = [8, 16], strides = [1, 1]} : vector<8x64xf32> to vector<8x16xf32>
    %cst_95 = arith.constant 0.000000e+00 : f32
    %273 = vector.broadcast %cst_95 : f32 to vector<8x16xf32>
    %274 = arith.maximumf %272, %273 : vector<8x16xf32>
    %275 = vector.broadcast %cst_95 : f32 to vector<8x16xf32>
    %276 = arith.subf %272, %275 : vector<8x16xf32>
    %277 = arith.cmpf one, %276, %276 : vector<8x16xf32>
    %278 = vector.broadcast %cst_95 : f32 to vector<8x16xf32>
    %279 = arith.addf %272, %278 : vector<8x16xf32>
    %280 = math.absf %276 : vector<8x16xf32>
    %cst_96 = arith.constant 0.000000e+00 : f32
    %281 = vector.broadcast %cst_96 : f32 to vector<8x16xf32>
    %282 = arith.subf %281, %280 : vector<8x16xf32>
    %283 = math.exp %282 : vector<8x16xf32>
    %284 = math.log1p %283 : vector<8x16xf32>
    %285 = arith.addf %274, %284 : vector<8x16xf32>
    %286 = arith.select %277, %279, %285 : vector<8x16xi1>, vector<8x16xf32>
    %cst_97 = arith.constant 1.000000e-01 : f32
    %287 = vector.broadcast %cst_97 : f32 to vector<8x16xf32>
    %288 = arith.addf %286, %287 : vector<8x16xf32>
    %c2_98 = arith.constant 2 : index
    %c0_99 = arith.constant 0 : index
    %c0_100 = arith.constant 0 : index
    %289 = vector.load %arg4[%c2_98, %c0_99, %c0_100] : memref<7x8x16xf32, #tpu.memory_space<vmem>>, vector<1x8x16xf32>
    %290 = vector.shape_cast %289 : vector<1x8x16xf32> to vector<8x16xf32>
    %291 = arith.mulf %288, %290 : vector<8x16xf32>
    %292 = arith.addf %271, %291 : vector<8x16xf32>
    %293 = tpu.concatenate %239, %292, %271, %288, %270, %249, %266 in 1 : vector<8x32xf32>, vector<8x16xf32>, vector<8x16xf32>, vector<8x16xf32>, vector<8x16xf32>, vector<8x16xf32>, vector<8x16xf32> -> vector<8x128xf32>
    %c2_101 = arith.constant 2 : index
    %c0_102 = arith.constant 0 : index
    %c0_103 = arith.constant 0 : index
    %294 = vector.load %arg14[%c2_101, %c0_102, %c0_103] : memref<7x8x128xf32, #tpu.memory_space<vmem>>, vector<1x8x128xf32>
    %295 = vector.shape_cast %294 : vector<1x8x128xf32> to vector<8x128xf32>
    %296 = vector.shape_cast %293 : vector<8x128xf32> to vector<1x8x128xf32>
    tpu.vector_store %arg14[%c2_101, %c0_102, %c0_103], %296 {strides = array<i32>} : memref<7x8x128xf32, #tpu.memory_space<vmem>>, vector<1x8x128xf32>,
    %297 = tpu.concatenate %270, %292 in 1 : vector<8x16xf32>, vector<8x16xf32> -> vector<8x32xf32>
    %cst_104 = arith.constant dense<0.000000e+00> : vector<8x32xf32>
    %298 = tpu.matmul %297, %3, %cst_104 {dimension_numbers = #tpu.dot_dimension_numbers<[1], [0], [0], [1], [0, 0, 1, 1], [], []>} : vector<8x32xf32>, vector<32x32xf32>, vector<8x32xf32> -> vector<8x32xf32>
    %299 = vector.broadcast %4 : vector<1x32xf32> to vector<8x32xf32>
    %300 = arith.addf %298, %299 : vector<8x32xf32>
    %cst_105 = arith.constant 0.000000e+00 : f32
    %301 = vector.broadcast %cst_105 : f32 to vector<8x32xf32>
    %302 = arith.maximumf %300, %301 : vector<8x32xf32>
    %cst_106 = arith.constant dense<0.000000e+00> : vector<8x96xf32>
    %303 = tpu.matmul %302, %5, %cst_106 {dimension_numbers = #tpu.dot_dimension_numbers<[1], [0], [0], [1], [0, 0, 1, 1], [], []>} : vector<8x32xf32>, vector<32x96xf32>, vector<8x96xf32> -> vector<8x96xf32>
    %304 = vector.broadcast %6 : vector<1x96xf32> to vector<8x96xf32>
    %305 = arith.addf %303, %304 : vector<8x96xf32>
    %cst_107 = arith.constant dense<0.000000e+00> : vector<8x96xf32>
    %306 = tpu.matmul %239, %7, %cst_107 {dimension_numbers = #tpu.dot_dimension_numbers<[1], [0], [0], [1], [0, 0, 1, 1], [], []>} : vector<8x32xf32>, vector<32x96xf32>, vector<8x96xf32> -> vector<8x96xf32>
    %307 = vector.broadcast %8 : vector<1x96xf32> to vector<8x96xf32>
    %308 = arith.addf %306, %307 : vector<8x96xf32>
    %309 = vector.extract_strided_slice %305 {offsets = [0, 0], sizes = [8, 32], strides = [1, 1]} : vector<8x96xf32> to vector<8x32xf32>
    %310 = vector.extract_strided_slice %308 {offsets = [0, 0], sizes = [8, 32], strides = [1, 1]} : vector<8x96xf32> to vector<8x32xf32>
    %311 = arith.addf %309, %310 : vector<8x32xf32>
    %312 = arith.negf %311 : vector<8x32xf32>
    %313 = math.exp %312 : vector<8x32xf32>
    %cst_108 = arith.constant 1.000000e+00 : f32
    %314 = vector.broadcast %cst_108 : f32 to vector<8x32xf32>
    %315 = arith.addf %314, %313 : vector<8x32xf32>
    %316 = arith.divf %314, %315 : vector<8x32xf32>
    %317 = vector.extract_strided_slice %305 {offsets = [0, 32], sizes = [8, 32], strides = [1, 1]} : vector<8x96xf32> to vector<8x32xf32>
    %318 = vector.extract_strided_slice %308 {offsets = [0, 32], sizes = [8, 32], strides = [1, 1]} : vector<8x96xf32> to vector<8x32xf32>
    %319 = arith.addf %317, %318 : vector<8x32xf32>
    %320 = arith.negf %319 : vector<8x32xf32>
    %321 = math.exp %320 : vector<8x32xf32>
    %cst_109 = arith.constant 1.000000e+00 : f32
    %322 = vector.broadcast %cst_109 : f32 to vector<8x32xf32>
    %323 = arith.addf %322, %321 : vector<8x32xf32>
    %324 = arith.divf %322, %323 : vector<8x32xf32>
    %325 = vector.extract_strided_slice %305 {offsets = [0, 64], sizes = [8, 32], strides = [1, 1]} : vector<8x96xf32> to vector<8x32xf32>
    %326 = vector.extract_strided_slice %308 {offsets = [0, 64], sizes = [8, 32], strides = [1, 1]} : vector<8x96xf32> to vector<8x32xf32>
    %327 = arith.mulf %316, %326 : vector<8x32xf32>
    %328 = arith.addf %325, %327 : vector<8x32xf32>
    %329 = math.tanh %328 : vector<8x32xf32>
    %cst_110 = arith.constant 1.000000e+00 : f32
    %330 = vector.broadcast %cst_110 : f32 to vector<8x32xf32>
    %331 = arith.subf %330, %324 : vector<8x32xf32>
    %332 = arith.mulf %331, %329 : vector<8x32xf32>
    %333 = arith.mulf %324, %239 : vector<8x32xf32>
    %334 = arith.addf %332, %333 : vector<8x32xf32>
    %cst_111 = arith.constant dense<0.000000e+00> : vector<8x64xf32>
    %335 = tpu.matmul %334, %9, %cst_111 {dimension_numbers = #tpu.dot_dimension_numbers<[1], [0], [0], [1], [0, 0, 1, 1], [], []>} : vector<8x32xf32>, vector<32x64xf32>, vector<8x64xf32> -> vector<8x64xf32>
    %c3 = arith.constant 3 : index
    %c0_112 = arith.constant 0 : index
    %c0_113 = arith.constant 0 : index
    %336 = vector.load %arg2[%c3, %c0_112, %c0_113] : memref<7x8x64xf32, #tpu.memory_space<vmem>>, vector<1x8x64xf32>
    %337 = vector.shape_cast %336 : vector<1x8x64xf32> to vector<8x64xf32>
    %338 = arith.addf %335, %337 : vector<8x64xf32>
    %cst_114 = arith.constant 0.000000e+00 : f32
    %339 = vector.broadcast %cst_114 : f32 to vector<8x64xf32>
    %340 = arith.maximumf %338, %339 : vector<8x64xf32>
    %cst_115 = arith.constant dense<0.000000e+00> : vector<8x64xf32>
    %341 = tpu.matmul %340, %10, %cst_115 {dimension_numbers = #tpu.dot_dimension_numbers<[1], [0], [0], [1], [0, 0, 1, 1], [], []>} : vector<8x64xf32>, vector<64x64xf32>, vector<8x64xf32> -> vector<8x64xf32>
    %342 = vector.broadcast %11 : vector<1x64xf32> to vector<8x64xf32>
    %343 = arith.addf %341, %342 : vector<8x64xf32>
    %344 = vector.extract_strided_slice %343 {offsets = [0, 0], sizes = [8, 16], strides = [1, 1]} : vector<8x64xf32> to vector<8x16xf32>
    %345 = vector.extract_strided_slice %343 {offsets = [0, 16], sizes = [8, 16], strides = [1, 1]} : vector<8x64xf32> to vector<8x16xf32>
    %cst_116 = arith.constant 0.000000e+00 : f32
    %346 = vector.broadcast %cst_116 : f32 to vector<8x16xf32>
    %347 = arith.maximumf %345, %346 : vector<8x16xf32>
    %348 = vector.broadcast %cst_116 : f32 to vector<8x16xf32>
    %349 = arith.subf %345, %348 : vector<8x16xf32>
    %350 = arith.cmpf one, %349, %349 : vector<8x16xf32>
    %351 = vector.broadcast %cst_116 : f32 to vector<8x16xf32>
    %352 = arith.addf %345, %351 : vector<8x16xf32>
    %353 = math.absf %349 : vector<8x16xf32>
    %cst_117 = arith.constant 0.000000e+00 : f32
    %354 = vector.broadcast %cst_117 : f32 to vector<8x16xf32>
    %355 = arith.subf %354, %353 : vector<8x16xf32>
    %356 = math.exp %355 : vector<8x16xf32>
    %357 = math.log1p %356 : vector<8x16xf32>
    %358 = arith.addf %347, %357 : vector<8x16xf32>
    %359 = arith.select %350, %352, %358 : vector<8x16xi1>, vector<8x16xf32>
    %cst_118 = arith.constant 1.000000e-01 : f32
    %360 = vector.broadcast %cst_118 : f32 to vector<8x16xf32>
    %361 = arith.addf %359, %360 : vector<8x16xf32>
    %c3_119 = arith.constant 3 : index
    %c0_120 = arith.constant 0 : index
    %c0_121 = arith.constant 0 : index
    %362 = vector.load %arg3[%c3_119, %c0_120, %c0_121] : memref<7x8x16xf32, #tpu.memory_space<vmem>>, vector<1x8x16xf32>
    %363 = vector.shape_cast %362 : vector<1x8x16xf32> to vector<8x16xf32>
    %364 = arith.mulf %361, %363 : vector<8x16xf32>
    %365 = arith.addf %344, %364 : vector<8x16xf32>
    %366 = vector.extract_strided_slice %343 {offsets = [0, 32], sizes = [8, 16], strides = [1, 1]} : vector<8x64xf32> to vector<8x16xf32>
    %367 = vector.extract_strided_slice %343 {offsets = [0, 48], sizes = [8, 16], strides = [1, 1]} : vector<8x64xf32> to vector<8x16xf32>
    %cst_122 = arith.constant 0.000000e+00 : f32
    %368 = vector.broadcast %cst_122 : f32 to vector<8x16xf32>
    %369 = arith.maximumf %367, %368 : vector<8x16xf32>
    %370 = vector.broadcast %cst_122 : f32 to vector<8x16xf32>
    %371 = arith.subf %367, %370 : vector<8x16xf32>
    %372 = arith.cmpf one, %371, %371 : vector<8x16xf32>
    %373 = vector.broadcast %cst_122 : f32 to vector<8x16xf32>
    %374 = arith.addf %367, %373 : vector<8x16xf32>
    %375 = math.absf %371 : vector<8x16xf32>
    %cst_123 = arith.constant 0.000000e+00 : f32
    %376 = vector.broadcast %cst_123 : f32 to vector<8x16xf32>
    %377 = arith.subf %376, %375 : vector<8x16xf32>
    %378 = math.exp %377 : vector<8x16xf32>
    %379 = math.log1p %378 : vector<8x16xf32>
    %380 = arith.addf %369, %379 : vector<8x16xf32>
    %381 = arith.select %372, %374, %380 : vector<8x16xi1>, vector<8x16xf32>
    %cst_124 = arith.constant 1.000000e-01 : f32
    %382 = vector.broadcast %cst_124 : f32 to vector<8x16xf32>
    %383 = arith.addf %381, %382 : vector<8x16xf32>
    %c3_125 = arith.constant 3 : index
    %c0_126 = arith.constant 0 : index
    %c0_127 = arith.constant 0 : index
    %384 = vector.load %arg4[%c3_125, %c0_126, %c0_127] : memref<7x8x16xf32, #tpu.memory_space<vmem>>, vector<1x8x16xf32>
    %385 = vector.shape_cast %384 : vector<1x8x16xf32> to vector<8x16xf32>
    %386 = arith.mulf %383, %385 : vector<8x16xf32>
    %387 = arith.addf %366, %386 : vector<8x16xf32>
    %388 = tpu.concatenate %334, %387, %366, %383, %365, %344, %361 in 1 : vector<8x32xf32>, vector<8x16xf32>, vector<8x16xf32>, vector<8x16xf32>, vector<8x16xf32>, vector<8x16xf32>, vector<8x16xf32> -> vector<8x128xf32>
    %c3_128 = arith.constant 3 : index
    %c0_129 = arith.constant 0 : index
    %c0_130 = arith.constant 0 : index
    %389 = vector.load %arg14[%c3_128, %c0_129, %c0_130] : memref<7x8x128xf32, #tpu.memory_space<vmem>>, vector<1x8x128xf32>
    %390 = vector.shape_cast %389 : vector<1x8x128xf32> to vector<8x128xf32>
    %391 = vector.shape_cast %388 : vector<8x128xf32> to vector<1x8x128xf32>
    tpu.vector_store %arg14[%c3_128, %c0_129, %c0_130], %391 {strides = array<i32>} : memref<7x8x128xf32, #tpu.memory_space<vmem>>, vector<1x8x128xf32>,
    %392 = tpu.concatenate %365, %387 in 1 : vector<8x16xf32>, vector<8x16xf32> -> vector<8x32xf32>
    %cst_131 = arith.constant dense<0.000000e+00> : vector<8x32xf32>
    %393 = tpu.matmul %392, %3, %cst_131 {dimension_numbers = #tpu.dot_dimension_numbers<[1], [0], [0], [1], [0, 0, 1, 1], [], []>} : vector<8x32xf32>, vector<32x32xf32>, vector<8x32xf32> -> vector<8x32xf32>
    %394 = vector.broadcast %4 : vector<1x32xf32> to vector<8x32xf32>
    %395 = arith.addf %393, %394 : vector<8x32xf32>
    %cst_132 = arith.constant 0.000000e+00 : f32
    %396 = vector.broadcast %cst_132 : f32 to vector<8x32xf32>
    %397 = arith.maximumf %395, %396 : vector<8x32xf32>
    %cst_133 = arith.constant dense<0.000000e+00> : vector<8x96xf32>
    %398 = tpu.matmul %397, %5, %cst_133 {dimension_numbers = #tpu.dot_dimension_numbers<[1], [0], [0], [1], [0, 0, 1, 1], [], []>} : vector<8x32xf32>, vector<32x96xf32>, vector<8x96xf32> -> vector<8x96xf32>
    %399 = vector.broadcast %6 : vector<1x96xf32> to vector<8x96xf32>
    %400 = arith.addf %398, %399 : vector<8x96xf32>
    %cst_134 = arith.constant dense<0.000000e+00> : vector<8x96xf32>
    %401 = tpu.matmul %334, %7, %cst_134 {dimension_numbers = #tpu.dot_dimension_numbers<[1], [0], [0], [1], [0, 0, 1, 1], [], []>} : vector<8x32xf32>, vector<32x96xf32>, vector<8x96xf32> -> vector<8x96xf32>
    %402 = vector.broadcast %8 : vector<1x96xf32> to vector<8x96xf32>
    %403 = arith.addf %401, %402 : vector<8x96xf32>
    %404 = vector.extract_strided_slice %400 {offsets = [0, 0], sizes = [8, 32], strides = [1, 1]} : vector<8x96xf32> to vector<8x32xf32>
    %405 = vector.extract_strided_slice %403 {offsets = [0, 0], sizes = [8, 32], strides = [1, 1]} : vector<8x96xf32> to vector<8x32xf32>
    %406 = arith.addf %404, %405 : vector<8x32xf32>
    %407 = arith.negf %406 : vector<8x32xf32>
    %408 = math.exp %407 : vector<8x32xf32>
    %cst_135 = arith.constant 1.000000e+00 : f32
    %409 = vector.broadcast %cst_135 : f32 to vector<8x32xf32>
    %410 = arith.addf %409, %408 : vector<8x32xf32>
    %411 = arith.divf %409, %410 : vector<8x32xf32>
    %412 = vector.extract_strided_slice %400 {offsets = [0, 32], sizes = [8, 32], strides = [1, 1]} : vector<8x96xf32> to vector<8x32xf32>
    %413 = vector.extract_strided_slice %403 {offsets = [0, 32], sizes = [8, 32], strides = [1, 1]} : vector<8x96xf32> to vector<8x32xf32>
    %414 = arith.addf %412, %413 : vector<8x32xf32>
    %415 = arith.negf %414 : vector<8x32xf32>
    %416 = math.exp %415 : vector<8x32xf32>
    %cst_136 = arith.constant 1.000000e+00 : f32
    %417 = vector.broadcast %cst_136 : f32 to vector<8x32xf32>
    %418 = arith.addf %417, %416 : vector<8x32xf32>
    %419 = arith.divf %417, %418 : vector<8x32xf32>
    %420 = vector.extract_strided_slice %400 {offsets = [0, 64], sizes = [8, 32], strides = [1, 1]} : vector<8x96xf32> to vector<8x32xf32>
    %421 = vector.extract_strided_slice %403 {offsets = [0, 64], sizes = [8, 32], strides = [1, 1]} : vector<8x96xf32> to vector<8x32xf32>
    %422 = arith.mulf %411, %421 : vector<8x32xf32>
    %423 = arith.addf %420, %422 : vector<8x32xf32>
    %424 = math.tanh %423 : vector<8x32xf32>
    %cst_137 = arith.constant 1.000000e+00 : f32
    %425 = vector.broadcast %cst_137 : f32 to vector<8x32xf32>
    %426 = arith.subf %425, %419 : vector<8x32xf32>
    %427 = arith.mulf %426, %424 : vector<8x32xf32>
    %428 = arith.mulf %419, %334 : vector<8x32xf32>
    %429 = arith.addf %427, %428 : vector<8x32xf32>
    %cst_138 = arith.constant dense<0.000000e+00> : vector<8x64xf32>
    %430 = tpu.matmul %429, %9, %cst_138 {dimension_numbers = #tpu.dot_dimension_numbers<[1], [0], [0], [1], [0, 0, 1, 1], [], []>} : vector<8x32xf32>, vector<32x64xf32>, vector<8x64xf32> -> vector<8x64xf32>
    %c4 = arith.constant 4 : index
    %c0_139 = arith.constant 0 : index
    %c0_140 = arith.constant 0 : index
    %431 = vector.load %arg2[%c4, %c0_139, %c0_140] : memref<7x8x64xf32, #tpu.memory_space<vmem>>, vector<1x8x64xf32>
    %432 = vector.shape_cast %431 : vector<1x8x64xf32> to vector<8x64xf32>
    %433 = arith.addf %430, %432 : vector<8x64xf32>
    %cst_141 = arith.constant 0.000000e+00 : f32
    %434 = vector.broadcast %cst_141 : f32 to vector<8x64xf32>
    %435 = arith.maximumf %433, %434 : vector<8x64xf32>
    %cst_142 = arith.constant dense<0.000000e+00> : vector<8x64xf32>
    %436 = tpu.matmul %435, %10, %cst_142 {dimension_numbers = #tpu.dot_dimension_numbers<[1], [0], [0], [1], [0, 0, 1, 1], [], []>} : vector<8x64xf32>, vector<64x64xf32>, vector<8x64xf32> -> vector<8x64xf32>
    %437 = vector.broadcast %11 : vector<1x64xf32> to vector<8x64xf32>
    %438 = arith.addf %436, %437 : vector<8x64xf32>
    %439 = vector.extract_strided_slice %438 {offsets = [0, 0], sizes = [8, 16], strides = [1, 1]} : vector<8x64xf32> to vector<8x16xf32>
    %440 = vector.extract_strided_slice %438 {offsets = [0, 16], sizes = [8, 16], strides = [1, 1]} : vector<8x64xf32> to vector<8x16xf32>
    %cst_143 = arith.constant 0.000000e+00 : f32
    %441 = vector.broadcast %cst_143 : f32 to vector<8x16xf32>
    %442 = arith.maximumf %440, %441 : vector<8x16xf32>
    %443 = vector.broadcast %cst_143 : f32 to vector<8x16xf32>
    %444 = arith.subf %440, %443 : vector<8x16xf32>
    %445 = arith.cmpf one, %444, %444 : vector<8x16xf32>
    %446 = vector.broadcast %cst_143 : f32 to vector<8x16xf32>
    %447 = arith.addf %440, %446 : vector<8x16xf32>
    %448 = math.absf %444 : vector<8x16xf32>
    %cst_144 = arith.constant 0.000000e+00 : f32
    %449 = vector.broadcast %cst_144 : f32 to vector<8x16xf32>
    %450 = arith.subf %449, %448 : vector<8x16xf32>
    %451 = math.exp %450 : vector<8x16xf32>
    %452 = math.log1p %451 : vector<8x16xf32>
    %453 = arith.addf %442, %452 : vector<8x16xf32>
    %454 = arith.select %445, %447, %453 : vector<8x16xi1>, vector<8x16xf32>
    %cst_145 = arith.constant 1.000000e-01 : f32
    %455 = vector.broadcast %cst_145 : f32 to vector<8x16xf32>
    %456 = arith.addf %454, %455 : vector<8x16xf32>
    %c4_146 = arith.constant 4 : index
    %c0_147 = arith.constant 0 : index
    %c0_148 = arith.constant 0 : index
    %457 = vector.load %arg3[%c4_146, %c0_147, %c0_148] : memref<7x8x16xf32, #tpu.memory_space<vmem>>, vector<1x8x16xf32>
    %458 = vector.shape_cast %457 : vector<1x8x16xf32> to vector<8x16xf32>
    %459 = arith.mulf %456, %458 : vector<8x16xf32>
    %460 = arith.addf %439, %459 : vector<8x16xf32>
    %461 = vector.extract_strided_slice %438 {offsets = [0, 32], sizes = [8, 16], strides = [1, 1]} : vector<8x64xf32> to vector<8x16xf32>
    %462 = vector.extract_strided_slice %438 {offsets = [0, 48], sizes = [8, 16], strides = [1, 1]} : vector<8x64xf32> to vector<8x16xf32>
    %cst_149 = arith.constant 0.000000e+00 : f32
    %463 = vector.broadcast %cst_149 : f32 to vector<8x16xf32>
    %464 = arith.maximumf %462, %463 : vector<8x16xf32>
    %465 = vector.broadcast %cst_149 : f32 to vector<8x16xf32>
    %466 = arith.subf %462, %465 : vector<8x16xf32>
    %467 = arith.cmpf one, %466, %466 : vector<8x16xf32>
    %468 = vector.broadcast %cst_149 : f32 to vector<8x16xf32>
    %469 = arith.addf %462, %468 : vector<8x16xf32>
    %470 = math.absf %466 : vector<8x16xf32>
    %cst_150 = arith.constant 0.000000e+00 : f32
    %471 = vector.broadcast %cst_150 : f32 to vector<8x16xf32>
    %472 = arith.subf %471, %470 : vector<8x16xf32>
    %473 = math.exp %472 : vector<8x16xf32>
    %474 = math.log1p %473 : vector<8x16xf32>
    %475 = arith.addf %464, %474 : vector<8x16xf32>
    %476 = arith.select %467, %469, %475 : vector<8x16xi1>, vector<8x16xf32>
    %cst_151 = arith.constant 1.000000e-01 : f32
    %477 = vector.broadcast %cst_151 : f32 to vector<8x16xf32>
    %478 = arith.addf %476, %477 : vector<8x16xf32>
    %c4_152 = arith.constant 4 : index
    %c0_153 = arith.constant 0 : index
    %c0_154 = arith.constant 0 : index
    %479 = vector.load %arg4[%c4_152, %c0_153, %c0_154] : memref<7x8x16xf32, #tpu.memory_space<vmem>>, vector<1x8x16xf32>
    %480 = vector.shape_cast %479 : vector<1x8x16xf32> to vector<8x16xf32>
    %481 = arith.mulf %478, %480 : vector<8x16xf32>
    %482 = arith.addf %461, %481 : vector<8x16xf32>
    %483 = tpu.concatenate %429, %482, %461, %478, %460, %439, %456 in 1 : vector<8x32xf32>, vector<8x16xf32>, vector<8x16xf32>, vector<8x16xf32>, vector<8x16xf32>, vector<8x16xf32>, vector<8x16xf32> -> vector<8x128xf32>
    %c4_155 = arith.constant 4 : index
    %c0_156 = arith.constant 0 : index
    %c0_157 = arith.constant 0 : index
    %484 = vector.load %arg14[%c4_155, %c0_156, %c0_157] : memref<7x8x128xf32, #tpu.memory_space<vmem>>, vector<1x8x128xf32>
    %485 = vector.shape_cast %484 : vector<1x8x128xf32> to vector<8x128xf32>
    %486 = vector.shape_cast %483 : vector<8x128xf32> to vector<1x8x128xf32>
    tpu.vector_store %arg14[%c4_155, %c0_156, %c0_157], %486 {strides = array<i32>} : memref<7x8x128xf32, #tpu.memory_space<vmem>>, vector<1x8x128xf32>,
    %487 = tpu.concatenate %460, %482 in 1 : vector<8x16xf32>, vector<8x16xf32> -> vector<8x32xf32>
    %cst_158 = arith.constant dense<0.000000e+00> : vector<8x32xf32>
    %488 = tpu.matmul %487, %3, %cst_158 {dimension_numbers = #tpu.dot_dimension_numbers<[1], [0], [0], [1], [0, 0, 1, 1], [], []>} : vector<8x32xf32>, vector<32x32xf32>, vector<8x32xf32> -> vector<8x32xf32>
    %489 = vector.broadcast %4 : vector<1x32xf32> to vector<8x32xf32>
    %490 = arith.addf %488, %489 : vector<8x32xf32>
    %cst_159 = arith.constant 0.000000e+00 : f32
    %491 = vector.broadcast %cst_159 : f32 to vector<8x32xf32>
    %492 = arith.maximumf %490, %491 : vector<8x32xf32>
    %cst_160 = arith.constant dense<0.000000e+00> : vector<8x96xf32>
    %493 = tpu.matmul %492, %5, %cst_160 {dimension_numbers = #tpu.dot_dimension_numbers<[1], [0], [0], [1], [0, 0, 1, 1], [], []>} : vector<8x32xf32>, vector<32x96xf32>, vector<8x96xf32> -> vector<8x96xf32>
    %494 = vector.broadcast %6 : vector<1x96xf32> to vector<8x96xf32>
    %495 = arith.addf %493, %494 : vector<8x96xf32>
    %cst_161 = arith.constant dense<0.000000e+00> : vector<8x96xf32>
    %496 = tpu.matmul %429, %7, %cst_161 {dimension_numbers = #tpu.dot_dimension_numbers<[1], [0], [0], [1], [0, 0, 1, 1], [], []>} : vector<8x32xf32>, vector<32x96xf32>, vector<8x96xf32> -> vector<8x96xf32>
    %497 = vector.broadcast %8 : vector<1x96xf32> to vector<8x96xf32>
    %498 = arith.addf %496, %497 : vector<8x96xf32>
    %499 = vector.extract_strided_slice %495 {offsets = [0, 0], sizes = [8, 32], strides = [1, 1]} : vector<8x96xf32> to vector<8x32xf32>
    %500 = vector.extract_strided_slice %498 {offsets = [0, 0], sizes = [8, 32], strides = [1, 1]} : vector<8x96xf32> to vector<8x32xf32>
    %501 = arith.addf %499, %500 : vector<8x32xf32>
    %502 = arith.negf %501 : vector<8x32xf32>
    %503 = math.exp %502 : vector<8x32xf32>
    %cst_162 = arith.constant 1.000000e+00 : f32
    %504 = vector.broadcast %cst_162 : f32 to vector<8x32xf32>
    %505 = arith.addf %504, %503 : vector<8x32xf32>
    %506 = arith.divf %504, %505 : vector<8x32xf32>
    %507 = vector.extract_strided_slice %495 {offsets = [0, 32], sizes = [8, 32], strides = [1, 1]} : vector<8x96xf32> to vector<8x32xf32>
    %508 = vector.extract_strided_slice %498 {offsets = [0, 32], sizes = [8, 32], strides = [1, 1]} : vector<8x96xf32> to vector<8x32xf32>
    %509 = arith.addf %507, %508 : vector<8x32xf32>
    %510 = arith.negf %509 : vector<8x32xf32>
    %511 = math.exp %510 : vector<8x32xf32>
    %cst_163 = arith.constant 1.000000e+00 : f32
    %512 = vector.broadcast %cst_163 : f32 to vector<8x32xf32>
    %513 = arith.addf %512, %511 : vector<8x32xf32>
    %514 = arith.divf %512, %513 : vector<8x32xf32>
    %515 = vector.extract_strided_slice %495 {offsets = [0, 64], sizes = [8, 32], strides = [1, 1]} : vector<8x96xf32> to vector<8x32xf32>
    %516 = vector.extract_strided_slice %498 {offsets = [0, 64], sizes = [8, 32], strides = [1, 1]} : vector<8x96xf32> to vector<8x32xf32>
    %517 = arith.mulf %506, %516 : vector<8x32xf32>
    %518 = arith.addf %515, %517 : vector<8x32xf32>
    %519 = math.tanh %518 : vector<8x32xf32>
    %cst_164 = arith.constant 1.000000e+00 : f32
    %520 = vector.broadcast %cst_164 : f32 to vector<8x32xf32>
    %521 = arith.subf %520, %514 : vector<8x32xf32>
    %522 = arith.mulf %521, %519 : vector<8x32xf32>
    %523 = arith.mulf %514, %429 : vector<8x32xf32>
    %524 = arith.addf %522, %523 : vector<8x32xf32>
    %cst_165 = arith.constant dense<0.000000e+00> : vector<8x64xf32>
    %525 = tpu.matmul %524, %9, %cst_165 {dimension_numbers = #tpu.dot_dimension_numbers<[1], [0], [0], [1], [0, 0, 1, 1], [], []>} : vector<8x32xf32>, vector<32x64xf32>, vector<8x64xf32> -> vector<8x64xf32>
    %c5 = arith.constant 5 : index
    %c0_166 = arith.constant 0 : index
    %c0_167 = arith.constant 0 : index
    %526 = vector.load %arg2[%c5, %c0_166, %c0_167] : memref<7x8x64xf32, #tpu.memory_space<vmem>>, vector<1x8x64xf32>
    %527 = vector.shape_cast %526 : vector<1x8x64xf32> to vector<8x64xf32>
    %528 = arith.addf %525, %527 : vector<8x64xf32>
    %cst_168 = arith.constant 0.000000e+00 : f32
    %529 = vector.broadcast %cst_168 : f32 to vector<8x64xf32>
    %530 = arith.maximumf %528, %529 : vector<8x64xf32>
    %cst_169 = arith.constant dense<0.000000e+00> : vector<8x64xf32>
    %531 = tpu.matmul %530, %10, %cst_169 {dimension_numbers = #tpu.dot_dimension_numbers<[1], [0], [0], [1], [0, 0, 1, 1], [], []>} : vector<8x64xf32>, vector<64x64xf32>, vector<8x64xf32> -> vector<8x64xf32>
    %532 = vector.broadcast %11 : vector<1x64xf32> to vector<8x64xf32>
    %533 = arith.addf %531, %532 : vector<8x64xf32>
    %534 = vector.extract_strided_slice %533 {offsets = [0, 0], sizes = [8, 16], strides = [1, 1]} : vector<8x64xf32> to vector<8x16xf32>
    %535 = vector.extract_strided_slice %533 {offsets = [0, 16], sizes = [8, 16], strides = [1, 1]} : vector<8x64xf32> to vector<8x16xf32>
    %cst_170 = arith.constant 0.000000e+00 : f32
    %536 = vector.broadcast %cst_170 : f32 to vector<8x16xf32>
    %537 = arith.maximumf %535, %536 : vector<8x16xf32>
    %538 = vector.broadcast %cst_170 : f32 to vector<8x16xf32>
    %539 = arith.subf %535, %538 : vector<8x16xf32>
    %540 = arith.cmpf one, %539, %539 : vector<8x16xf32>
    %541 = vector.broadcast %cst_170 : f32 to vector<8x16xf32>
    %542 = arith.addf %535, %541 : vector<8x16xf32>
    %543 = math.absf %539 : vector<8x16xf32>
    %cst_171 = arith.constant 0.000000e+00 : f32
    %544 = vector.broadcast %cst_171 : f32 to vector<8x16xf32>
    %545 = arith.subf %544, %543 : vector<8x16xf32>
    %546 = math.exp %545 : vector<8x16xf32>
    %547 = math.log1p %546 : vector<8x16xf32>
    %548 = arith.addf %537, %547 : vector<8x16xf32>
    %549 = arith.select %540, %542, %548 : vector<8x16xi1>, vector<8x16xf32>
    %cst_172 = arith.constant 1.000000e-01 : f32
    %550 = vector.broadcast %cst_172 : f32 to vector<8x16xf32>
    %551 = arith.addf %549, %550 : vector<8x16xf32>
    %c5_173 = arith.constant 5 : index
    %c0_174 = arith.constant 0 : index
    %c0_175 = arith.constant 0 : index
    %552 = vector.load %arg3[%c5_173, %c0_174, %c0_175] : memref<7x8x16xf32, #tpu.memory_space<vmem>>, vector<1x8x16xf32>
    %553 = vector.shape_cast %552 : vector<1x8x16xf32> to vector<8x16xf32>
    %554 = arith.mulf %551, %553 : vector<8x16xf32>
    %555 = arith.addf %534, %554 : vector<8x16xf32>
    %556 = vector.extract_strided_slice %533 {offsets = [0, 32], sizes = [8, 16], strides = [1, 1]} : vector<8x64xf32> to vector<8x16xf32>
    %557 = vector.extract_strided_slice %533 {offsets = [0, 48], sizes = [8, 16], strides = [1, 1]} : vector<8x64xf32> to vector<8x16xf32>
    %cst_176 = arith.constant 0.000000e+00 : f32
    %558 = vector.broadcast %cst_176 : f32 to vector<8x16xf32>
    %559 = arith.maximumf %557, %558 : vector<8x16xf32>
    %560 = vector.broadcast %cst_176 : f32 to vector<8x16xf32>
    %561 = arith.subf %557, %560 : vector<8x16xf32>
    %562 = arith.cmpf one, %561, %561 : vector<8x16xf32>
    %563 = vector.broadcast %cst_176 : f32 to vector<8x16xf32>
    %564 = arith.addf %557, %563 : vector<8x16xf32>
    %565 = math.absf %561 : vector<8x16xf32>
    %cst_177 = arith.constant 0.000000e+00 : f32
    %566 = vector.broadcast %cst_177 : f32 to vector<8x16xf32>
    %567 = arith.subf %566, %565 : vector<8x16xf32>
    %568 = math.exp %567 : vector<8x16xf32>
    %569 = math.log1p %568 : vector<8x16xf32>
    %570 = arith.addf %559, %569 : vector<8x16xf32>
    %571 = arith.select %562, %564, %570 : vector<8x16xi1>, vector<8x16xf32>
    %cst_178 = arith.constant 1.000000e-01 : f32
    %572 = vector.broadcast %cst_178 : f32 to vector<8x16xf32>
    %573 = arith.addf %571, %572 : vector<8x16xf32>
    %c5_179 = arith.constant 5 : index
    %c0_180 = arith.constant 0 : index
    %c0_181 = arith.constant 0 : index
    %574 = vector.load %arg4[%c5_179, %c0_180, %c0_181] : memref<7x8x16xf32, #tpu.memory_space<vmem>>, vector<1x8x16xf32>
    %575 = vector.shape_cast %574 : vector<1x8x16xf32> to vector<8x16xf32>
    %576 = arith.mulf %573, %575 : vector<8x16xf32>
    %577 = arith.addf %556, %576 : vector<8x16xf32>
    %578 = tpu.concatenate %524, %577, %556, %573, %555, %534, %551 in 1 : vector<8x32xf32>, vector<8x16xf32>, vector<8x16xf32>, vector<8x16xf32>, vector<8x16xf32>, vector<8x16xf32>, vector<8x16xf32> -> vector<8x128xf32>
    %c5_182 = arith.constant 5 : index
    %c0_183 = arith.constant 0 : index
    %c0_184 = arith.constant 0 : index
    %579 = vector.load %arg14[%c5_182, %c0_183, %c0_184] : memref<7x8x128xf32, #tpu.memory_space<vmem>>, vector<1x8x128xf32>
    %580 = vector.shape_cast %579 : vector<1x8x128xf32> to vector<8x128xf32>
    %581 = vector.shape_cast %578 : vector<8x128xf32> to vector<1x8x128xf32>
    tpu.vector_store %arg14[%c5_182, %c0_183, %c0_184], %581 {strides = array<i32>} : memref<7x8x128xf32, #tpu.memory_space<vmem>>, vector<1x8x128xf32>,
    %582 = tpu.concatenate %555, %577 in 1 : vector<8x16xf32>, vector<8x16xf32> -> vector<8x32xf32>
    %cst_185 = arith.constant dense<0.000000e+00> : vector<8x32xf32>
    %583 = tpu.matmul %582, %3, %cst_185 {dimension_numbers = #tpu.dot_dimension_numbers<[1], [0], [0], [1], [0, 0, 1, 1], [], []>} : vector<8x32xf32>, vector<32x32xf32>, vector<8x32xf32> -> vector<8x32xf32>
    %584 = vector.broadcast %4 : vector<1x32xf32> to vector<8x32xf32>
    %585 = arith.addf %583, %584 : vector<8x32xf32>
    %cst_186 = arith.constant 0.000000e+00 : f32
    %586 = vector.broadcast %cst_186 : f32 to vector<8x32xf32>
    %587 = arith.maximumf %585, %586 : vector<8x32xf32>
    %cst_187 = arith.constant dense<0.000000e+00> : vector<8x96xf32>
    %588 = tpu.matmul %587, %5, %cst_187 {dimension_numbers = #tpu.dot_dimension_numbers<[1], [0], [0], [1], [0, 0, 1, 1], [], []>} : vector<8x32xf32>, vector<32x96xf32>, vector<8x96xf32> -> vector<8x96xf32>
    %589 = vector.broadcast %6 : vector<1x96xf32> to vector<8x96xf32>
    %590 = arith.addf %588, %589 : vector<8x96xf32>
    %cst_188 = arith.constant dense<0.000000e+00> : vector<8x96xf32>
    %591 = tpu.matmul %524, %7, %cst_188 {dimension_numbers = #tpu.dot_dimension_numbers<[1], [0], [0], [1], [0, 0, 1, 1], [], []>} : vector<8x32xf32>, vector<32x96xf32>, vector<8x96xf32> -> vector<8x96xf32>
    %592 = vector.broadcast %8 : vector<1x96xf32> to vector<8x96xf32>
    %593 = arith.addf %591, %592 : vector<8x96xf32>
    %594 = vector.extract_strided_slice %590 {offsets = [0, 0], sizes = [8, 32], strides = [1, 1]} : vector<8x96xf32> to vector<8x32xf32>
    %595 = vector.extract_strided_slice %593 {offsets = [0, 0], sizes = [8, 32], strides = [1, 1]} : vector<8x96xf32> to vector<8x32xf32>
    %596 = arith.addf %594, %595 : vector<8x32xf32>
    %597 = arith.negf %596 : vector<8x32xf32>
    %598 = math.exp %597 : vector<8x32xf32>
    %cst_189 = arith.constant 1.000000e+00 : f32
    %599 = vector.broadcast %cst_189 : f32 to vector<8x32xf32>
    %600 = arith.addf %599, %598 : vector<8x32xf32>
    %601 = arith.divf %599, %600 : vector<8x32xf32>
    %602 = vector.extract_strided_slice %590 {offsets = [0, 32], sizes = [8, 32], strides = [1, 1]} : vector<8x96xf32> to vector<8x32xf32>
    %603 = vector.extract_strided_slice %593 {offsets = [0, 32], sizes = [8, 32], strides = [1, 1]} : vector<8x96xf32> to vector<8x32xf32>
    %604 = arith.addf %602, %603 : vector<8x32xf32>
    %605 = arith.negf %604 : vector<8x32xf32>
    %606 = math.exp %605 : vector<8x32xf32>
    %cst_190 = arith.constant 1.000000e+00 : f32
    %607 = vector.broadcast %cst_190 : f32 to vector<8x32xf32>
    %608 = arith.addf %607, %606 : vector<8x32xf32>
    %609 = arith.divf %607, %608 : vector<8x32xf32>
    %610 = vector.extract_strided_slice %590 {offsets = [0, 64], sizes = [8, 32], strides = [1, 1]} : vector<8x96xf32> to vector<8x32xf32>
    %611 = vector.extract_strided_slice %593 {offsets = [0, 64], sizes = [8, 32], strides = [1, 1]} : vector<8x96xf32> to vector<8x32xf32>
    %612 = arith.mulf %601, %611 : vector<8x32xf32>
    %613 = arith.addf %610, %612 : vector<8x32xf32>
    %614 = math.tanh %613 : vector<8x32xf32>
    %cst_191 = arith.constant 1.000000e+00 : f32
    %615 = vector.broadcast %cst_191 : f32 to vector<8x32xf32>
    %616 = arith.subf %615, %609 : vector<8x32xf32>
    %617 = arith.mulf %616, %614 : vector<8x32xf32>
    %618 = arith.mulf %609, %524 : vector<8x32xf32>
    %619 = arith.addf %617, %618 : vector<8x32xf32>
    %cst_192 = arith.constant dense<0.000000e+00> : vector<8x64xf32>
    %620 = tpu.matmul %619, %9, %cst_192 {dimension_numbers = #tpu.dot_dimension_numbers<[1], [0], [0], [1], [0, 0, 1, 1], [], []>} : vector<8x32xf32>, vector<32x64xf32>, vector<8x64xf32> -> vector<8x64xf32>
    %c6 = arith.constant 6 : index
    %c0_193 = arith.constant 0 : index
    %c0_194 = arith.constant 0 : index
    %621 = vector.load %arg2[%c6, %c0_193, %c0_194] : memref<7x8x64xf32, #tpu.memory_space<vmem>>, vector<1x8x64xf32>
    %622 = vector.shape_cast %621 : vector<1x8x64xf32> to vector<8x64xf32>
    %623 = arith.addf %620, %622 : vector<8x64xf32>
    %cst_195 = arith.constant 0.000000e+00 : f32
    %624 = vector.broadcast %cst_195 : f32 to vector<8x64xf32>
    %625 = arith.maximumf %623, %624 : vector<8x64xf32>
    %cst_196 = arith.constant dense<0.000000e+00> : vector<8x64xf32>
    %626 = tpu.matmul %625, %10, %cst_196 {dimension_numbers = #tpu.dot_dimension_numbers<[1], [0], [0], [1], [0, 0, 1, 1], [], []>} : vector<8x64xf32>, vector<64x64xf32>, vector<8x64xf32> -> vector<8x64xf32>
    %627 = vector.broadcast %11 : vector<1x64xf32> to vector<8x64xf32>
    %628 = arith.addf %626, %627 : vector<8x64xf32>
    %629 = vector.extract_strided_slice %628 {offsets = [0, 0], sizes = [8, 16], strides = [1, 1]} : vector<8x64xf32> to vector<8x16xf32>
    %630 = vector.extract_strided_slice %628 {offsets = [0, 16], sizes = [8, 16], strides = [1, 1]} : vector<8x64xf32> to vector<8x16xf32>
    %cst_197 = arith.constant 0.000000e+00 : f32
    %631 = vector.broadcast %cst_197 : f32 to vector<8x16xf32>
    %632 = arith.maximumf %630, %631 : vector<8x16xf32>
    %633 = vector.broadcast %cst_197 : f32 to vector<8x16xf32>
    %634 = arith.subf %630, %633 : vector<8x16xf32>
    %635 = arith.cmpf one, %634, %634 : vector<8x16xf32>
    %636 = vector.broadcast %cst_197 : f32 to vector<8x16xf32>
    %637 = arith.addf %630, %636 : vector<8x16xf32>
    %638 = math.absf %634 : vector<8x16xf32>
    %cst_198 = arith.constant 0.000000e+00 : f32
    %639 = vector.broadcast %cst_198 : f32 to vector<8x16xf32>
    %640 = arith.subf %639, %638 : vector<8x16xf32>
    %641 = math.exp %640 : vector<8x16xf32>
    %642 = math.log1p %641 : vector<8x16xf32>
    %643 = arith.addf %632, %642 : vector<8x16xf32>
    %644 = arith.select %635, %637, %643 : vector<8x16xi1>, vector<8x16xf32>
    %cst_199 = arith.constant 1.000000e-01 : f32
    %645 = vector.broadcast %cst_199 : f32 to vector<8x16xf32>
    %646 = arith.addf %644, %645 : vector<8x16xf32>
    %c6_200 = arith.constant 6 : index
    %c0_201 = arith.constant 0 : index
    %c0_202 = arith.constant 0 : index
    %647 = vector.load %arg3[%c6_200, %c0_201, %c0_202] : memref<7x8x16xf32, #tpu.memory_space<vmem>>, vector<1x8x16xf32>
    %648 = vector.shape_cast %647 : vector<1x8x16xf32> to vector<8x16xf32>
    %649 = arith.mulf %646, %648 : vector<8x16xf32>
    %650 = arith.addf %629, %649 : vector<8x16xf32>
    %651 = vector.extract_strided_slice %628 {offsets = [0, 32], sizes = [8, 16], strides = [1, 1]} : vector<8x64xf32> to vector<8x16xf32>
    %652 = vector.extract_strided_slice %628 {offsets = [0, 48], sizes = [8, 16], strides = [1, 1]} : vector<8x64xf32> to vector<8x16xf32>
    %cst_203 = arith.constant 0.000000e+00 : f32
    %653 = vector.broadcast %cst_203 : f32 to vector<8x16xf32>
    %654 = arith.maximumf %652, %653 : vector<8x16xf32>
    %655 = vector.broadcast %cst_203 : f32 to vector<8x16xf32>
    %656 = arith.subf %652, %655 : vector<8x16xf32>
    %657 = arith.cmpf one, %656, %656 : vector<8x16xf32>
    %658 = vector.broadcast %cst_203 : f32 to vector<8x16xf32>
    %659 = arith.addf %652, %658 : vector<8x16xf32>
    %660 = math.absf %656 : vector<8x16xf32>
    %cst_204 = arith.constant 0.000000e+00 : f32
    %661 = vector.broadcast %cst_204 : f32 to vector<8x16xf32>
    %662 = arith.subf %661, %660 : vector<8x16xf32>
    %663 = math.exp %662 : vector<8x16xf32>
    %664 = math.log1p %663 : vector<8x16xf32>
    %665 = arith.addf %654, %664 : vector<8x16xf32>
    %666 = arith.select %657, %659, %665 : vector<8x16xi1>, vector<8x16xf32>
    %cst_205 = arith.constant 1.000000e-01 : f32
    %667 = vector.broadcast %cst_205 : f32 to vector<8x16xf32>
    %668 = arith.addf %666, %667 : vector<8x16xf32>
    %c6_206 = arith.constant 6 : index
    %c0_207 = arith.constant 0 : index
    %c0_208 = arith.constant 0 : index
    %669 = vector.load %arg4[%c6_206, %c0_207, %c0_208] : memref<7x8x16xf32, #tpu.memory_space<vmem>>, vector<1x8x16xf32>
    %670 = vector.shape_cast %669 : vector<1x8x16xf32> to vector<8x16xf32>
    %671 = arith.mulf %668, %670 : vector<8x16xf32>
    %672 = arith.addf %651, %671 : vector<8x16xf32>
    %673 = tpu.concatenate %619, %672, %651, %668, %650, %629, %646 in 1 : vector<8x32xf32>, vector<8x16xf32>, vector<8x16xf32>, vector<8x16xf32>, vector<8x16xf32>, vector<8x16xf32>, vector<8x16xf32> -> vector<8x128xf32>
    %c6_209 = arith.constant 6 : index
    %c0_210 = arith.constant 0 : index
    %c0_211 = arith.constant 0 : index
    %674 = vector.load %arg14[%c6_209, %c0_210, %c0_211] : memref<7x8x128xf32, #tpu.memory_space<vmem>>, vector<1x8x128xf32>
    %675 = vector.shape_cast %674 : vector<1x8x128xf32> to vector<8x128xf32>
    %676 = vector.shape_cast %673 : vector<8x128xf32> to vector<1x8x128xf32>
    tpu.vector_store %arg14[%c6_209, %c0_210, %c0_211], %676 {strides = array<i32>} : memref<7x8x128xf32, #tpu.memory_space<vmem>>, vector<1x8x128xf32>,
    return
  }
}

</mosaic_0001>

<llo_original>
// kernel: single_hidden_transition.1
$region0: #{single_hidden_transition.1}
  #allocation0 [shape = 'u32[]', space=smem, size = 0x4, offset = 0x4, fixed_abs, tag = 'smem constant byte address 0x4 - core index']
  #allocation1 [shape = 'u32[144,128]{1,0:T(1,128)}', space=vmem, size = 0x12000, scoped, tag = 'internal scratch']
  %s0 = inlined_call_operand.vmem [shape: f32[8,16], index: 0, kind: input, shape index: {}]
  %s1 = inlined_call_operand.vmem [shape: f32[8,32], index: 1, kind: input, shape index: {}]
  %s2 = inlined_call_operand.vmem [shape: f32[7,8,64], index: 2, kind: input, shape index: {}]
  %s3 = inlined_call_operand.vmem [shape: f32[7,8,16], index: 3, kind: input, shape index: {}]
  %s4 = inlined_call_operand.vmem [shape: f32[7,8,16], index: 4, kind: input, shape index: {}]
  %s5 = inlined_call_operand.vmem [shape: f32[32,32], index: 5, kind: input, shape index: {}]
  %s6 = inlined_call_operand.vmem [shape: f32[1,32], index: 6, kind: input, shape index: {}]
  %s7 = inlined_call_operand.vmem [shape: f32[32,96], index: 7, kind: input, shape index: {}]
  %s8 = inlined_call_operand.vmem [shape: f32[1,96], index: 8, kind: input, shape index: {}]
  %s9 = inlined_call_operand.vmem [shape: f32[32,96], index: 9, kind: input, shape index: {}]
  %s10 = inlined_call_operand.vmem [shape: f32[1,96], index: 10, kind: input, shape index: {}]
  %s11 = inlined_call_operand.vmem [shape: f32[32,64], index: 11, kind: input, shape index: {}]
  %s12 = inlined_call_operand.vmem [shape: f32[64,64], index: 12, kind: input, shape index: {}]
  %s13 = inlined_call_operand.vmem [shape: f32[1,64], index: 13, kind: input, shape index: {}]
  %s14 = inlined_call_operand.vmem [shape: f32[7,8,128], index: 14, kind: output, shape index: {}]
  %s15 = sld [smem:[#allocation0]]
  $region66: #{single_hidden_transition.1} parent=0
    _
  %s17 = ssub.s32 1, %s15
  %s18 = scalar_select 0, %s17, %s15
  // Predicated region
  $region2: #{single_hidden_transition.1} parent=0 // pred_check
    _
  $region3: #{single_hidden_transition.1} parent=0 // pred_check_branch
    %20 = sbr.rel (0) target = $region5
  $region4: #{single_hidden_transition.1} parent=0 // pred_region
    _
  $region5: #{single_hidden_transition.1} parent=0 // pred_fallthru
    _
  // Predicated region
  $region6: #{single_hidden_transition.1} parent=0 // pred_check
    _
  $region7: #{single_hidden_transition.1} parent=0 // pred_check_branch
    %22 = sbr.rel (0) target = $region9
  $region8: #{single_hidden_transition.1} parent=0 // pred_region
    _
  $region9: #{single_hidden_transition.1} parent=0 // pred_fallthru
    _
  // Predicated region
  $region10: #{single_hidden_transition.1} parent=0 // pred_check
    _
  $region11: #{single_hidden_transition.1} parent=0 // pred_check_branch
    %24 = sbr.rel (0) target = $region13
  $region12: #{single_hidden_transition.1} parent=0 // pred_region
    _
  $region13: #{single_hidden_transition.1} parent=0 // pred_fallthru
    _
  // Predicated region
  $region14: #{single_hidden_transition.1} parent=0 // pred_check
    _
  $region15: #{single_hidden_transition.1} parent=0 // pred_check_branch
    %26 = sbr.rel (0) target = $region17
  $region16: #{single_hidden_transition.1} parent=0 // pred_region
    _
  $region17: #{single_hidden_transition.1} parent=0 // pred_fallthru
    _
  // Predicated region
  $region18: #{single_hidden_transition.1} parent=0 // pred_check
    _
  $region19: #{single_hidden_transition.1} parent=0 // pred_check_branch
    %28 = sbr.rel (0) target = $region21
  $region20: #{single_hidden_transition.1} parent=0 // pred_region
    _
  $region21: #{single_hidden_transition.1} parent=0 // pred_fallthru
    _
  // Predicated region
  $region22: #{single_hidden_transition.1} parent=0 // pred_check
    _
  $region23: #{single_hidden_transition.1} parent=0 // pred_check_branch
    %30 = sbr.rel (0) target = $region25
  $region24: #{single_hidden_transition.1} parent=0 // pred_region
    _
  $region25: #{single_hidden_transition.1} parent=0 // pred_fallthru
    _
  // Predicated region
  $region26: #{single_hidden_transition.1} parent=0 // pred_check
    _
  $region27: #{single_hidden_transition.1} parent=0 // pred_check_branch
    %32 = sbr.rel (0) target = $region29
  $region28: #{single_hidden_transition.1} parent=0 // pred_region
    _
  $region29: #{single_hidden_transition.1} parent=0 // pred_fallthru
    _
  // Predicated region
  $region30: #{single_hidden_transition.1} parent=0 // pred_check
    _
  $region31: #{single_hidden_transition.1} parent=0 // pred_check_branch
    %34 = sbr.rel (0) target = $region33
  $region32: #{single_hidden_transition.1} parent=0 // pred_region
    _
  $region33: #{single_hidden_transition.1} parent=0 // pred_fallthru
    _
  // Predicated region
  $region34: #{single_hidden_transition.1} parent=0 // pred_check
    _
  $region35: #{single_hidden_transition.1} parent=0 // pred_check_branch
    %36 = sbr.rel (0) target = $region37
  $region36: #{single_hidden_transition.1} parent=0 // pred_region
    _
  $region37: #{single_hidden_transition.1} parent=0 // pred_fallthru
    _
  // Predicated region
  $region38: #{single_hidden_transition.1} parent=0 // pred_check
    _
  $region39: #{single_hidden_transition.1} parent=0 // pred_check_branch
    %38 = sbr.rel (0) target = $region41
  $region40: #{single_hidden_transition.1} parent=0 // pred_region
    _
  $region41: #{single_hidden_transition.1} parent=0 // pred_fallthru
    _
  // Predicated region
  $region42: #{single_hidden_transition.1} parent=0 // pred_check
    _
  $region43: #{single_hidden_transition.1} parent=0 // pred_check_branch
    %40 = sbr.rel (0) target = $region45
  $region44: #{single_hidden_transition.1} parent=0 // pred_region
    _
  $region45: #{single_hidden_transition.1} parent=0 // pred_fallthru
    _
  // Predicated region
  $region46: #{single_hidden_transition.1} parent=0 // pred_check
    _
  $region47: #{single_hidden_transition.1} parent=0 // pred_check_branch
    %42 = sbr.rel (0) target = $region49
  $region48: #{single_hidden_transition.1} parent=0 // pred_region
    _
  $region49: #{single_hidden_transition.1} parent=0 // pred_fallthru
    _
  // Predicated region
  $region50: #{single_hidden_transition.1} parent=0 // pred_check
    _
  $region51: #{single_hidden_transition.1} parent=0 // pred_check_branch
    %44 = sbr.rel (0) target = $region53
  $region52: #{single_hidden_transition.1} parent=0 // pred_region
    _
  $region53: #{single_hidden_transition.1} parent=0 // pred_fallthru
    _
  // Predicated region
  $region54: #{single_hidden_transition.1} parent=0 // pred_check
    _
  $region55: #{single_hidden_transition.1} parent=0 // pred_check_branch
    %46 = sbr.rel (0) target = $region57
  $region56: #{single_hidden_transition.1} parent=0 // pred_region
    _
  $region57: #{single_hidden_transition.1} parent=0 // pred_fallthru
    _
  %v47 = vld [vmem:[%s0] sm:$0xff]
  %v48 = vld [vmem:[%s1] sm:$0xff]
  %v49 = vld [vmem:[%s5] sm:$0xff]
  %v50 = vld [vmem:[%s5 + $0x8] sm:$0xff]
  %v51 = vld [vmem:[%s5 + $0x10] sm:$0xff]
  %v52 = vld [vmem:[%s5 + $0x18] sm:$0xff]
  %v53 = vld [vmem:[%s6] sm:$0x1]
  %v54 = vld [vmem:[%s7] sm:$0xff]
  %v55 = vld [vmem:[%s7 + $0x8] sm:$0xff]
  %v56 = vld [vmem:[%s7 + $0x10] sm:$0xff]
  %v57 = vld [vmem:[%s7 + $0x18] sm:$0xff]
  %v58 = vld [vmem:[%s8] sm:$0x1]
  %v59 = vld [vmem:[%s9] sm:$0xff]
  %v60 = vld [vmem:[%s9 + $0x8] sm:$0xff]
  %v61 = vld [vmem:[%s9 + $0x10] sm:$0xff]
  %v62 = vld [vmem:[%s9 + $0x18] sm:$0xff]
  %v63 = vld [vmem:[%s10] sm:$0x1]
  %v64 = vld [vmem:[%s11] sm:$0xff]
  %v65 = vld [vmem:[%s11 + $0x8] sm:$0xff]
  %v66 = vld [vmem:[%s11 + $0x10] sm:$0xff]
  %v67 = vld [vmem:[%s11 + $0x18] sm:$0xff]
  %v68 = vld [vmem:[%s12] sm:$0xff]
  %v69 = vld [vmem:[%s12 + $0x8] sm:$0xff]
  %v70 = vld [vmem:[%s12 + $0x10] sm:$0xff]
  %v71 = vld [vmem:[%s12 + $0x18] sm:$0xff]
  %v72 = vld [vmem:[%s12 + $0x20] sm:$0xff]
  %v73 = vld [vmem:[%s12 + $0x28] sm:$0xff]
  %v74 = vld [vmem:[%s12 + $0x30] sm:$0xff]
  %v75 = vld [vmem:[%s12 + $0x38] sm:$0xff]
  %v76 = vld [vmem:[%s13] sm:$0x1]
  %78 = vrot.lane.b32.xlu0 %v47, 16
  %v79 = vpop.permute.xlu0 %78
  %vm81 = vcmask 130048
  %v82 = vsel %vm81, %v47, %v79
  %v84 = vlaneseq
  %v85 = vshrl.u32 %v84, 7
  %v86 = vsub.s32 0, %v85
  %v87 = vrot.slane %v53, %v86
  %vm89 = vcmask 261120
  %v91 = vsel %vm89, %v82, 0
  %93 = vmatprep.subr.mxu0 0.0
  %94 = vmatpush1.msra.mxu0 0.0
  %95 = vmatprep.subr.mxu0 0.0
  %96 = vmatpush1.msra.mxu0 0.0
  %97 = vmatprep.subr.mxu0 0.0
  %98 = vmatpush1.msra.mxu0 0.0
  %99 = vmatprep.subr.mxu0 0.0
  %100 = vmatpush1.msra.mxu0 0.0
  %101 = vmatprep.subr.mxu0 0.0
  %102 = vmatpush1.msra.mxu0 0.0
  %103 = vmatprep.subr.mxu0 0.0
  %104 = vmatpush1.msra.mxu0 0.0
  %105 = vmatprep.subr.mxu0 0.0
  %106 = vmatpush1.msra.mxu0 0.0
  %107 = vmatprep.subr.mxu0 0.0
  %108 = vmatpush1.msra.mxu0 0.0
  %109 = vmatprep.subr.mxu0 0.0
  %110 = vmatpush1.msra.mxu0 0.0
  %111 = vmatprep.subr.mxu0 0.0
  %112 = vmatpush1.msra.mxu0 0.0
  %113 = vmatprep.subr.mxu0 0.0
  %114 = vmatpush1.msra.mxu0 0.0
  %115 = vmatprep.subr.mxu0 0.0
  %116 = vmatpush1.msra.mxu0 0.0
  %117 = vmatprep.subr.mxu0 0.0
  %118 = vmatpush1.msra.mxu0 %v52
  %119 = vmatprep.subr.mxu0 0.0
  %120 = vmatpush1.msra.mxu0 %v51
  %121 = vmatprep.subr.mxu0 0.0
  %122 = vmatpush1.msra.mxu0 %v50
  %123 = vmatprep.subr.mxu0 0.0
  %124 = vmatpush1.msra.mxu0 %v49
  %125 = vmatprep.subr.mxu0 0.0
  %126 = vmatpush2.msra.mxu0 0.0
  %127 = vmatprep.subr.mxu0 0.0
  %128 = vmatpush2.msra.mxu0 0.0
  %129 = vmatprep.subr.mxu0 0.0
  %130 = vmatpush2.msra.mxu0 0.0
  %131 = vmatprep.subr.mxu0 0.0
  %132 = vmatpush2.msra.mxu0 0.0
  %133 = vmatprep.subr.mxu0 0.0
  %134 = vmatpush2.msra.mxu0 0.0
  %135 = vmatprep.subr.mxu0 0.0
  %136 = vmatpush2.msra.mxu0 0.0
  %137 = vmatprep.subr.mxu0 0.0
  %138 = vmatpush2.msra.mxu0 0.0
  %139 = vmatprep.subr.mxu0 0.0
  %140 = vmatpush2.msra.mxu0 0.0
  %141 = vmatprep.subr.mxu0 0.0
  %142 = vmatpush2.msra.mxu0 0.0
  %143 = vmatprep.subr.mxu0 0.0
  %144 = vmatpush2.msra.mxu0 0.0
  %145 = vmatprep.subr.mxu0 0.0
  %146 = vmatpush2.msra.mxu0 0.0
  %147 = vmatprep.subr.mxu0 0.0
  %148 = vmatpush2.msra.mxu0 0.0
  %149 = vmatprep.subr.mxu0 0.0
  %150 = vmatpush2.msra.mxu0 0.0
  %151 = vmatprep.subr.mxu0 0.0
  %152 = vmatpush2.msra.mxu0 0.0
  %153 = vmatprep.subr.mxu0 0.0
  %154 = vmatpush2.msra.mxu0 0.0
  %155 = vmatprep.subr.mxu0 0.0
  %156 = vmatpush2.msra.mxu0 0.0
  %157 = vmatprep.mubr.f32.mxu0 0.0
  %158 = vmatmul.mubr.f32.gmra.mxu0 %v91
  %v159 = vpop.f32.mrf.mxu0
  %v160 = vadd.f32 %v87, %v159
  %v161 = vpop.f32.mrf.mxu0
  %162 = vdwg.mxu0
  %v163 = vmax.f32 %v160, 0.0
  %v165 = vlaneseq
  %v166 = vshrl.u32 %v165, 7
  %v167 = vsub.s32 0, %v166
  %v168 = vrot.slane %v58, %v167
  %v171 = vsel %vm89, %v163, 0
  %173 = vmatprep.subr.mxu0 0.0
  %174 = vmatpush1.msra.mxu0 0.0
  %175 = vmatprep.subr.mxu0 0.0
  %176 = vmatpush1.msra.mxu0 0.0
  %177 = vmatprep.subr.mxu0 0.0
  %178 = vmatpush1.msra.mxu0 0.0
  %179 = vmatprep.subr.mxu0 0.0
  %180 = vmatpush1.msra.mxu0 0.0
  %181 = vmatprep.subr.mxu0 0.0
  %182 = vmatpush1.msra.mxu0 0.0
  %183 = vmatprep.subr.mxu0 0.0
  %184 = vmatpush1.msra.mxu0 0.0
  %185 = vmatprep.subr.mxu0 0.0
  %186 = vmatpush1.msra.mxu0 0.0
  %187 = vmatprep.subr.mxu0 0.0
  %188 = vmatpush1.msra.mxu0 0.0
  %189 = vmatprep.subr.mxu0 0.0
  %190 = vmatpush1.msra.mxu0 0.0
  %191 = vmatprep.subr.mxu0 0.0
  %192 = vmatpush1.msra.mxu0 0.0
  %193 = vmatprep.subr.mxu0 0.0
  %194 = vmatpush1.msra.mxu0 0.0
  %195 = vmatprep.subr.mxu0 0.0
  %196 = vmatpush1.msra.mxu0 0.0
  %197 = vmatprep.subr.mxu0 0.0
  %198 = vmatpush1.msra.mxu0 %v57
  %199 = vmatprep.subr.mxu0 0.0
  %200 = vmatpush1.msra.mxu0 %v56
  %201 = vmatprep.subr.mxu0 0.0
  %202 = vmatpush1.msra.mxu0 %v55
  %203 = vmatprep.subr.mxu0 0.0
  %204 = vmatpush1.msra.mxu0 %v54
  %205 = vmatprep.subr.mxu0 0.0
  %206 = vmatpush2.msra.mxu0 0.0
  %207 = vmatprep.subr.mxu0 0.0
  %208 = vmatpush2.msra.mxu0 0.0
  %209 = vmatprep.subr.mxu0 0.0
  %210 = vmatpush2.msra.mxu0 0.0
  %211 = vmatprep.subr.mxu0 0.0
  %212 = vmatpush2.msra.mxu0 0.0
  %213 = vmatprep.subr.mxu0 0.0
  %214 = vmatpush2.msra.mxu0 0.0
  %215 = vmatprep.subr.mxu0 0.0
  %216 = vmatpush2.msra.mxu0 0.0
  %217 = vmatprep.subr.mxu0 0.0
  %218 = vmatpush2.msra.mxu0 0.0
  %219 = vmatprep.subr.mxu0 0.0
  %220 = vmatpush2.msra.mxu0 0.0
  %221 = vmatprep.subr.mxu0 0.0
  %222 = vmatpush2.msra.mxu0 0.0
  %223 = vmatprep.subr.mxu0 0.0
  %224 = vmatpush2.msra.mxu0 0.0
  %225 = vmatprep.subr.mxu0 0.0
  %226 = vmatpush2.msra.mxu0 0.0
  %227 = vmatprep.subr.mxu0 0.0
  %228 = vmatpush2.msra.mxu0 0.0
  %229 = vmatprep.subr.mxu0 0.0
  %230 = vmatpush2.msra.mxu0 0.0
  %231 = vmatprep.subr.mxu0 0.0
  %232 = vmatpush2.msra.mxu0 0.0
  %233 = vmatprep.subr.mxu0 0.0
  %234 = vmatpush2.msra.mxu0 0.0
  %235 = vmatprep.subr.mxu0 0.0
  %236 = vmatpush2.msra.mxu0 0.0
  %237 = vmatprep.mubr.f32.mxu0 0.0
  %238 = vmatmul.mubr.f32.gmra.mxu0 %v171
  %v239 = vpop.f32.mrf.mxu0
  %v240 = vadd.f32 %v168, %v239
  %v241 = vpop.f32.mrf.mxu0
  %242 = vdwg.mxu0
  %v244 = vlaneseq
  %v245 = vshrl.u32 %v244, 7
  %v246 = vsub.s32 0, %v245
  %v247 = vrot.slane %v63, %v246
  %v250 = vsel %vm89, %v48, 0
  %252 = vmatprep.subr.mxu0 0.0
  %253 = vmatpush1.msra.mxu0 0.0
  %254 = vmatprep.subr.mxu0 0.0
  %255 = vmatpush1.msra.mxu0 0.0
  %256 = vmatprep.subr.mxu0 0.0
  %257 = vmatpush1.msra.mxu0 0.0
  %258 = vmatprep.subr.mxu0 0.0
  %259 = vmatpush1.msra.mxu0 0.0
  %260 = vmatprep.subr.mxu0 0.0
  %261 = vmatpush1.msra.mxu0 0.0
  %262 = vmatprep.subr.mxu0 0.0
  %263 = vmatpush1.msra.mxu0 0.0
  %264 = vmatprep.subr.mxu0 0.0
  %265 = vmatpush1.msra.mxu0 0.0
  %266 = vmatprep.subr.mxu0 0.0
  %267 = vmatpush1.msra.mxu0 0.0
  %268 = vmatprep.subr.mxu0 0.0
  %269 = vmatpush1.msra.mxu0 0.0
  %270 = vmatprep.subr.mxu0 0.0
  %271 = vmatpush1.msra.mxu0 0.0
  %272 = vmatprep.subr.mxu0 0.0
  %273 = vmatpush1.msra.mxu0 0.0
  %274 = vmatprep.subr.mxu0 0.0
  %275 = vmatpush1.msra.mxu0 0.0
  %276 = vmatprep.subr.mxu0 0.0
  %277 = vmatpush1.msra.mxu0 %v62
  %278 = vmatprep.subr.mxu0 0.0
  %279 = vmatpush1.msra.mxu0 %v61
  %280 = vmatprep.subr.mxu0 0.0
  %281 = vmatpush1.msra.mxu0 %v60
  %282 = vmatprep.subr.mxu0 0.0
  %283 = vmatpush1.msra.mxu0 %v59
  %284 = vmatprep.subr.mxu0 0.0
  %285 = vmatpush2.msra.mxu0 0.0
  %286 = vmatprep.subr.mxu0 0.0
  %287 = vmatpush2.msra.mxu0 0.0
  %288 = vmatprep.subr.mxu0 0.0
  %289 = vmatpush2.msra.mxu0 0.0
  %290 = vmatprep.subr.mxu0 0.0
  %291 = vmatpush2.msra.mxu0 0.0
  %292 = vmatprep.subr.mxu0 0.0
  %293 = vmatpush2.msra.mxu0 0.0
  %294 = vmatprep.subr.mxu0 0.0
  %295 = vmatpush2.msra.mxu0 0.0
  %296 = vmatprep.subr.mxu0 0.0
  %297 = vmatpush2.msra.mxu0 0.0
  %298 = vmatprep.subr.mxu0 0.0
  %299 = vmatpush2.msra.mxu0 0.0
  %300 = vmatprep.subr.mxu0 0.0
  %301 = vmatpush2.msra.mxu0 0.0
  %302 = vmatprep.subr.mxu0 0.0
  %303 = vmatpush2.msra.mxu0 0.0
  %304 = vmatprep.subr.mxu0 0.0
  %305 = vmatpush2.msra.mxu0 0.0
  %306 = vmatprep.subr.mxu0 0.0
  %307 = vmatpush2.msra.mxu0 0.0
  %308 = vmatprep.subr.mxu0 0.0
  %309 = vmatpush2.msra.mxu0 0.0
  %310 = vmatprep.subr.mxu0 0.0
  %311 = vmatpush2.msra.mxu0 0.0
  %312 = vmatprep.subr.mxu0 0.0
  %313 = vmatpush2.msra.mxu0 0.0
  %314 = vmatprep.subr.mxu0 0.0
  %315 = vmatpush2.msra.mxu0 0.0
  %316 = vmatprep.mubr.f32.mxu0 0.0
  %317 = vmatmul.mubr.f32.gmra.mxu0 %v250
  %v318 = vpop.f32.mrf.mxu0
  %v319 = vadd.f32 %v247, %v318
  %v320 = vpop.f32.mrf.mxu0
  %321 = vdwg.mxu0
  %v322 = vadd.f32 %v240, %v319
  %v323 = vxor.u32 %v322, 2147483648
  %v324 = vmul.f32 %v323, 1.442695
  %v325 = vpow.pop %v324
  %v326 = vadd.f32 %v325, 1.0
  %v327 = vrcp.pop %v326
  %v328 = vmul.f32 1.0, %v327
  %330 = vrot.lane.b32.xlu0 %v319, 64
  %v331 = vpop.permute.xlu0 %330
  %v333 = vmul.f32 %v328, %v331
  %335 = vrot.lane.b32.xlu0 %v333, 64
  %v336 = vpop.permute.xlu0 %335
  %v338 = vadd.f32 %v240, %v336
  %v339 = vtanh.pop %v338
  %v340 = vsub.f32 1.0, %v328
  %342 = vrot.lane.b32.xlu0 %v339, 96
  %v343 = vpop.permute.xlu0 %342
  %v345 = vmul.f32 %v340, %v343
  %346 = vrot.lane.b32.xlu0 %v48, 32
  %v347 = vpop.permute.xlu0 %346
  %v349 = vmul.f32 %v328, %v347
  %v350 = vadd.f32 %v345, %v349
  %v351 = vld [vmem:[%s2] sm:$0xff]
  %353 = vrot.lane.b32.xlu0 %v350, 96
  %v354 = vpop.permute.xlu0 %353
  %v355 = vsel %vm89, %v354, 0
  %357 = vmatprep.subr.mxu0 0.0
  %358 = vmatpush1.msra.mxu0 0.0
  %359 = vmatprep.subr.mxu0 0.0
  %360 = vmatpush1.msra.mxu0 0.0
  %361 = vmatprep.subr.mxu0 0.0
  %362 = vmatpush1.msra.mxu0 0.0
  %363 = vmatprep.subr.mxu0 0.0
  %364 = vmatpush1.msra.mxu0 0.0
  %365 = vmatprep.subr.mxu0 0.0
  %366 = vmatpush1.msra.mxu0 0.0
  %367 = vmatprep.subr.mxu0 0.0
  %368 = vmatpush1.msra.mxu0 0.0
  %369 = vmatprep.subr.mxu0 0.0
  %370 = vmatpush1.msra.mxu0 0.0
  %371 = vmatprep.subr.mxu0 0.0
  %372 = vmatpush1.msra.mxu0 0.0
  %373 = vmatprep.subr.mxu0 0.0
  %374 = vmatpush1.msra.mxu0 0.0
  %375 = vmatprep.subr.mxu0 0.0
  %376 = vmatpush1.msra.mxu0 0.0
  %377 = vmatprep.subr.mxu0 0.0
  %378 = vmatpush1.msra.mxu0 0.0
  %379 = vmatprep.subr.mxu0 0.0
  %380 = vmatpush1.msra.mxu0 0.0
  %381 = vmatprep.subr.mxu0 0.0
  %382 = vmatpush1.msra.mxu0 %v67
  %383 = vmatprep.subr.mxu0 0.0
  %384 = vmatpush1.msra.mxu0 %v66
  %385 = vmatprep.subr.mxu0 0.0
  %386 = vmatpush1.msra.mxu0 %v65
  %387 = vmatprep.subr.mxu0 0.0
  %388 = vmatpush1.msra.mxu0 %v64
  %389 = vmatprep.subr.mxu0 0.0
  %390 = vmatpush2.msra.mxu0 0.0
  %391 = vmatprep.subr.mxu0 0.0
  %392 = vmatpush2.msra.mxu0 0.0
  %393 = vmatprep.subr.mxu0 0.0
  %394 = vmatpush2.msra.mxu0 0.0
  %395 = vmatprep.subr.mxu0 0.0
  %396 = vmatpush2.msra.mxu0 0.0
  %397 = vmatprep.subr.mxu0 0.0
  %398 = vmatpush2.msra.mxu0 0.0
  %399 = vmatprep.subr.mxu0 0.0
  %400 = vmatpush2.msra.mxu0 0.0
  %401 = vmatprep.subr.mxu0 0.0
  %402 = vmatpush2.msra.mxu0 0.0
  %403 = vmatprep.subr.mxu0 0.0
  %404 = vmatpush2.msra.mxu0 0.0
  %405 = vmatprep.subr.mxu0 0.0
  %406 = vmatpush2.msra.mxu0 0.0
  %407 = vmatprep.subr.mxu0 0.0
  %408 = vmatpush2.msra.mxu0 0.0
  %409 = vmatprep.subr.mxu0 0.0
  %410 = vmatpush2.msra.mxu0 0.0
  %411 = vmatprep.subr.mxu0 0.0
  %412 = vmatpush2.msra.mxu0 0.0
  %413 = vmatprep.subr.mxu0 0.0
  %414 = vmatpush2.msra.mxu0 0.0
  %415 = vmatprep.subr.mxu0 0.0
  %416 = vmatpush2.msra.mxu0 0.0
  %417 = vmatprep.subr.mxu0 0.0
  %418 = vmatpush2.msra.mxu0 0.0
  %419 = vmatprep.subr.mxu0 0.0
  %420 = vmatpush2.msra.mxu0 0.0
  %421 = vmatprep.mubr.f32.mxu0 0.0
  %422 = vmatmul.mubr.f32.gmra.mxu0 %v355
  %v423 = vpop.f32.mrf.mxu0
  %v424 = vadd.f32 %v351, %v423
  %v425 = vpop.f32.mrf.mxu0
  %426 = vdwg.mxu0
  %v427 = vmax.f32 %v424, 0.0
  %v429 = vlaneseq
  %v430 = vshrl.u32 %v429, 7
  %v431 = vsub.s32 0, %v430
  %v432 = vrot.slane %v76, %v431
  %vm434 = vcmask 523264
  %v436 = vsel %vm434, %v427, 0
  %438 = vmatprep.subr.mxu0 0.0
  %439 = vmatpush1.msra.mxu0 0.0
  %440 = vmatprep.subr.mxu0 0.0
  %441 = vmatpush1.msra.mxu0 0.0
  %442 = vmatprep.subr.mxu0 0.0
  %443 = vmatpush1.msra.mxu0 0.0
  %444 = vmatprep.subr.mxu0 0.0
  %445 = vmatpush1.msra.mxu0 0.0
  %446 = vmatprep.subr.mxu0 0.0
  %447 = vmatpush1.msra.mxu0 0.0
  %448 = vmatprep.subr.mxu0 0.0
  %449 = vmatpush1.msra.mxu0 0.0
  %450 = vmatprep.subr.mxu0 0.0
  %451 = vmatpush1.msra.mxu0 0.0
  %452 = vmatprep.subr.mxu0 0.0
  %453 = vmatpush1.msra.mxu0 0.0
  %454 = vmatprep.subr.mxu0 0.0
  %455 = vmatpush1.msra.mxu0 %v75
  %456 = vmatprep.subr.mxu0 0.0
  %457 = vmatpush1.msra.mxu0 %v74
  %458 = vmatprep.subr.mxu0 0.0
  %459 = vmatpush1.msra.mxu0 %v73
  %460 = vmatprep.subr.mxu0 0.0
  %461 = vmatpush1.msra.mxu0 %v72
  %462 = vmatprep.subr.mxu0 0.0
  %463 = vmatpush1.msra.mxu0 %v71
  %464 = vmatprep.subr.mxu0 0.0
  %465 = vmatpush1.msra.mxu0 %v70
  %466 = vmatprep.subr.mxu0 0.0
  %467 = vmatpush1.msra.mxu0 %v69
  %468 = vmatprep.subr.mxu0 0.0
  %469 = vmatpush1.msra.mxu0 %v68
  %470 = vmatprep.subr.mxu0 0.0
  %471 = vmatpush2.msra.mxu0 0.0
  %472 = vmatprep.subr.mxu0 0.0
  %473 = vmatpush2.msra.mxu0 0.0
  %474 = vmatprep.subr.mxu0 0.0
  %475 = vmatpush2.msra.mxu0 0.0
  %476 = vmatprep.subr.mxu0 0.0
  %477 = vmatpush2.msra.mxu0 0.0
  %478 = vmatprep.subr.mxu0 0.0
  %479 = vmatpush2.msra.mxu0 0.0
  %480 = vmatprep.subr.mxu0 0.0
  %481 = vmatpush2.msra.mxu0 0.0
  %482 = vmatprep.subr.mxu0 0.0
  %483 = vmatpush2.msra.mxu0 0.0
  %484 = vmatprep.subr.mxu0 0.0
  %485 = vmatpush2.msra.mxu0 0.0
  %486 = vmatprep.subr.mxu0 0.0
  %487 = vmatpush2.msra.mxu0 0.0
  %488 = vmatprep.subr.mxu0 0.0
  %489 = vmatpush2.msra.mxu0 0.0
  %490 = vmatprep.subr.mxu0 0.0
  %491 = vmatpush2.msra.mxu0 0.0
  %492 = vmatprep.subr.mxu0 0.0
  %493 = vmatpush2.msra.mxu0 0.0
  %494 = vmatprep.subr.mxu0 0.0
  %495 = vmatpush2.msra.mxu0 0.0
  %496 = vmatprep.subr.mxu0 0.0
  %497 = vmatpush2.msra.mxu0 0.0
  %498 = vmatprep.subr.mxu0 0.0
  %499 = vmatpush2.msra.mxu0 0.0
  %500 = vmatprep.subr.mxu0 0.0
  %501 = vmatpush2.msra.mxu0 0.0
  %502 = vmatprep.mubr.f32.mxu0 0.0
  %503 = vmatmul.mubr.f32.gmra.mxu0 %v436
  %v504 = vpop.f32.mrf.mxu0
  %v505 = vadd.f32 %v432, %v504
  %v506 = vpop.f32.mrf.mxu0
  %507 = vdwg.mxu0
  %v508 = vmax.f32 %v505, 0.0
  %vm509 = vcmp.ne.f32.partialorder %v505, %v505
  %v510 = vadd.f32 %v505, 0.0
  %v511 = vand.u32 2147483647, %v505
  %v512 = vsub.f32 0.0, %v511
  %v513 = vmul.f32 %v512, 1.442695
  %v514 = vpow.pop %v513
  %v515 = vadd.f32 %v514, 1.0
  %v516 = vlog2.pop %v515
  %v517 = vmul.f32 %v516, 0.6931472
  %v518 = vmul.f32 -0.5, %v514
  %v519 = vadd.f32 %v518, 1.0
  %v520 = vmul.f32 %v519, %v514
  %v521 = vand.u32 2147483647, %v514
  %vm522 = vcmp.lt.f32.partialorder %v521, 0.0004427343
  %v523 = vsel %vm522, %v520, %v517
  %v524 = vadd.f32 %v508, %v523
  %v525 = vsel %vm509, %v510, %v524
  %v526 = vadd.f32 %v525, 0.1
  %v527 = vld [vmem:[%s3] sm:$0xff]
  %529 = vrot.lane.b32.xlu0 %v527, 16
  %v530 = vpop.permute.xlu0 %529
  %v532 = vmul.f32 %v526, %v530
  %534 = vrot.lane.b32.xlu0 %v532, 112
  %v535 = vpop.permute.xlu0 %534
  %v537 = vadd.f32 %v505, %v535
  %v538 = vld [vmem:[%s4] sm:$0xff]
  %540 = vrot.lane.b32.xlu0 %v538, 48
  %v541 = vpop.permute.xlu0 %540
  %v543 = vmul.f32 %v526, %v541
  %545 = vrot.lane.b32.xlu0 %v543, 112
  %v546 = vpop.permute.xlu0 %545
  %v548 = vadd.f32 %v505, %v546
  %551 = vrot.lane.b32.xlu0 %v505, 16
  %v552 = vpop.permute.xlu0 %551
  %555 = vrot.lane.b32.xlu0 %v526, 16
  %v556 = vpop.permute.xlu0 %555
  %559 = vrot.lane.b32.xlu0 %v537, 80
  %v560 = vpop.permute.xlu0 %559
  %562 = vrot.lane.b32.xlu0 %v505, 96
  %v563 = vpop.permute.xlu0 %562
  %565 = vrot.lane.b32.xlu0 %v526, 96
  %v566 = vpop.permute.xlu0 %565
  %v568 = vsel %vm89, %v354, %v548
  %vm569 = vcmask 392192
  %v570 = vsel %vm569, %v568, %v552
  %v571 = vsel %vm434, %v570, %v556
  %vm572 = vcmask 654336
  %v573 = vsel %vm572, %v571, %v560
  %vm574 = vcmask 785408
  %v575 = vsel %vm574, %v573, %v563
  %vm576 = vcmask 916480
  %v577 = vsel %vm576, %v575, %v566
  %578 = vst [vmem:[%s14] sm:$0xff] %v577
  %580 = vrot.lane.b32.xlu0 %v548, 112
  %v581 = vpop.permute.xlu0 %580
  %v583 = vsel %vm81, %v537, %v581
  %v585 = vsel %vm89, %v583, 0
  %587 = vmatprep.subr.mxu0 0.0
  %588 = vmatpush1.msra.mxu0 0.0
  %589 = vmatprep.subr.mxu0 0.0
  %590 = vmatpush1.msra.mxu0 0.0
  %591 = vmatprep.subr.mxu0 0.0
  %592 = vmatpush1.msra.mxu0 0.0
  %593 = vmatprep.subr.mxu0 0.0
  %594 = vmatpush1.msra.mxu0 0.0
  %595 = vmatprep.subr.mxu0 0.0
  %596 = vmatpush1.msra.mxu0 0.0
  %597 = vmatprep.subr.mxu0 0.0
  %598 = vmatpush1.msra.mxu0 0.0
  %599 = vmatprep.subr.mxu0 0.0
  %600 = vmatpush1.msra.mxu0 0.0
  %601 = vmatprep.subr.mxu0 0.0
  %602 = vmatpush1.msra.mxu0 0.0
  %603 = vmatprep.subr.mxu0 0.0
  %604 = vmatpush1.msra.mxu0 0.0
  %605 = vmatprep.subr.mxu0 0.0
  %606 = vmatpush1.msra.mxu0 0.0
  %607 = vmatprep.subr.mxu0 0.0
  %608 = vmatpush1.msra.mxu0 0.0
  %609 = vmatprep.subr.mxu0 0.0
  %610 = vmatpush1.msra.mxu0 0.0
  %611 = vmatprep.subr.mxu0 0.0
  %612 = vmatpush1.msra.mxu0 %v52
  %613 = vmatprep.subr.mxu0 0.0
  %614 = vmatpush1.msra.mxu0 %v51
  %615 = vmatprep.subr.mxu0 0.0
  %616 = vmatpush1.msra.mxu0 %v50
  %617 = vmatprep.subr.mxu0 0.0
  %618 = vmatpush1.msra.mxu0 %v49
  %619 = vmatprep.subr.mxu0 0.0
  %620 = vmatpush2.msra.mxu0 0.0
  %621 = vmatprep.subr.mxu0 0.0
  %622 = vmatpush2.msra.mxu0 0.0
  %623 = vmatprep.subr.mxu0 0.0
  %624 = vmatpush2.msra.mxu0 0.0
  %625 = vmatprep.subr.mxu0 0.0
  %626 = vmatpush2.msra.mxu0 0.0
  %627 = vmatprep.subr.mxu0 0.0
  %628 = vmatpush2.msra.mxu0 0.0
  %629 = vmatprep.subr.mxu0 0.0
  %630 = vmatpush2.msra.mxu0 0.0
  %631 = vmatprep.subr.mxu0 0.0
  %632 = vmatpush2.msra.mxu0 0.0
  %633 = vmatprep.subr.mxu0 0.0
  %634 = vmatpush2.msra.mxu0 0.0
  %635 = vmatprep.subr.mxu0 0.0
  %636 = vmatpush2.msra.mxu0 0.0
  %637 = vmatprep.subr.mxu0 0.0
  %638 = vmatpush2.msra.mxu0 0.0
  %639 = vmatprep.subr.mxu0 0.0
  %640 = vmatpush2.msra.mxu0 0.0
  %641 = vmatprep.subr.mxu0 0.0
  %642 = vmatpush2.msra.mxu0 0.0
  %643 = vmatprep.subr.mxu0 0.0
  %644 = vmatpush2.msra.mxu0 0.0
  %645 = vmatprep.subr.mxu0 0.0
  %646 = vmatpush2.msra.mxu0 0.0
  %647 = vmatprep.subr.mxu0 0.0
  %648 = vmatpush2.msra.mxu0 0.0
  %649 = vmatprep.subr.mxu0 0.0
  %650 = vmatpush2.msra.mxu0 0.0
  %651 = vmatprep.mubr.f32.mxu0 0.0
  %652 = vmatmul.mubr.f32.gmra.mxu0 %v585
  %v653 = vpop.f32.mrf.mxu0
  %v654 = vadd.f32 %v87, %v653
  %v655 = vpop.f32.mrf.mxu0
  %656 = vdwg.mxu0
  %v657 = vmax.f32 %v654, 0.0
  %v659 = vsel %vm89, %v657, 0
  %661 = vmatprep.subr.mxu0 0.0
  %662 = vmatpush1.msra.mxu0 0.0
  %663 = vmatprep.subr.mxu0 0.0
  %664 = vmatpush1.msra.mxu0 0.0
  %665 = vmatprep.subr.mxu0 0.0
  %666 = vmatpush1.msra.mxu0 0.0
  %667 = vmatprep.subr.mxu0 0.0
  %668 = vmatpush1.msra.mxu0 0.0
  %669 = vmatprep.subr.mxu0 0.0
  %670 = vmatpush1.msra.mxu0 0.0
  %671 = vmatprep.subr.mxu0 0.0
  %672 = vmatpush1.msra.mxu0 0.0
  %673 = vmatprep.subr.mxu0 0.0
  %674 = vmatpush1.msra.mxu0 0.0
  %675 = vmatprep.subr.mxu0 0.0
  %676 = vmatpush1.msra.mxu0 0.0
  %677 = vmatprep.subr.mxu0 0.0
  %678 = vmatpush1.msra.mxu0 0.0
  %679 = vmatprep.subr.mxu0 0.0
  %680 = vmatpush1.msra.mxu0 0.0
  %681 = vmatprep.subr.mxu0 0.0
  %682 = vmatpush1.msra.mxu0 0.0
  %683 = vmatprep.subr.mxu0 0.0
  %684 = vmatpush1.msra.mxu0 0.0
  %685 = vmatprep.subr.mxu0 0.0
  %686 = vmatpush1.msra.mxu0 %v57
  %687 = vmatprep.subr.mxu0 0.0
  %688 = vmatpush1.msra.mxu0 %v56
  %689 = vmatprep.subr.mxu0 0.0
  %690 = vmatpush1.msra.mxu0 %v55
  %691 = vmatprep.subr.mxu0 0.0
  %692 = vmatpush1.msra.mxu0 %v54
  %693 = vmatprep.subr.mxu0 0.0
  %694 = vmatpush2.msra.mxu0 0.0
  %695 = vmatprep.subr.mxu0 0.0
  %696 = vmatpush2.msra.mxu0 0.0
  %697 = vmatprep.subr.mxu0 0.0
  %698 = vmatpush2.msra.mxu0 0.0
  %699 = vmatprep.subr.mxu0 0.0
  %700 = vmatpush2.msra.mxu0 0.0
  %701 = vmatprep.subr.mxu0 0.0
  %702 = vmatpush2.msra.mxu0 0.0
  %703 = vmatprep.subr.mxu0 0.0
  %704 = vmatpush2.msra.mxu0 0.0
  %705 = vmatprep.subr.mxu0 0.0
  %706 = vmatpush2.msra.mxu0 0.0
  %707 = vmatprep.subr.mxu0 0.0
  %708 = vmatpush2.msra.mxu0 0.0
  %709 = vmatprep.subr.mxu0 0.0
  %710 = vmatpush2.msra.mxu0 0.0
  %711 = vmatprep.subr.mxu0 0.0
  %712 = vmatpush2.msra.mxu0 0.0
  %713 = vmatprep.subr.mxu0 0.0
  %714 = vmatpush2.msra.mxu0 0.0
  %715 = vmatprep.subr.mxu0 0.0
  %716 = vmatpush2.msra.mxu0 0.0
  %717 = vmatprep.subr.mxu0 0.0
  %718 = vmatpush2.msra.mxu0 0.0
  %719 = vmatprep.subr.mxu0 0.0
  %720 = vmatpush2.msra.mxu0 0.0
  %721 = vmatprep.subr.mxu0 0.0
  %722 = vmatpush2.msra.mxu0 0.0
  %723 = vmatprep.subr.mxu0 0.0
  %724 = vmatpush2.msra.mxu0 0.0
  %725 = vmatprep.mubr.f32.mxu0 0.0
  %726 = vmatmul.mubr.f32.gmra.mxu0 %v659
  %v727 = vpop.f32.mrf.mxu0
  %v728 = vadd.f32 %v168, %v727
  %v729 = vpop.f32.mrf.mxu0
  %730 = vdwg.mxu0
  %731 = vmatprep.subr.mxu0 0.0
  %732 = vmatpush1.msra.mxu0 0.0
  %733 = vmatprep.subr.mxu0 0.0
  %734 = vmatpush1.msra.mxu0 0.0
  %735 = vmatprep.subr.mxu0 0.0
  %736 = vmatpush1.msra.mxu0 0.0
  %737 = vmatprep.subr.mxu0 0.0
  %738 = vmatpush1.msra.mxu0 0.0
  %739 = vmatprep.subr.mxu0 0.0
  %740 = vmatpush1.msra.mxu0 0.0
  %741 = vmatprep.subr.mxu0 0.0
  %742 = vmatpush1.msra.mxu0 0.0
  %743 = vmatprep.subr.mxu0 0.0
  %744 = vmatpush1.msra.mxu0 0.0
  %745 = vmatprep.subr.mxu0 0.0
  %746 = vmatpush1.msra.mxu0 0.0
  %747 = vmatprep.subr.mxu0 0.0
  %748 = vmatpush1.msra.mxu0 0.0
  %749 = vmatprep.subr.mxu0 0.0
  %750 = vmatpush1.msra.mxu0 0.0
  %751 = vmatprep.subr.mxu0 0.0
  %752 = vmatpush1.msra.mxu0 0.0
  %753 = vmatprep.subr.mxu0 0.0
  %754 = vmatpush1.msra.mxu0 0.0
  %755 = vmatprep.subr.mxu0 0.0
  %756 = vmatpush1.msra.mxu0 %v62
  %757 = vmatprep.subr.mxu0 0.0
  %758 = vmatpush1.msra.mxu0 %v61
  %759 = vmatprep.subr.mxu0 0.0
  %760 = vmatpush1.msra.mxu0 %v60
  %761 = vmatprep.subr.mxu0 0.0
  %762 = vmatpush1.msra.mxu0 %v59
  %763 = vmatprep.subr.mxu0 0.0
  %764 = vmatpush2.msra.mxu0 0.0
  %765 = vmatprep.subr.mxu0 0.0
  %766 = vmatpush2.msra.mxu0 0.0
  %767 = vmatprep.subr.mxu0 0.0
  %768 = vmatpush2.msra.mxu0 0.0
  %769 = vmatprep.subr.mxu0 0.0
  %770 = vmatpush2.msra.mxu0 0.0
  %771 = vmatprep.subr.mxu0 0.0
  %772 = vmatpush2.msra.mxu0 0.0
  %773 = vmatprep.subr.mxu0 0.0
  %774 = vmatpush2.msra.mxu0 0.0
  %775 = vmatprep.subr.mxu0 0.0
  %776 = vmatpush2.msra.mxu0 0.0
  %777 = vmatprep.subr.mxu0 0.0
  %778 = vmatpush2.msra.mxu0 0.0
  %779 = vmatprep.subr.mxu0 0.0
  %780 = vmatpush2.msra.mxu0 0.0
  %781 = vmatprep.subr.mxu0 0.0
  %782 = vmatpush2.msra.mxu0 0.0
  %783 = vmatprep.subr.mxu0 0.0
  %784 = vmatpush2.msra.mxu0 0.0
  %785 = vmatprep.subr.mxu0 0.0
  %786 = vmatpush2.msra.mxu0 0.0
  %787 = vmatprep.subr.mxu0 0.0
  %788 = vmatpush2.msra.mxu0 0.0
  %789 = vmatprep.subr.mxu0 0.0
  %790 = vmatpush2.msra.mxu0 0.0
  %791 = vmatprep.subr.mxu0 0.0
  %792 = vmatpush2.msra.mxu0 0.0
  %793 = vmatprep.subr.mxu0 0.0
  %794 = vmatpush2.msra.mxu0 0.0
  %795 = vmatprep.mubr.f32.mxu0 0.0
  %796 = vmatmul.mubr.f32.gmra.mxu0 %v355
  %v797 = vpop.f32.mrf.mxu0
  %v798 = vadd.f32 %v247, %v797
  %v799 = vpop.f32.mrf.mxu0
  %800 = vdwg.mxu0
  %v801 = vadd.f32 %v728, %v798
  %v802 = vxor.u32 %v801, 2147483648
  %v803 = vmul.f32 %v802, 1.442695
  %v804 = vpow.pop %v803
  %v805 = vadd.f32 %v804, 1.0
  %v806 = vrcp.pop %v805
  %v807 = vmul.f32 1.0, %v806
  %809 = vrot.lane.b32.xlu0 %v798, 64
  %v810 = vpop.permute.xlu0 %809
  %v812 = vmul.f32 %v807, %v810
  %814 = vrot.lane.b32.xlu0 %v812, 64
  %v815 = vpop.permute.xlu0 %814
  %v817 = vadd.f32 %v728, %v815
  %v818 = vtanh.pop %v817
  %v819 = vsub.f32 1.0, %v807
  %821 = vrot.lane.b32.xlu0 %v818, 96
  %v822 = vpop.permute.xlu0 %821
  %v824 = vmul.f32 %v819, %v822
  %v825 = vmul.f32 %v807, %v350
  %v826 = vadd.f32 %v824, %v825
  %s827 = scalar_lea.vmem %s2, 8
  %v828 = vld [vmem:[%s827] sm:$0xff]
  %830 = vrot.lane.b32.xlu0 %v826, 96
  %v831 = vpop.permute.xlu0 %830
  %v832 = vsel %vm89, %v831, 0
  %834 = vmatprep.subr.mxu0 0.0
  %835 = vmatpush1.msra.mxu0 0.0
  %836 = vmatprep.subr.mxu0 0.0
  %837 = vmatpush1.msra.mxu0 0.0
  %838 = vmatprep.subr.mxu0 0.0
  %839 = vmatpush1.msra.mxu0 0.0
  %840 = vmatprep.subr.mxu0 0.0
  %841 = vmatpush1.msra.mxu0 0.0
  %842 = vmatprep.subr.mxu0 0.0
  %843 = vmatpush1.msra.mxu0 0.0
  %844 = vmatprep.subr.mxu0 0.0
  %845 = vmatpush1.msra.mxu0 0.0
  %846 = vmatprep.subr.mxu0 0.0
  %847 = vmatpush1.msra.mxu0 0.0
  %848 = vmatprep.subr.mxu0 0.0
  %849 = vmatpush1.msra.mxu0 0.0
  %850 = vmatprep.subr.mxu0 0.0
  %851 = vmatpush1.msra.mxu0 0.0
  %852 = vmatprep.subr.mxu0 0.0
  %853 = vmatpush1.msra.mxu0 0.0
  %854 = vmatprep.subr.mxu0 0.0
  %855 = vmatpush1.msra.mxu0 0.0
  %856 = vmatprep.subr.mxu0 0.0
  %857 = vmatpush1.msra.mxu0 0.0
  %858 = vmatprep.subr.mxu0 0.0
  %859 = vmatpush1.msra.mxu0 %v67
  %860 = vmatprep.subr.mxu0 0.0
  %861 = vmatpush1.msra.mxu0 %v66
  %862 = vmatprep.subr.mxu0 0.0
  %863 = vmatpush1.msra.mxu0 %v65
  %864 = vmatprep.subr.mxu0 0.0
  %865 = vmatpush1.msra.mxu0 %v64
  %866 = vmatprep.subr.mxu0 0.0
  %867 = vmatpush2.msra.mxu0 0.0
  %868 = vmatprep.subr.mxu0 0.0
  %869 = vmatpush2.msra.mxu0 0.0
  %870 = vmatprep.subr.mxu0 0.0
  %871 = vmatpush2.msra.mxu0 0.0
  %872 = vmatprep.subr.mxu0 0.0
  %873 = vmatpush2.msra.mxu0 0.0
  %874 = vmatprep.subr.mxu0 0.0
  %875 = vmatpush2.msra.mxu0 0.0
  %876 = vmatprep.subr.mxu0 0.0
  %877 = vmatpush2.msra.mxu0 0.0
  %878 = vmatprep.subr.mxu0 0.0
  %879 = vmatpush2.msra.mxu0 0.0
  %880 = vmatprep.subr.mxu0 0.0
  %881 = vmatpush2.msra.mxu0 0.0
  %882 = vmatprep.subr.mxu0 0.0
  %883 = vmatpush2.msra.mxu0 0.0
  %884 = vmatprep.subr.mxu0 0.0
  %885 = vmatpush2.msra.mxu0 0.0
  %886 = vmatprep.subr.mxu0 0.0
  %887 = vmatpush2.msra.mxu0 0.0
  %888 = vmatprep.subr.mxu0 0.0
  %889 = vmatpush2.msra.mxu0 0.0
  %890 = vmatprep.subr.mxu0 0.0
  %891 = vmatpush2.msra.mxu0 0.0
  %892 = vmatprep.subr.mxu0 0.0
  %893 = vmatpush2.msra.mxu0 0.0
  %894 = vmatprep.subr.mxu0 0.0
  %895 = vmatpush2.msra.mxu0 0.0
  %896 = vmatprep.subr.mxu0 0.0
  %897 = vmatpush2.msra.mxu0 0.0
  %898 = vmatprep.mubr.f32.mxu0 0.0
  %899 = vmatmul.mubr.f32.gmra.mxu0 %v832
  %v900 = vpop.f32.mrf.mxu0
  %v901 = vadd.f32 %v828, %v900
  %v902 = vpop.f32.mrf.mxu0
  %903 = vdwg.mxu0
  %v904 = vmax.f32 %v901, 0.0
  %v906 = vsel %vm434, %v904, 0
  %908 = vmatprep.subr.mxu0 0.0
  %909 = vmatpush1.msra.mxu0 0.0
  %910 = vmatprep.subr.mxu0 0.0
  %911 = vmatpush1.msra.mxu0 0.0
  %912 = vmatprep.subr.mxu0 0.0
  %913 = vmatpush1.msra.mxu0 0.0
  %914 = vmatprep.subr.mxu0 0.0
  %915 = vmatpush1.msra.mxu0 0.0
  %916 = vmatprep.subr.mxu0 0.0
  %917 = vmatpush1.msra.mxu0 0.0
  %918 = vmatprep.subr.mxu0 0.0
  %919 = vmatpush1.msra.mxu0 0.0
  %920 = vmatprep.subr.mxu0 0.0
  %921 = vmatpush1.msra.mxu0 0.0
  %922 = vmatprep.subr.mxu0 0.0
  %923 = vmatpush1.msra.mxu0 0.0
  %924 = vmatprep.subr.mxu0 0.0
  %925 = vmatpush1.msra.mxu0 %v75
  %926 = vmatprep.subr.mxu0 0.0
  %927 = vmatpush1.msra.mxu0 %v74
  %928 = vmatprep.subr.mxu0 0.0
  %929 = vmatpush1.msra.mxu0 %v73
  %930 = vmatprep.subr.mxu0 0.0
  %931 = vmatpush1.msra.mxu0 %v72
  %932 = vmatprep.subr.mxu0 0.0
  %933 = vmatpush1.msra.mxu0 %v71
  %934 = vmatprep.subr.mxu0 0.0
  %935 = vmatpush1.msra.mxu0 %v70
  %936 = vmatprep.subr.mxu0 0.0
  %937 = vmatpush1.msra.mxu0 %v69
  %938 = vmatprep.subr.mxu0 0.0
  %939 = vmatpush1.msra.mxu0 %v68
  %940 = vmatprep.subr.mxu0 0.0
  %941 = vmatpush2.msra.mxu0 0.0
  %942 = vmatprep.subr.mxu0 0.0
  %943 = vmatpush2.msra.mxu0 0.0
  %944 = vmatprep.subr.mxu0 0.0
  %945 = vmatpush2.msra.mxu0 0.0
  %946 = vmatprep.subr.mxu0 0.0
  %947 = vmatpush2.msra.mxu0 0.0
  %948 = vmatprep.subr.mxu0 0.0
  %949 = vmatpush2.msra.mxu0 0.0
  %950 = vmatprep.subr.mxu0 0.0
  %951 = vmatpush2.msra.mxu0 0.0
  %952 = vmatprep.subr.mxu0 0.0
  %953 = vmatpush2.msra.mxu0 0.0
  %954 = vmatprep.subr.mxu0 0.0
  %955 = vmatpush2.msra.mxu0 0.0
  %956 = vmatprep.subr.mxu0 0.0
  %957 = vmatpush2.msra.mxu0 0.0
  %958 = vmatprep.subr.mxu0 0.0
  %959 = vmatpush2.msra.mxu0 0.0
  %960 = vmatprep.subr.mxu0 0.0
  %961 = vmatpush2.msra.mxu0 0.0
  %962 = vmatprep.subr.mxu0 0.0
  %963 = vmatpush2.msra.mxu0 0.0
  %964 = vmatprep.subr.mxu0 0.0
  %965 = vmatpush2.msra.mxu0 0.0
  %966 = vmatprep.subr.mxu0 0.0
  %967 = vmatpush2.msra.mxu0 0.0
  %968 = vmatprep.subr.mxu0 0.0
  %969 = vmatpush2.msra.mxu0 0.0
  %970 = vmatprep.subr.mxu0 0.0
  %971 = vmatpush2.msra.mxu0 0.0
  %972 = vmatprep.mubr.f32.mxu0 0.0
  %973 = vmatmul.mubr.f32.gmra.mxu0 %v906
  %v974 = vpop.f32.mrf.mxu0
  %v975 = vadd.f32 %v432, %v974
  %v976 = vpop.f32.mrf.mxu0
  %977 = vdwg.mxu0
  %v978 = vmax.f32 %v975, 0.0
  %vm979 = vcmp.ne.f32.partialorder %v975, %v975
  %v980 = vadd.f32 %v975, 0.0
  %v981 = vand.u32 2147483647, %v975
  %v982 = vsub.f32 0.0, %v981
  %v983 = vmul.f32 %v982, 1.442695
  %v984 = vpow.pop %v983
  %v985 = vadd.f32 %v984, 1.0
  %v986 = vlog2.pop %v985
  %v987 = vmul.f32 %v986, 0.6931472
  %v988 = vmul.f32 -0.5, %v984
  %v989 = vadd.f32 %v988, 1.0
  %v990 = vmul.f32 %v989, %v984
  %v991 = vand.u32 2147483647, %v984
  %vm992 = vcmp.lt.f32.partialorder %v991, 0.0004427343
  %v993 = vsel %vm992, %v990, %v987
  %v994 = vadd.f32 %v978, %v993
  %v995 = vsel %vm979, %v980, %v994
  %v996 = vadd.f32 %v995, 0.1
  %s997 = scalar_lea.vmem %s3, 8
  %v998 = vld [vmem:[%s997] sm:$0xff]
  %1000 = vrot.lane.b32.xlu0 %v998, 16
  %v1001 = vpop.permute.xlu0 %1000
  %v1003 = vmul.f32 %v996, %v1001
  %1005 = vrot.lane.b32.xlu0 %v1003, 112
  %v1006 = vpop.permute.xlu0 %1005
  %v1008 = vadd.f32 %v975, %v1006
  %s1009 = scalar_lea.vmem %s4, 8
  %v1010 = vld [vmem:[%s1009] sm:$0xff]
  %1012 = vrot.lane.b32.xlu0 %v1010, 48
  %v1013 = vpop.permute.xlu0 %1012
  %v1015 = vmul.f32 %v996, %v1013
  %1017 = vrot.lane.b32.xlu0 %v1015, 112
  %v1018 = vpop.permute.xlu0 %1017
  %v1020 = vadd.f32 %v975, %v1018
  %1023 = vrot.lane.b32.xlu0 %v975, 16
  %v1024 = vpop.permute.xlu0 %1023
  %1027 = vrot.lane.b32.xlu0 %v996, 16
  %v1028 = vpop.permute.xlu0 %1027
  %1031 = vrot.lane.b32.xlu0 %v1008, 80
  %v1032 = vpop.permute.xlu0 %1031
  %1034 = vrot.lane.b32.xlu0 %v975, 96
  %v1035 = vpop.permute.xlu0 %1034
  %1037 = vrot.lane.b32.xlu0 %v996, 96
  %v1038 = vpop.permute.xlu0 %1037
  %v1040 = vsel %vm89, %v831, %v1020
  %v1041 = vsel %vm569, %v1040, %v1024
  %v1042 = vsel %vm434, %v1041, %v1028
  %v1043 = vsel %vm572, %v1042, %v1032
  %v1044 = vsel %vm574, %v1043, %v1035
  %v1045 = vsel %vm576, %v1044, %v1038
  %s1046 = scalar_lea.vmem %s14, 8
  %1047 = vst [vmem:[%s1046] sm:$0xff] %v1045
  %1049 = vrot.lane.b32.xlu0 %v1020, 112
  %v1050 = vpop.permute.xlu0 %1049
  %v1052 = vsel %vm81, %v1008, %v1050
  %v1054 = vsel %vm89, %v1052, 0
  %1056 = vmatprep.subr.mxu0 0.0
  %1057 = vmatpush1.msra.mxu0 0.0
  %1058 = vmatprep.subr.mxu0 0.0
  %1059 = vmatpush1.msra.mxu0 0.0
  %1060 = vmatprep.subr.mxu0 0.0
  %1061 = vmatpush1.msra.mxu0 0.0
  %1062 = vmatprep.subr.mxu0 0.0
  %1063 = vmatpush1.msra.mxu0 0.0
  %1064 = vmatprep.subr.mxu0 0.0
  %1065 = vmatpush1.msra.mxu0 0.0
  %1066 = vmatprep.subr.mxu0 0.0
  %1067 = vmatpush1.msra.mxu0 0.0
  %1068 = vmatprep.subr.mxu0 0.0
  %1069 = vmatpush1.msra.mxu0 0.0
  %1070 = vmatprep.subr.mxu0 0.0
  %1071 = vmatpush1.msra.mxu0 0.0
  %1072 = vmatprep.subr.mxu0 0.0
  %1073 = vmatpush1.msra.mxu0 0.0
  %1074 = vmatprep.subr.mxu0 0.0
  %1075 = vmatpush1.msra.mxu0 0.0
  %1076 = vmatprep.subr.mxu0 0.0
  %1077 = vmatpush1.msra.mxu0 0.0
  %1078 = vmatprep.subr.mxu0 0.0
  %1079 = vmatpush1.msra.mxu0 0.0
  %1080 = vmatprep.subr.mxu0 0.0
  %1081 = vmatpush1.msra.mxu0 %v52
  %1082 = vmatprep.subr.mxu0 0.0
  %1083 = vmatpush1.msra.mxu0 %v51
  %1084 = vmatprep.subr.mxu0 0.0
  %1085 = vmatpush1.msra.mxu0 %v50
  %1086 = vmatprep.subr.mxu0 0.0
  %1087 = vmatpush1.msra.mxu0 %v49
  %1088 = vmatprep.subr.mxu0 0.0
  %1089 = vmatpush2.msra.mxu0 0.0
  %1090 = vmatprep.subr.mxu0 0.0
  %1091 = vmatpush2.msra.mxu0 0.0
  %1092 = vmatprep.subr.mxu0 0.0
  %1093 = vmatpush2.msra.mxu0 0.0
  %1094 = vmatprep.subr.mxu0 0.0
  %1095 = vmatpush2.msra.mxu0 0.0
  %1096 = vmatprep.subr.mxu0 0.0
  %1097 = vmatpush2.msra.mxu0 0.0
  %1098 = vmatprep.subr.mxu0 0.0
  %1099 = vmatpush2.msra.mxu0 0.0
  %1100 = vmatprep.subr.mxu0 0.0
  %1101 = vmatpush2.msra.mxu0 0.0
  %1102 = vmatprep.subr.mxu0 0.0
  %1103 = vmatpush2.msra.mxu0 0.0
  %1104 = vmatprep.subr.mxu0 0.0
  %1105 = vmatpush2.msra.mxu0 0.0
  %1106 = vmatprep.subr.mxu0 0.0
  %1107 = vmatpush2.msra.mxu0 0.0
  %1108 = vmatprep.subr.mxu0 0.0
  %1109 = vmatpush2.msra.mxu0 0.0
  %1110 = vmatprep.subr.mxu0 0.0
  %1111 = vmatpush2.msra.mxu0 0.0
  %1112 = vmatprep.subr.mxu0 0.0
  %1113 = vmatpush2.msra.mxu0 0.0
  %1114 = vmatprep.subr.mxu0 0.0
  %1115 = vmatpush2.msra.mxu0 0.0
  %1116 = vmatprep.subr.mxu0 0.0
  %1117 = vmatpush2.msra.mxu0 0.0
  %1118 = vmatprep.subr.mxu0 0.0
  %1119 = vmatpush2.msra.mxu0 0.0
  %1120 = vmatprep.mubr.f32.mxu0 0.0
  %1121 = vmatmul.mubr.f32.gmra.mxu0 %v1054
  %v1122 = vpop.f32.mrf.mxu0
  %v1123 = vadd.f32 %v87, %v1122
  %v1124 = vpop.f32.mrf.mxu0
  %1125 = vdwg.mxu0
  %v1126 = vmax.f32 %v1123, 0.0
  %v1128 = vsel %vm89, %v1126, 0
  %1130 = vmatprep.subr.mxu0 0.0
  %1131 = vmatpush1.msra.mxu0 0.0
  %1132 = vmatprep.subr.mxu0 0.0
  %1133 = vmatpush1.msra.mxu0 0.0
  %1134 = vmatprep.subr.mxu0 0.0
  %1135 = vmatpush1.msra.mxu0 0.0
  %1136 = vmatprep.subr.mxu0 0.0
  %1137 = vmatpush1.msra.mxu0 0.0
  %1138 = vmatprep.subr.mxu0 0.0
  %1139 = vmatpush1.msra.mxu0 0.0
  %1140 = vmatprep.subr.mxu0 0.0
  %1141 = vmatpush1.msra.mxu0 0.0
  %1142 = vmatprep.subr.mxu0 0.0
  %1143 = vmatpush1.msra.mxu0 0.0
  %1144 = vmatprep.subr.mxu0 0.0
  %1145 = vmatpush1.msra.mxu0 0.0
  %1146 = vmatprep.subr.mxu0 0.0
  %1147 = vmatpush1.msra.mxu0 0.0
  %1148 = vmatprep.subr.mxu0 0.0
  %1149 = vmatpush1.msra.mxu0 0.0
  %1150 = vmatprep.subr.mxu0 0.0
  %1151 = vmatpush1.msra.mxu0 0.0
  %1152 = vmatprep.subr.mxu0 0.0
  %1153 = vmatpush1.msra.mxu0 0.0
  %1154 = vmatprep.subr.mxu0 0.0
  %1155 = vmatpush1.msra.mxu0 %v57
  %1156 = vmatprep.subr.mxu0 0.0
  %1157 = vmatpush1.msra.mxu0 %v56
  %1158 = vmatprep.subr.mxu0 0.0
  %1159 = vmatpush1.msra.mxu0 %v55
  %1160 = vmatprep.subr.mxu0 0.0
  %1161 = vmatpush1.msra.mxu0 %v54
  %1162 = vmatprep.subr.mxu0 0.0
  %1163 = vmatpush2.msra.mxu0 0.0
  %1164 = vmatprep.subr.mxu0 0.0
  %1165 = vmatpush2.msra.mxu0 0.0
  %1166 = vmatprep.subr.mxu0 0.0
  %1167 = vmatpush2.msra.mxu0 0.0
  %1168 = vmatprep.subr.mxu0 0.0
  %1169 = vmatpush2.msra.mxu0 0.0
  %1170 = vmatprep.subr.mxu0 0.0
  %1171 = vmatpush2.msra.mxu0 0.0
  %1172 = vmatprep.subr.mxu0 0.0
  %1173 = vmatpush2.msra.mxu0 0.0
  %1174 = vmatprep.subr.mxu0 0.0
  %1175 = vmatpush2.msra.mxu0 0.0
  %1176 = vmatprep.subr.mxu0 0.0
  %1177 = vmatpush2.msra.mxu0 0.0
  %1178 = vmatprep.subr.mxu0 0.0
  %1179 = vmatpush2.msra.mxu0 0.0
  %1180 = vmatprep.subr.mxu0 0.0
  %1181 = vmatpush2.msra.mxu0 0.0
  %1182 = vmatprep.subr.mxu0 0.0
  %1183 = vmatpush2.msra.mxu0 0.0
  %1184 = vmatprep.subr.mxu0 0.0
  %1185 = vmatpush2.msra.mxu0 0.0
  %1186 = vmatprep.subr.mxu0 0.0
  %1187 = vmatpush2.msra.mxu0 0.0
  %1188 = vmatprep.subr.mxu0 0.0
  %1189 = vmatpush2.msra.mxu0 0.0
  %1190 = vmatprep.subr.mxu0 0.0
  %1191 = vmatpush2.msra.mxu0 0.0
  %1192 = vmatprep.subr.mxu0 0.0
  %1193 = vmatpush2.msra.mxu0 0.0
  %1194 = vmatprep.mubr.f32.mxu0 0.0
  %1195 = vmatmul.mubr.f32.gmra.mxu0 %v1128
  %v1196 = vpop.f32.mrf.mxu0
  %v1197 = vadd.f32 %v168, %v1196
  %v1198 = vpop.f32.mrf.mxu0
  %1199 = vdwg.mxu0
  %1200 = vmatprep.subr.mxu0 0.0
  %1201 = vmatpush1.msra.mxu0 0.0
  %1202 = vmatprep.subr.mxu0 0.0
  %1203 = vmatpush1.msra.mxu0 0.0
  %1204 = vmatprep.subr.mxu0 0.0
  %1205 = vmatpush1.msra.mxu0 0.0
  %1206 = vmatprep.subr.mxu0 0.0
  %1207 = vmatpush1.msra.mxu0 0.0
  %1208 = vmatprep.subr.mxu0 0.0
  %1209 = vmatpush1.msra.mxu0 0.0
  %1210 = vmatprep.subr.mxu0 0.0
  %1211 = vmatpush1.msra.mxu0 0.0
  %1212 = vmatprep.subr.mxu0 0.0
  %1213 = vmatpush1.msra.mxu0 0.0
  %1214 = vmatprep.subr.mxu0 0.0
  %1215 = vmatpush1.msra.mxu0 0.0
  %1216 = vmatprep.subr.mxu0 0.0
  %1217 = vmatpush1.msra.mxu0 0.0
  %1218 = vmatprep.subr.mxu0 0.0
  %1219 = vmatpush1.msra.mxu0 0.0
  %1220 = vmatprep.subr.mxu0 0.0
  %1221 = vmatpush1.msra.mxu0 0.0
  %1222 = vmatprep.subr.mxu0 0.0
  %1223 = vmatpush1.msra.mxu0 0.0
  %1224 = vmatprep.subr.mxu0 0.0
  %1225 = vmatpush1.msra.mxu0 %v62
  %1226 = vmatprep.subr.mxu0 0.0
  %1227 = vmatpush1.msra.mxu0 %v61
  %1228 = vmatprep.subr.mxu0 0.0
  %1229 = vmatpush1.msra.mxu0 %v60
  %1230 = vmatprep.subr.mxu0 0.0
  %1231 = vmatpush1.msra.mxu0 %v59
  %1232 = vmatprep.subr.mxu0 0.0
  %1233 = vmatpush2.msra.mxu0 0.0
  %1234 = vmatprep.subr.mxu0 0.0
  %1235 = vmatpush2.msra.mxu0 0.0
  %1236 = vmatprep.subr.mxu0 0.0
  %1237 = vmatpush2.msra.mxu0 0.0
  %1238 = vmatprep.subr.mxu0 0.0
  %1239 = vmatpush2.msra.mxu0 0.0
  %1240 = vmatprep.subr.mxu0 0.0
  %1241 = vmatpush2.msra.mxu0 0.0
  %1242 = vmatprep.subr.mxu0 0.0
  %1243 = vmatpush2.msra.mxu0 0.0
  %1244 = vmatprep.subr.mxu0 0.0
  %1245 = vmatpush2.msra.mxu0 0.0
  %1246 = vmatprep.subr.mxu0 0.0
  %1247 = vmatpush2.msra.mxu0 0.0
  %1248 = vmatprep.subr.mxu0 0.0
  %1249 = vmatpush2.msra.mxu0 0.0
  %1250 = vmatprep.subr.mxu0 0.0
  %1251 = vmatpush2.msra.mxu0 0.0
  %1252 = vmatprep.subr.mxu0 0.0
  %1253 = vmatpush2.msra.mxu0 0.0
  %1254 = vmatprep.subr.mxu0 0.0
  %1255 = vmatpush2.msra.mxu0 0.0
  %1256 = vmatprep.subr.mxu0 0.0
  %1257 = vmatpush2.msra.mxu0 0.0
  %1258 = vmatprep.subr.mxu0 0.0
  %1259 = vmatpush2.msra.mxu0 0.0
  %1260 = vmatprep.subr.mxu0 0.0
  %1261 = vmatpush2.msra.mxu0 0.0
  %1262 = vmatprep.subr.mxu0 0.0
  %1263 = vmatpush2.msra.mxu0 0.0
  %1264 = vmatprep.mubr.f32.mxu0 0.0
  %1265 = vmatmul.mubr.f32.gmra.mxu0 %v832
  %v1266 = vpop.f32.mrf.mxu0
  %v1267 = vadd.f32 %v247, %v1266
  %v1268 = vpop.f32.mrf.mxu0
  %1269 = vdwg.mxu0
  %v1270 = vadd.f32 %v1197, %v1267
  %v1271 = vxor.u32 %v1270, 2147483648
  %v1272 = vmul.f32 %v1271, 1.442695
  %v1273 = vpow.pop %v1272
  %v1274 = vadd.f32 %v1273, 1.0
  %v1275 = vrcp.pop %v1274
  %v1276 = vmul.f32 1.0, %v1275
  %1278 = vrot.lane.b32.xlu0 %v1267, 64
  %v1279 = vpop.permute.xlu0 %1278
  %v1281 = vmul.f32 %v1276, %v1279
  %1283 = vrot.lane.b32.xlu0 %v1281, 64
  %v1284 = vpop.permute.xlu0 %1283
  %v1286 = vadd.f32 %v1197, %v1284
  %v1287 = vtanh.pop %v1286
  %v1288 = vsub.f32 1.0, %v1276
  %1290 = vrot.lane.b32.xlu0 %v1287, 96
  %v1291 = vpop.permute.xlu0 %1290
  %v1293 = vmul.f32 %v1288, %v1291
  %v1294 = vmul.f32 %v1276, %v826
  %v1295 = vadd.f32 %v1293, %v1294
  %s1296 = scalar_lea.vmem %s2, 16
  %v1297 = vld [vmem:[%s1296] sm:$0xff]
  %1299 = vrot.lane.b32.xlu0 %v1295, 96
  %v1300 = vpop.permute.xlu0 %1299
  %v1301 = vsel %vm89, %v1300, 0
  %1303 = vmatprep.subr.mxu0 0.0
  %1304 = vmatpush1.msra.mxu0 0.0
  %1305 = vmatprep.subr.mxu0 0.0
  %1306 = vmatpush1.msra.mxu0 0.0
  %1307 = vmatprep.subr.mxu0 0.0
  %1308 = vmatpush1.msra.mxu0 0.0
  %1309 = vmatprep.subr.mxu0 0.0
  %1310 = vmatpush1.msra.mxu0 0.0
  %1311 = vmatprep.subr.mxu0 0.0
  %1312 = vmatpush1.msra.mxu0 0.0
  %1313 = vmatprep.subr.mxu0 0.0
  %1314 = vmatpush1.msra.mxu0 0.0
  %1315 = vmatprep.subr.mxu0 0.0
  %1316 = vmatpush1.msra.mxu0 0.0
  %1317 = vmatprep.subr.mxu0 0.0
  %1318 = vmatpush1.msra.mxu0 0.0
  %1319 = vmatprep.subr.mxu0 0.0
  %1320 = vmatpush1.msra.mxu0 0.0
  %1321 = vmatprep.subr.mxu0 0.0
  %1322 = vmatpush1.msra.mxu0 0.0
  %1323 = vmatprep.subr.mxu0 0.0
  %1324 = vmatpush1.msra.mxu0 0.0
  %1325 = vmatprep.subr.mxu0 0.0
  %1326 = vmatpush1.msra.mxu0 0.0
  %1327 = vmatprep.subr.mxu0 0.0
  %1328 = vmatpush1.msra.mxu0 %v67
  %1329 = vmatprep.subr.mxu0 0.0
  %1330 = vmatpush1.msra.mxu0 %v66
  %1331 = vmatprep.subr.mxu0 0.0
  %1332 = vmatpush1.msra.mxu0 %v65
  %1333 = vmatprep.subr.mxu0 0.0
  %1334 = vmatpush1.msra.mxu0 %v64
  %1335 = vmatprep.subr.mxu0 0.0
  %1336 = vmatpush2.msra.mxu0 0.0
  %1337 = vmatprep.subr.mxu0 0.0
  %1338 = vmatpush2.msra.mxu0 0.0
  %1339 = vmatprep.subr.mxu0 0.0
  %1340 = vmatpush2.msra.mxu0 0.0
  %1341 = vmatprep.subr.mxu0 0.0
  %1342 = vmatpush2.msra.mxu0 0.0
  %1343 = vmatprep.subr.mxu0 0.0
  %1344 = vmatpush2.msra.mxu0 0.0
  %1345 = vmatprep.subr.mxu0 0.0
  %1346 = vmatpush2.msra.mxu0 0.0
  %1347 = vmatprep.subr.mxu0 0.0
  %1348 = vmatpush2.msra.mxu0 0.0
  %1349 = vmatprep.subr.mxu0 0.0
  %1350 = vmatpush2.msra.mxu0 0.0
  %1351 = vmatprep.subr.mxu0 0.0
  %1352 = vmatpush2.msra.mxu0 0.0
  %1353 = vmatprep.subr.mxu0 0.0
  %1354 = vmatpush2.msra.mxu0 0.0
  %1355 = vmatprep.subr.mxu0 0.0
  %1356 = vmatpush2.msra.mxu0 0.0
  %1357 = vmatprep.subr.mxu0 0.0
  %1358 = vmatpush2.msra.mxu0 0.0
  %1359 = vmatprep.subr.mxu0 0.0
  %1360 = vmatpush2.msra.mxu0 0.0
  %1361 = vmatprep.subr.mxu0 0.0
  %1362 = vmatpush2.msra.mxu0 0.0
  %1363 = vmatprep.subr.mxu0 0.0
  %1364 = vmatpush2.msra.mxu0 0.0
  %1365 = vmatprep.subr.mxu0 0.0
  %1366 = vmatpush2.msra.mxu0 0.0
  %1367 = vmatprep.mubr.f32.mxu0 0.0
  %1368 = vmatmul.mubr.f32.gmra.mxu0 %v1301
  %v1369 = vpop.f32.mrf.mxu0
  %v1370 = vadd.f32 %v1297, %v1369
  %v1371 = vpop.f32.mrf.mxu0
  %1372 = vdwg.mxu0
  %v1373 = vmax.f32 %v1370, 0.0
  %v1375 = vsel %vm434, %v1373, 0
  %1377 = vmatprep.subr.mxu0 0.0
  %1378 = vmatpush1.msra.mxu0 0.0
  %1379 = vmatprep.subr.mxu0 0.0
  %1380 = vmatpush1.msra.mxu0 0.0
  %1381 = vmatprep.subr.mxu0 0.0
  %1382 = vmatpush1.msra.mxu0 0.0
  %1383 = vmatprep.subr.mxu0 0.0
  %1384 = vmatpush1.msra.mxu0 0.0
  %1385 = vmatprep.subr.mxu0 0.0
  %1386 = vmatpush1.msra.mxu0 0.0
  %1387 = vmatprep.subr.mxu0 0.0
  %1388 = vmatpush1.msra.mxu0 0.0
  %1389 = vmatprep.subr.mxu0 0.0
  %1390 = vmatpush1.msra.mxu0 0.0
  %1391 = vmatprep.subr.mxu0 0.0
  %1392 = vmatpush1.msra.mxu0 0.0
  %1393 = vmatprep.subr.mxu0 0.0
  %1394 = vmatpush1.msra.mxu0 %v75
  %1395 = vmatprep.subr.mxu0 0.0
  %1396 = vmatpush1.msra.mxu0 %v74
  %1397 = vmatprep.subr.mxu0 0.0
  %1398 = vmatpush1.msra.mxu0 %v73
  %1399 = vmatprep.subr.mxu0 0.0
  %1400 = vmatpush1.msra.mxu0 %v72
  %1401 = vmatprep.subr.mxu0 0.0
  %1402 = vmatpush1.msra.mxu0 %v71
  %1403 = vmatprep.subr.mxu0 0.0
  %1404 = vmatpush1.msra.mxu0 %v70
  %1405 = vmatprep.subr.mxu0 0.0
  %1406 = vmatpush1.msra.mxu0 %v69
  %1407 = vmatprep.subr.mxu0 0.0
  %1408 = vmatpush1.msra.mxu0 %v68
  %1409 = vmatprep.subr.mxu0 0.0
  %1410 = vmatpush2.msra.mxu0 0.0
  %1411 = vmatprep.subr.mxu0 0.0
  %1412 = vmatpush2.msra.mxu0 0.0
  %1413 = vmatprep.subr.mxu0 0.0
  %1414 = vmatpush2.msra.mxu0 0.0
  %1415 = vmatprep.subr.mxu0 0.0
  %1416 = vmatpush2.msra.mxu0 0.0
  %1417 = vmatprep.subr.mxu0 0.0
  %1418 = vmatpush2.msra.mxu0 0.0
  %1419 = vmatprep.subr.mxu0 0.0
  %1420 = vmatpush2.msra.mxu0 0.0
  %1421 = vmatprep.subr.mxu0 0.0
  %1422 = vmatpush2.msra.mxu0 0.0
  %1423 = vmatprep.subr.mxu0 0.0
  %1424 = vmatpush2.msra.mxu0 0.0
  %1425 = vmatprep.subr.mxu0 0.0
  %1426 = vmatpush2.msra.mxu0 0.0
  %1427 = vmatprep.subr.mxu0 0.0
  %1428 = vmatpush2.msra.mxu0 0.0
  %1429 = vmatprep.subr.mxu0 0.0
  %1430 = vmatpush2.msra.mxu0 0.0
  %1431 = vmatprep.subr.mxu0 0.0
  %1432 = vmatpush2.msra.mxu0 0.0
  %1433 = vmatprep.subr.mxu0 0.0
  %1434 = vmatpush2.msra.mxu0 0.0
  %1435 = vmatprep.subr.mxu0 0.0
  %1436 = vmatpush2.msra.mxu0 0.0
  %1437 = vmatprep.subr.mxu0 0.0
  %1438 = vmatpush2.msra.mxu0 0.0
  %1439 = vmatprep.subr.mxu0 0.0
  %1440 = vmatpush2.msra.mxu0 0.0
  %1441 = vmatprep.mubr.f32.mxu0 0.0
  %1442 = vmatmul.mubr.f32.gmra.mxu0 %v1375
  %v1443 = vpop.f32.mrf.mxu0
  %v1444 = vadd.f32 %v432, %v1443
  %v1445 = vpop.f32.mrf.mxu0
  %1446 = vdwg.mxu0
  %v1447 = vmax.f32 %v1444, 0.0
  %vm1448 = vcmp.ne.f32.partialorder %v1444, %v1444
  %v1449 = vadd.f32 %v1444, 0.0
  %v1450 = vand.u32 2147483647, %v1444
  %v1451 = vsub.f32 0.0, %v1450
  %v1452 = vmul.f32 %v1451, 1.442695
  %v1453 = vpow.pop %v1452
  %v1454 = vadd.f32 %v1453, 1.0
  %v1455 = vlog2.pop %v1454
  %v1456 = vmul.f32 %v1455, 0.6931472
  %v1457 = vmul.f32 -0.5, %v1453
  %v1458 = vadd.f32 %v1457, 1.0
  %v1459 = vmul.f32 %v1458, %v1453
  %v1460 = vand.u32 2147483647, %v1453
  %vm1461 = vcmp.lt.f32.partialorder %v1460, 0.0004427343
  %v1462 = vsel %vm1461, %v1459, %v1456
  %v1463 = vadd.f32 %v1447, %v1462
  %v1464 = vsel %vm1448, %v1449, %v1463
  %v1465 = vadd.f32 %v1464, 0.1
  %s1466 = scalar_lea.vmem %s3, 16
  %v1467 = vld [vmem:[%s1466] sm:$0xff]
  %1469 = vrot.lane.b32.xlu0 %v1467, 16
  %v1470 = vpop.permute.xlu0 %1469
  %v1472 = vmul.f32 %v1465, %v1470
  %1474 = vrot.lane.b32.xlu0 %v1472, 112
  %v1475 = vpop.permute.xlu0 %1474
  %v1477 = vadd.f32 %v1444, %v1475
  %s1478 = scalar_lea.vmem %s4, 16
  %v1479 = vld [vmem:[%s1478] sm:$0xff]
  %1481 = vrot.lane.b32.xlu0 %v1479, 48
  %v1482 = vpop.permute.xlu0 %1481
  %v1484 = vmul.f32 %v1465, %v1482
  %1486 = vrot.lane.b32.xlu0 %v1484, 112
  %v1487 = vpop.permute.xlu0 %1486
  %v1489 = vadd.f32 %v1444, %v1487
  %1492 = vrot.lane.b32.xlu0 %v1444, 16
  %v1493 = vpop.permute.xlu0 %1492
  %1496 = vrot.lane.b32.xlu0 %v1465, 16
  %v1497 = vpop.permute.xlu0 %1496
  %1500 = vrot.lane.b32.xlu0 %v1477, 80
  %v1501 = vpop.permute.xlu0 %1500
  %1503 = vrot.lane.b32.xlu0 %v1444, 96
  %v1504 = vpop.permute.xlu0 %1503
  %1506 = vrot.lane.b32.xlu0 %v1465, 96
  %v1507 = vpop.permute.xlu0 %1506
  %v1509 = vsel %vm89, %v1300, %v1489
  %v1510 = vsel %vm569, %v1509, %v1493
  %v1511 = vsel %vm434, %v1510, %v1497
  %v1512 = vsel %vm572, %v1511, %v1501
  %v1513 = vsel %vm574, %v1512, %v1504
  %v1514 = vsel %vm576, %v1513, %v1507
  %s1515 = scalar_lea.vmem %s14, 16
  %1516 = vst [vmem:[%s1515] sm:$0xff] %v1514
  %1518 = vrot.lane.b32.xlu0 %v1489, 112
  %v1519 = vpop.permute.xlu0 %1518
  %v1521 = vsel %vm81, %v1477, %v1519
  %v1523 = vsel %vm89, %v1521, 0
  %1525 = vmatprep.subr.mxu0 0.0
  %1526 = vmatpush1.msra.mxu0 0.0
  %1527 = vmatprep.subr.mxu0 0.0
  %1528 = vmatpush1.msra.mxu0 0.0
  %1529 = vmatprep.subr.mxu0 0.0
  %1530 = vmatpush1.msra.mxu0 0.0
  %1531 = vmatprep.subr.mxu0 0.0
  %1532 = vmatpush1.msra.mxu0 0.0
  %1533 = vmatprep.subr.mxu0 0.0
  %1534 = vmatpush1.msra.mxu0 0.0
  %1535 = vmatprep.subr.mxu0 0.0
  %1536 = vmatpush1.msra.mxu0 0.0
  %1537 = vmatprep.subr.mxu0 0.0
  %1538 = vmatpush1.msra.mxu0 0.0
  %1539 = vmatprep.subr.mxu0 0.0
  %1540 = vmatpush1.msra.mxu0 0.0
  %1541 = vmatprep.subr.mxu0 0.0
  %1542 = vmatpush1.msra.mxu0 0.0
  %1543 = vmatprep.subr.mxu0 0.0
  %1544 = vmatpush1.msra.mxu0 0.0
  %1545 = vmatprep.subr.mxu0 0.0
  %1546 = vmatpush1.msra.mxu0 0.0
  %1547 = vmatprep.subr.mxu0 0.0
  %1548 = vmatpush1.msra.mxu0 0.0
  %1549 = vmatprep.subr.mxu0 0.0
  %1550 = vmatpush1.msra.mxu0 %v52
  %1551 = vmatprep.subr.mxu0 0.0
  %1552 = vmatpush1.msra.mxu0 %v51
  %1553 = vmatprep.subr.mxu0 0.0
  %1554 = vmatpush1.msra.mxu0 %v50
  %1555 = vmatprep.subr.mxu0 0.0
  %1556 = vmatpush1.msra.mxu0 %v49
  %1557 = vmatprep.subr.mxu0 0.0
  %1558 = vmatpush2.msra.mxu0 0.0
  %1559 = vmatprep.subr.mxu0 0.0
  %1560 = vmatpush2.msra.mxu0 0.0
  %1561 = vmatprep.subr.mxu0 0.0
  %1562 = vmatpush2.msra.mxu0 0.0
  %1563 = vmatprep.subr.mxu0 0.0
  %1564 = vmatpush2.msra.mxu0 0.0
  %1565 = vmatprep.subr.mxu0 0.0
  %1566 = vmatpush2.msra.mxu0 0.0
  %1567 = vmatprep.subr.mxu0 0.0
  %1568 = vmatpush2.msra.mxu0 0.0
  %1569 = vmatprep.subr.mxu0 0.0
  %1570 = vmatpush2.msra.mxu0 0.0
  %1571 = vmatprep.subr.mxu0 0.0
  %1572 = vmatpush2.msra.mxu0 0.0
  %1573 = vmatprep.subr.mxu0 0.0
  %1574 = vmatpush2.msra.mxu0 0.0
  %1575 = vmatprep.subr.mxu0 0.0
  %1576 = vmatpush2.msra.mxu0 0.0
  %1577 = vmatprep.subr.mxu0 0.0
  %1578 = vmatpush2.msra.mxu0 0.0
  %1579 = vmatprep.subr.mxu0 0.0
  %1580 = vmatpush2.msra.mxu0 0.0
  %1581 = vmatprep.subr.mxu0 0.0
  %1582 = vmatpush2.msra.mxu0 0.0
  %1583 = vmatprep.subr.mxu0 0.0
  %1584 = vmatpush2.msra.mxu0 0.0
  %1585 = vmatprep.subr.mxu0 0.0
  %1586 = vmatpush2.msra.mxu0 0.0
  %1587 = vmatprep.subr.mxu0 0.0
  %1588 = vmatpush2.msra.mxu0 0.0
  %1589 = vmatprep.mubr.f32.mxu0 0.0
  %1590 = vmatmul.mubr.f32.gmra.mxu0 %v1523
  %v1591 = vpop.f32.mrf.mxu0
  %v1592 = vadd.f32 %v87, %v1591
  %v1593 = vpop.f32.mrf.mxu0
  %1594 = vdwg.mxu0
  %v1595 = vmax.f32 %v1592, 0.0
  %v1597 = vsel %vm89, %v1595, 0
  %1599 = vmatprep.subr.mxu0 0.0
  %1600 = vmatpush1.msra.mxu0 0.0
  %1601 = vmatprep.subr.mxu0 0.0
  %1602 = vmatpush1.msra.mxu0 0.0
  %1603 = vmatprep.subr.mxu0 0.0
  %1604 = vmatpush1.msra.mxu0 0.0
  %1605 = vmatprep.subr.mxu0 0.0
  %1606 = vmatpush1.msra.mxu0 0.0
  %1607 = vmatprep.subr.mxu0 0.0
  %1608 = vmatpush1.msra.mxu0 0.0
  %1609 = vmatprep.subr.mxu0 0.0
  %1610 = vmatpush1.msra.mxu0 0.0
  %1611 = vmatprep.subr.mxu0 0.0
  %1612 = vmatpush1.msra.mxu0 0.0
  %1613 = vmatprep.subr.mxu0 0.0
  %1614 = vmatpush1.msra.mxu0 0.0
  %1615 = vmatprep.subr.mxu0 0.0
  %1616 = vmatpush1.msra.mxu0 0.0
  %1617 = vmatprep.subr.mxu0 0.0
  %1618 = vmatpush1.msra.mxu0 0.0
  %1619 = vmatprep.subr.mxu0 0.0
  %1620 = vmatpush1.msra.mxu0 0.0
  %1621 = vmatprep.subr.mxu0 0.0
  %1622 = vmatpush1.msra.mxu0 0.0
  %1623 = vmatprep.subr.mxu0 0.0
  %1624 = vmatpush1.msra.mxu0 %v57
  %1625 = vmatprep.subr.mxu0 0.0
  %1626 = vmatpush1.msra.mxu0 %v56
  %1627 = vmatprep.subr.mxu0 0.0
  %1628 = vmatpush1.msra.mxu0 %v55
  %1629 = vmatprep.subr.mxu0 0.0
  %1630 = vmatpush1.msra.mxu0 %v54
  %1631 = vmatprep.subr.mxu0 0.0
  %1632 = vmatpush2.msra.mxu0 0.0
  %1633 = vmatprep.subr.mxu0 0.0
  %1634 = vmatpush2.msra.mxu0 0.0
  %1635 = vmatprep.subr.mxu0 0.0
  %1636 = vmatpush2.msra.mxu0 0.0
  %1637 = vmatprep.subr.mxu0 0.0
  %1638 = vmatpush2.msra.mxu0 0.0
  %1639 = vmatprep.subr.mxu0 0.0
  %1640 = vmatpush2.msra.mxu0 0.0
  %1641 = vmatprep.subr.mxu0 0.0
  %1642 = vmatpush2.msra.mxu0 0.0
  %1643 = vmatprep.subr.mxu0 0.0
  %1644 = vmatpush2.msra.mxu0 0.0
  %1645 = vmatprep.subr.mxu0 0.0
  %1646 = vmatpush2.msra.mxu0 0.0
  %1647 = vmatprep.subr.mxu0 0.0
  %1648 = vmatpush2.msra.mxu0 0.0
  %1649 = vmatprep.subr.mxu0 0.0
  %1650 = vmatpush2.msra.mxu0 0.0
  %1651 = vmatprep.subr.mxu0 0.0
  %1652 = vmatpush2.msra.mxu0 0.0
  %1653 = vmatprep.subr.mxu0 0.0
  %1654 = vmatpush2.msra.mxu0 0.0
  %1655 = vmatprep.subr.mxu0 0.0
  %1656 = vmatpush2.msra.mxu0 0.0
  %1657 = vmatprep.subr.mxu0 0.0
  %1658 = vmatpush2.msra.mxu0 0.0
  %1659 = vmatprep.subr.mxu0 0.0
  %1660 = vmatpush2.msra.mxu0 0.0
  %1661 = vmatprep.subr.mxu0 0.0
  %1662 = vmatpush2.msra.mxu0 0.0
  %1663 = vmatprep.mubr.f32.mxu0 0.0
  %1664 = vmatmul.mubr.f32.gmra.mxu0 %v1597
  %v1665 = vpop.f32.mrf.mxu0
  %v1666 = vadd.f32 %v168, %v1665
  %v1667 = vpop.f32.mrf.mxu0
  %1668 = vdwg.mxu0
  %1669 = vmatprep.subr.mxu0 0.0
  %1670 = vmatpush1.msra.mxu0 0.0
  %1671 = vmatprep.subr.mxu0 0.0
  %1672 = vmatpush1.msra.mxu0 0.0
  %1673 = vmatprep.subr.mxu0 0.0
  %1674 = vmatpush1.msra.mxu0 0.0
  %1675 = vmatprep.subr.mxu0 0.0
  %1676 = vmatpush1.msra.mxu0 0.0
  %1677 = vmatprep.subr.mxu0 0.0
  %1678 = vmatpush1.msra.mxu0 0.0
  %1679 = vmatprep.subr.mxu0 0.0
  %1680 = vmatpush1.msra.mxu0 0.0
  %1681 = vmatprep.subr.mxu0 0.0
  %1682 = vmatpush1.msra.mxu0 0.0
  %1683 = vmatprep.subr.mxu0 0.0
  %1684 = vmatpush1.msra.mxu0 0.0
  %1685 = vmatprep.subr.mxu0 0.0
  %1686 = vmatpush1.msra.mxu0 0.0
  %1687 = vmatprep.subr.mxu0 0.0
  %1688 = vmatpush1.msra.mxu0 0.0
  %1689 = vmatprep.subr.mxu0 0.0
  %1690 = vmatpush1.msra.mxu0 0.0
  %1691 = vmatprep.subr.mxu0 0.0
  %1692 = vmatpush1.msra.mxu0 0.0
  %1693 = vmatprep.subr.mxu0 0.0
  %1694 = vmatpush1.msra.mxu0 %v62
  %1695 = vmatprep.subr.mxu0 0.0
  %1696 = vmatpush1.msra.mxu0 %v61
  %1697 = vmatprep.subr.mxu0 0.0
  %1698 = vmatpush1.msra.mxu0 %v60
  %1699 = vmatprep.subr.mxu0 0.0
  %1700 = vmatpush1.msra.mxu0 %v59
  %1701 = vmatprep.subr.mxu0 0.0
  %1702 = vmatpush2.msra.mxu0 0.0
  %1703 = vmatprep.subr.mxu0 0.0
  %1704 = vmatpush2.msra.mxu0 0.0
  %1705 = vmatprep.subr.mxu0 0.0
  %1706 = vmatpush2.msra.mxu0 0.0
  %1707 = vmatprep.subr.mxu0 0.0
  %1708 = vmatpush2.msra.mxu0 0.0
  %1709 = vmatprep.subr.mxu0 0.0
  %1710 = vmatpush2.msra.mxu0 0.0
  %1711 = vmatprep.subr.mxu0 0.0
  %1712 = vmatpush2.msra.mxu0 0.0
  %1713 = vmatprep.subr.mxu0 0.0
  %1714 = vmatpush2.msra.mxu0 0.0
  %1715 = vmatprep.subr.mxu0 0.0
  %1716 = vmatpush2.msra.mxu0 0.0
  %1717 = vmatprep.subr.mxu0 0.0
  %1718 = vmatpush2.msra.mxu0 0.0
  %1719 = vmatprep.subr.mxu0 0.0
  %1720 = vmatpush2.msra.mxu0 0.0
  %1721 = vmatprep.subr.mxu0 0.0
  %1722 = vmatpush2.msra.mxu0 0.0
  %1723 = vmatprep.subr.mxu0 0.0
  %1724 = vmatpush2.msra.mxu0 0.0
  %1725 = vmatprep.subr.mxu0 0.0
  %1726 = vmatpush2.msra.mxu0 0.0
  %1727 = vmatprep.subr.mxu0 0.0
  %1728 = vmatpush2.msra.mxu0 0.0
  %1729 = vmatprep.subr.mxu0 0.0
  %1730 = vmatpush2.msra.mxu0 0.0
  %1731 = vmatprep.subr.mxu0 0.0
  %1732 = vmatpush2.msra.mxu0 0.0
  %1733 = vmatprep.mubr.f32.mxu0 0.0
  %1734 = vmatmul.mubr.f32.gmra.mxu0 %v1301
  %v1735 = vpop.f32.mrf.mxu0
  %v1736 = vadd.f32 %v247, %v1735
  %v1737 = vpop.f32.mrf.mxu0
  %1738 = vdwg.mxu0
  %v1739 = vadd.f32 %v1666, %v1736
  %v1740 = vxor.u32 %v1739, 2147483648
  %v1741 = vmul.f32 %v1740, 1.442695
  %v1742 = vpow.pop %v1741
  %v1743 = vadd.f32 %v1742, 1.0
  %v1744 = vrcp.pop %v1743
  %v1745 = vmul.f32 1.0, %v1744
  %1747 = vrot.lane.b32.xlu0 %v1736, 64
  %v1748 = vpop.permute.xlu0 %1747
  %v1750 = vmul.f32 %v1745, %v1748
  %1752 = vrot.lane.b32.xlu0 %v1750, 64
  %v1753 = vpop.permute.xlu0 %1752
  %v1755 = vadd.f32 %v1666, %v1753
  %v1756 = vtanh.pop %v1755
  %v1757 = vsub.f32 1.0, %v1745
  %1759 = vrot.lane.b32.xlu0 %v1756, 96
  %v1760 = vpop.permute.xlu0 %1759
  %v1762 = vmul.f32 %v1757, %v1760
  %v1763 = vmul.f32 %v1745, %v1295
  %v1764 = vadd.f32 %v1762, %v1763
  %s1765 = scalar_lea.vmem %s2, 24
  %v1766 = vld [vmem:[%s1765] sm:$0xff]
  %1768 = vrot.lane.b32.xlu0 %v1764, 96
  %v1769 = vpop.permute.xlu0 %1768
  %v1770 = vsel %vm89, %v1769, 0
  %1772 = vmatprep.subr.mxu0 0.0
  %1773 = vmatpush1.msra.mxu0 0.0
  %1774 = vmatprep.subr.mxu0 0.0
  %1775 = vmatpush1.msra.mxu0 0.0
  %1776 = vmatprep.subr.mxu0 0.0
  %1777 = vmatpush1.msra.mxu0 0.0
  %1778 = vmatprep.subr.mxu0 0.0
  %1779 = vmatpush1.msra.mxu0 0.0
  %1780 = vmatprep.subr.mxu0 0.0
  %1781 = vmatpush1.msra.mxu0 0.0
  %1782 = vmatprep.subr.mxu0 0.0
  %1783 = vmatpush1.msra.mxu0 0.0
  %1784 = vmatprep.subr.mxu0 0.0
  %1785 = vmatpush1.msra.mxu0 0.0
  %1786 = vmatprep.subr.mxu0 0.0
  %1787 = vmatpush1.msra.mxu0 0.0
  %1788 = vmatprep.subr.mxu0 0.0
  %1789 = vmatpush1.msra.mxu0 0.0
  %1790 = vmatprep.subr.mxu0 0.0
  %1791 = vmatpush1.msra.mxu0 0.0
  %1792 = vmatprep.subr.mxu0 0.0
  %1793 = vmatpush1.msra.mxu0 0.0
  %1794 = vmatprep.subr.mxu0 0.0
  %1795 = vmatpush1.msra.mxu0 0.0
  %1796 = vmatprep.subr.mxu0 0.0
  %1797 = vmatpush1.msra.mxu0 %v67
  %1798 = vmatprep.subr.mxu0 0.0
  %1799 = vmatpush1.msra.mxu0 %v66
  %1800 = vmatprep.subr.mxu0 0.0
  %1801 = vmatpush1.msra.mxu0 %v65
  %1802 = vmatprep.subr.mxu0 0.0
  %1803 = vmatpush1.msra.mxu0 %v64
  %1804 = vmatprep.subr.mxu0 0.0
  %1805 = vmatpush2.msra.mxu0 0.0
  %1806 = vmatprep.subr.mxu0 0.0
  %1807 = vmatpush2.msra.mxu0 0.0
  %1808 = vmatprep.subr.mxu0 0.0
  %1809 = vmatpush2.msra.mxu0 0.0
  %1810 = vmatprep.subr.mxu0 0.0
  %1811 = vmatpush2.msra.mxu0 0.0
  %1812 = vmatprep.subr.mxu0 0.0
  %1813 = vmatpush2.msra.mxu0 0.0
  %1814 = vmatprep.subr.mxu0 0.0
  %1815 = vmatpush2.msra.mxu0 0.0
  %1816 = vmatprep.subr.mxu0 0.0
  %1817 = vmatpush2.msra.mxu0 0.0
  %1818 = vmatprep.subr.mxu0 0.0
  %1819 = vmatpush2.msra.mxu0 0.0
  %1820 = vmatprep.subr.mxu0 0.0
  %1821 = vmatpush2.msra.mxu0 0.0
  %1822 = vmatprep.subr.mxu0 0.0
  %1823 = vmatpush2.msra.mxu0 0.0
  %1824 = vmatprep.subr.mxu0 0.0
  %1825 = vmatpush2.msra.mxu0 0.0
  %1826 = vmatprep.subr.mxu0 0.0
  %1827 = vmatpush2.msra.mxu0 0.0
  %1828 = vmatprep.subr.mxu0 0.0
  %1829 = vmatpush2.msra.mxu0 0.0
  %1830 = vmatprep.subr.mxu0 0.0
  %1831 = vmatpush2.msra.mxu0 0.0
  %1832 = vmatprep.subr.mxu0 0.0
  %1833 = vmatpush2.msra.mxu0 0.0
  %1834 = vmatprep.subr.mxu0 0.0
  %1835 = vmatpush2.msra.mxu0 0.0
  %1836 = vmatprep.mubr.f32.mxu0 0.0
  %1837 = vmatmul.mubr.f32.gmra.mxu0 %v1770
  %v1838 = vpop.f32.mrf.mxu0
  %v1839 = vadd.f32 %v1766, %v1838
  %v1840 = vpop.f32.mrf.mxu0
  %1841 = vdwg.mxu0
  %v1842 = vmax.f32 %v1839, 0.0
  %v1844 = vsel %vm434, %v1842, 0
  %1846 = vmatprep.subr.mxu0 0.0
  %1847 = vmatpush1.msra.mxu0 0.0
  %1848 = vmatprep.subr.mxu0 0.0
  %1849 = vmatpush1.msra.mxu0 0.0
  %1850 = vmatprep.subr.mxu0 0.0
  %1851 = vmatpush1.msra.mxu0 0.0
  %1852 = vmatprep.subr.mxu0 0.0
  %1853 = vmatpush1.msra.mxu0 0.0
  %1854 = vmatprep.subr.mxu0 0.0
  %1855 = vmatpush1.msra.mxu0 0.0
  %1856 = vmatprep.subr.mxu0 0.0
  %1857 = vmatpush1.msra.mxu0 0.0
  %1858 = vmatprep.subr.mxu0 0.0
  %1859 = vmatpush1.msra.mxu0 0.0
  %1860 = vmatprep.subr.mxu0 0.0
  %1861 = vmatpush1.msra.mxu0 0.0
  %1862 = vmatprep.subr.mxu0 0.0
  %1863 = vmatpush1.msra.mxu0 %v75
  %1864 = vmatprep.subr.mxu0 0.0
  %1865 = vmatpush1.msra.mxu0 %v74
  %1866 = vmatprep.subr.mxu0 0.0
  %1867 = vmatpush1.msra.mxu0 %v73
  %1868 = vmatprep.subr.mxu0 0.0
  %1869 = vmatpush1.msra.mxu0 %v72
  %1870 = vmatprep.subr.mxu0 0.0
  %1871 = vmatpush1.msra.mxu0 %v71
  %1872 = vmatprep.subr.mxu0 0.0
  %1873 = vmatpush1.msra.mxu0 %v70
  %1874 = vmatprep.subr.mxu0 0.0
  %1875 = vmatpush1.msra.mxu0 %v69
  %1876 = vmatprep.subr.mxu0 0.0
  %1877 = vmatpush1.msra.mxu0 %v68
  %1878 = vmatprep.subr.mxu0 0.0
  %1879 = vmatpush2.msra.mxu0 0.0
  %1880 = vmatprep.subr.mxu0 0.0
  %1881 = vmatpush2.msra.mxu0 0.0
  %1882 = vmatprep.subr.mxu0 0.0
  %1883 = vmatpush2.msra.mxu0 0.0
  %1884 = vmatprep.subr.mxu0 0.0
  %1885 = vmatpush2.msra.mxu0 0.0
  %1886 = vmatprep.subr.mxu0 0.0
  %1887 = vmatpush2.msra.mxu0 0.0
  %1888 = vmatprep.subr.mxu0 0.0
  %1889 = vmatpush2.msra.mxu0 0.0
  %1890 = vmatprep.subr.mxu0 0.0
  %1891 = vmatpush2.msra.mxu0 0.0
  %1892 = vmatprep.subr.mxu0 0.0
  %1893 = vmatpush2.msra.mxu0 0.0
  %1894 = vmatprep.subr.mxu0 0.0
  %1895 = vmatpush2.msra.mxu0 0.0
  %1896 = vmatprep.subr.mxu0 0.0
  %1897 = vmatpush2.msra.mxu0 0.0
  %1898 = vmatprep.subr.mxu0 0.0
  %1899 = vmatpush2.msra.mxu0 0.0
  %1900 = vmatprep.subr.mxu0 0.0
  %1901 = vmatpush2.msra.mxu0 0.0
  %1902 = vmatprep.subr.mxu0 0.0
  %1903 = vmatpush2.msra.mxu0 0.0
  %1904 = vmatprep.subr.mxu0 0.0
  %1905 = vmatpush2.msra.mxu0 0.0
  %1906 = vmatprep.subr.mxu0 0.0
  %1907 = vmatpush2.msra.mxu0 0.0
  %1908 = vmatprep.subr.mxu0 0.0
  %1909 = vmatpush2.msra.mxu0 0.0
  %1910 = vmatprep.mubr.f32.mxu0 0.0
  %1911 = vmatmul.mubr.f32.gmra.mxu0 %v1844
  %v1912 = vpop.f32.mrf.mxu0
  %v1913 = vadd.f32 %v432, %v1912
  %v1914 = vpop.f32.mrf.mxu0
  %1915 = vdwg.mxu0
  %v1916 = vmax.f32 %v1913, 0.0
  %vm1917 = vcmp.ne.f32.partialorder %v1913, %v1913
  %v1918 = vadd.f32 %v1913, 0.0
  %v1919 = vand.u32 2147483647, %v1913
  %v1920 = vsub.f32 0.0, %v1919
  %v1921 = vmul.f32 %v1920, 1.442695
  %v1922 = vpow.pop %v1921
  %v1923 = vadd.f32 %v1922, 1.0
  %v1924 = vlog2.pop %v1923
  %v1925 = vmul.f32 %v1924, 0.6931472
  %v1926 = vmul.f32 -0.5, %v1922
  %v1927 = vadd.f32 %v1926, 1.0
  %v1928 = vmul.f32 %v1927, %v1922
  %v1929 = vand.u32 2147483647, %v1922
  %vm1930 = vcmp.lt.f32.partialorder %v1929, 0.0004427343
  %v1931 = vsel %vm1930, %v1928, %v1925
  %v1932 = vadd.f32 %v1916, %v1931
  %v1933 = vsel %vm1917, %v1918, %v1932
  %v1934 = vadd.f32 %v1933, 0.1
  %s1935 = scalar_lea.vmem %s3, 24
  %v1936 = vld [vmem:[%s1935] sm:$0xff]
  %1938 = vrot.lane.b32.xlu0 %v1936, 16
  %v1939 = vpop.permute.xlu0 %1938
  %v1941 = vmul.f32 %v1934, %v1939
  %1943 = vrot.lane.b32.xlu0 %v1941, 112
  %v1944 = vpop.permute.xlu0 %1943
  %v1946 = vadd.f32 %v1913, %v1944
  %s1947 = scalar_lea.vmem %s4, 24
  %v1948 = vld [vmem:[%s1947] sm:$0xff]
  %1950 = vrot.lane.b32.xlu0 %v1948, 48
  %v1951 = vpop.permute.xlu0 %1950
  %v1953 = vmul.f32 %v1934, %v1951
  %1955 = vrot.lane.b32.xlu0 %v1953, 112
  %v1956 = vpop.permute.xlu0 %1955
  %v1958 = vadd.f32 %v1913, %v1956
  %1961 = vrot.lane.b32.xlu0 %v1913, 16
  %v1962 = vpop.permute.xlu0 %1961
  %1965 = vrot.lane.b32.xlu0 %v1934, 16
  %v1966 = vpop.permute.xlu0 %1965
  %1969 = vrot.lane.b32.xlu0 %v1946, 80
  %v1970 = vpop.permute.xlu0 %1969
  %1972 = vrot.lane.b32.xlu0 %v1913, 96
  %v1973 = vpop.permute.xlu0 %1972
  %1975 = vrot.lane.b32.xlu0 %v1934, 96
  %v1976 = vpop.permute.xlu0 %1975
  %v1978 = vsel %vm89, %v1769, %v1958
  %v1979 = vsel %vm569, %v1978, %v1962
  %v1980 = vsel %vm434, %v1979, %v1966
  %v1981 = vsel %vm572, %v1980, %v1970
  %v1982 = vsel %vm574, %v1981, %v1973
  %v1983 = vsel %vm576, %v1982, %v1976
  %s1984 = scalar_lea.vmem %s14, 24
  %1985 = vst [vmem:[%s1984] sm:$0xff] %v1983
  %1987 = vrot.lane.b32.xlu0 %v1958, 112
  %v1988 = vpop.permute.xlu0 %1987
  %v1990 = vsel %vm81, %v1946, %v1988
  %v1992 = vsel %vm89, %v1990, 0
  %1994 = vmatprep.subr.mxu0 0.0
  %1995 = vmatpush1.msra.mxu0 0.0
  %1996 = vmatprep.subr.mxu0 0.0
  %1997 = vmatpush1.msra.mxu0 0.0
  %1998 = vmatprep.subr.mxu0 0.0
  %1999 = vmatpush1.msra.mxu0 0.0
  %2000 = vmatprep.subr.mxu0 0.0
  %2001 = vmatpush1.msra.mxu0 0.0
  %2002 = vmatprep.subr.mxu0 0.0
  %2003 = vmatpush1.msra.mxu0 0.0
  %2004 = vmatprep.subr.mxu0 0.0
  %2005 = vmatpush1.msra.mxu0 0.0
  %2006 = vmatprep.subr.mxu0 0.0
  %2007 = vmatpush1.msra.mxu0 0.0
  %2008 = vmatprep.subr.mxu0 0.0
  %2009 = vmatpush1.msra.mxu0 0.0
  %2010 = vmatprep.subr.mxu0 0.0
  %2011 = vmatpush1.msra.mxu0 0.0
  %2012 = vmatprep.subr.mxu0 0.0
  %2013 = vmatpush1.msra.mxu0 0.0
  %2014 = vmatprep.subr.mxu0 0.0
  %2015 = vmatpush1.msra.mxu0 0.0
  %2016 = vmatprep.subr.mxu0 0.0
  %2017 = vmatpush1.msra.mxu0 0.0
  %2018 = vmatprep.subr.mxu0 0.0
  %2019 = vmatpush1.msra.mxu0 %v52
  %2020 = vmatprep.subr.mxu0 0.0
  %2021 = vmatpush1.msra.mxu0 %v51
  %2022 = vmatprep.subr.mxu0 0.0
  %2023 = vmatpush1.msra.mxu0 %v50
  %2024 = vmatprep.subr.mxu0 0.0
  %2025 = vmatpush1.msra.mxu0 %v49
  %2026 = vmatprep.subr.mxu0 0.0
  %2027 = vmatpush2.msra.mxu0 0.0
  %2028 = vmatprep.subr.mxu0 0.0
  %2029 = vmatpush2.msra.mxu0 0.0
  %2030 = vmatprep.subr.mxu0 0.0
  %2031 = vmatpush2.msra.mxu0 0.0
  %2032 = vmatprep.subr.mxu0 0.0
  %2033 = vmatpush2.msra.mxu0 0.0
  %2034 = vmatprep.subr.mxu0 0.0
  %2035 = vmatpush2.msra.mxu0 0.0
  %2036 = vmatprep.subr.mxu0 0.0
  %2037 = vmatpush2.msra.mxu0 0.0
  %2038 = vmatprep.subr.mxu0 0.0
  %2039 = vmatpush2.msra.mxu0 0.0
  %2040 = vmatprep.subr.mxu0 0.0
  %2041 = vmatpush2.msra.mxu0 0.0
  %2042 = vmatprep.subr.mxu0 0.0
  %2043 = vmatpush2.msra.mxu0 0.0
  %2044 = vmatprep.subr.mxu0 0.0
  %2045 = vmatpush2.msra.mxu0 0.0
  %2046 = vmatprep.subr.mxu0 0.0
  %2047 = vmatpush2.msra.mxu0 0.0
  %2048 = vmatprep.subr.mxu0 0.0
  %2049 = vmatpush2.msra.mxu0 0.0
  %2050 = vmatprep.subr.mxu0 0.0
  %2051 = vmatpush2.msra.mxu0 0.0
  %2052 = vmatprep.subr.mxu0 0.0
  %2053 = vmatpush2.msra.mxu0 0.0
  %2054 = vmatprep.subr.mxu0 0.0
  %2055 = vmatpush2.msra.mxu0 0.0
  %2056 = vmatprep.subr.mxu0 0.0
  %2057 = vmatpush2.msra.mxu0 0.0
  %2058 = vmatprep.mubr.f32.mxu0 0.0
  %2059 = vmatmul.mubr.f32.gmra.mxu0 %v1992
  %v2060 = vpop.f32.mrf.mxu0
  %v2061 = vadd.f32 %v87, %v2060
  %v2062 = vpop.f32.mrf.mxu0
  %2063 = vdwg.mxu0
  %v2064 = vmax.f32 %v2061, 0.0
  %v2066 = vsel %vm89, %v2064, 0
  %2068 = vmatprep.subr.mxu0 0.0
  %2069 = vmatpush1.msra.mxu0 0.0
  %2070 = vmatprep.subr.mxu0 0.0
  %2071 = vmatpush1.msra.mxu0 0.0
  %2072 = vmatprep.subr.mxu0 0.0
  %2073 = vmatpush1.msra.mxu0 0.0
  %2074 = vmatprep.subr.mxu0 0.0
  %2075 = vmatpush1.msra.mxu0 0.0
  %2076 = vmatprep.subr.mxu0 0.0
  %2077 = vmatpush1.msra.mxu0 0.0
  %2078 = vmatprep.subr.mxu0 0.0
  %2079 = vmatpush1.msra.mxu0 0.0
  %2080 = vmatprep.subr.mxu0 0.0
  %2081 = vmatpush1.msra.mxu0 0.0
  %2082 = vmatprep.subr.mxu0 0.0
  %2083 = vmatpush1.msra.mxu0 0.0
  %2084 = vmatprep.subr.mxu0 0.0
  %2085 = vmatpush1.msra.mxu0 0.0
  %2086 = vmatprep.subr.mxu0 0.0
  %2087 = vmatpush1.msra.mxu0 0.0
  %2088 = vmatprep.subr.mxu0 0.0
  %2089 = vmatpush1.msra.mxu0 0.0
  %2090 = vmatprep.subr.mxu0 0.0
  %2091 = vmatpush1.msra.mxu0 0.0
  %2092 = vmatprep.subr.mxu0 0.0
  %2093 = vmatpush1.msra.mxu0 %v57
  %2094 = vmatprep.subr.mxu0 0.0
  %2095 = vmatpush1.msra.mxu0 %v56
  %2096 = vmatprep.subr.mxu0 0.0
  %2097 = vmatpush1.msra.mxu0 %v55
  %2098 = vmatprep.subr.mxu0 0.0
  %2099 = vmatpush1.msra.mxu0 %v54
  %2100 = vmatprep.subr.mxu0 0.0
  %2101 = vmatpush2.msra.mxu0 0.0
  %2102 = vmatprep.subr.mxu0 0.0
  %2103 = vmatpush2.msra.mxu0 0.0
  %2104 = vmatprep.subr.mxu0 0.0
  %2105 = vmatpush2.msra.mxu0 0.0
  %2106 = vmatprep.subr.mxu0 0.0
  %2107 = vmatpush2.msra.mxu0 0.0
  %2108 = vmatprep.subr.mxu0 0.0
  %2109 = vmatpush2.msra.mxu0 0.0
  %2110 = vmatprep.subr.mxu0 0.0
  %2111 = vmatpush2.msra.mxu0 0.0
  %2112 = vmatprep.subr.mxu0 0.0
  %2113 = vmatpush2.msra.mxu0 0.0
  %2114 = vmatprep.subr.mxu0 0.0
  %2115 = vmatpush2.msra.mxu0 0.0
  %2116 = vmatprep.subr.mxu0 0.0
  %2117 = vmatpush2.msra.mxu0 0.0
  %2118 = vmatprep.subr.mxu0 0.0
  %2119 = vmatpush2.msra.mxu0 0.0
  %2120 = vmatprep.subr.mxu0 0.0
  %2121 = vmatpush2.msra.mxu0 0.0
  %2122 = vmatprep.subr.mxu0 0.0
  %2123 = vmatpush2.msra.mxu0 0.0
  %2124 = vmatprep.subr.mxu0 0.0
  %2125 = vmatpush2.msra.mxu0 0.0
  %2126 = vmatprep.subr.mxu0 0.0
  %2127 = vmatpush2.msra.mxu0 0.0
  %2128 = vmatprep.subr.mxu0 0.0
  %2129 = vmatpush2.msra.mxu0 0.0
  %2130 = vmatprep.subr.mxu0 0.0
  %2131 = vmatpush2.msra.mxu0 0.0
  %2132 = vmatprep.mubr.f32.mxu0 0.0
  %2133 = vmatmul.mubr.f32.gmra.mxu0 %v2066
  %v2134 = vpop.f32.mrf.mxu0
  %v2135 = vadd.f32 %v168, %v2134
  %v2136 = vpop.f32.mrf.mxu0
  %2137 = vdwg.mxu0
  %2138 = vmatprep.subr.mxu0 0.0
  %2139 = vmatpush1.msra.mxu0 0.0
  %2140 = vmatprep.subr.mxu0 0.0
  %2141 = vmatpush1.msra.mxu0 0.0
  %2142 = vmatprep.subr.mxu0 0.0
  %2143 = vmatpush1.msra.mxu0 0.0
  %2144 = vmatprep.subr.mxu0 0.0
  %2145 = vmatpush1.msra.mxu0 0.0
  %2146 = vmatprep.subr.mxu0 0.0
  %2147 = vmatpush1.msra.mxu0 0.0
  %2148 = vmatprep.subr.mxu0 0.0
  %2149 = vmatpush1.msra.mxu0 0.0
  %2150 = vmatprep.subr.mxu0 0.0
  %2151 = vmatpush1.msra.mxu0 0.0
  %2152 = vmatprep.subr.mxu0 0.0
  %2153 = vmatpush1.msra.mxu0 0.0
  %2154 = vmatprep.subr.mxu0 0.0
  %2155 = vmatpush1.msra.mxu0 0.0
  %2156 = vmatprep.subr.mxu0 0.0
  %2157 = vmatpush1.msra.mxu0 0.0
  %2158 = vmatprep.subr.mxu0 0.0
  %2159 = vmatpush1.msra.mxu0 0.0
  %2160 = vmatprep.subr.mxu0 0.0
  %2161 = vmatpush1.msra.mxu0 0.0
  %2162 = vmatprep.subr.mxu0 0.0
  %2163 = vmatpush1.msra.mxu0 %v62
  %2164 = vmatprep.subr.mxu0 0.0
  %2165 = vmatpush1.msra.mxu0 %v61
  %2166 = vmatprep.subr.mxu0 0.0
  %2167 = vmatpush1.msra.mxu0 %v60
  %2168 = vmatprep.subr.mxu0 0.0
  %2169 = vmatpush1.msra.mxu0 %v59
  %2170 = vmatprep.subr.mxu0 0.0
  %2171 = vmatpush2.msra.mxu0 0.0
  %2172 = vmatprep.subr.mxu0 0.0
  %2173 = vmatpush2.msra.mxu0 0.0
  %2174 = vmatprep.subr.mxu0 0.0
  %2175 = vmatpush2.msra.mxu0 0.0
  %2176 = vmatprep.subr.mxu0 0.0
  %2177 = vmatpush2.msra.mxu0 0.0
  %2178 = vmatprep.subr.mxu0 0.0
  %2179 = vmatpush2.msra.mxu0 0.0
  %2180 = vmatprep.subr.mxu0 0.0
  %2181 = vmatpush2.msra.mxu0 0.0
  %2182 = vmatprep.subr.mxu0 0.0
  %2183 = vmatpush2.msra.mxu0 0.0
  %2184 = vmatprep.subr.mxu0 0.0
  %2185 = vmatpush2.msra.mxu0 0.0
  %2186 = vmatprep.subr.mxu0 0.0
  %2187 = vmatpush2.msra.mxu0 0.0
  %2188 = vmatprep.subr.mxu0 0.0
  %2189 = vmatpush2.msra.mxu0 0.0
  %2190 = vmatprep.subr.mxu0 0.0
  %2191 = vmatpush2.msra.mxu0 0.0
  %2192 = vmatprep.subr.mxu0 0.0
  %2193 = vmatpush2.msra.mxu0 0.0
  %2194 = vmatprep.subr.mxu0 0.0
  %2195 = vmatpush2.msra.mxu0 0.0
  %2196 = vmatprep.subr.mxu0 0.0
  %2197 = vmatpush2.msra.mxu0 0.0
  %2198 = vmatprep.subr.mxu0 0.0
  %2199 = vmatpush2.msra.mxu0 0.0
  %2200 = vmatprep.subr.mxu0 0.0
  %2201 = vmatpush2.msra.mxu0 0.0
  %2202 = vmatprep.mubr.f32.mxu0 0.0
  %2203 = vmatmul.mubr.f32.gmra.mxu0 %v1770
  %v2204 = vpop.f32.mrf.mxu0
  %v2205 = vadd.f32 %v247, %v2204
  %v2206 = vpop.f32.mrf.mxu0
  %2207 = vdwg.mxu0
  %v2208 = vadd.f32 %v2135, %v2205
  %v2209 = vxor.u32 %v2208, 2147483648
  %v2210 = vmul.f32 %v2209, 1.442695
  %v2211 = vpow.pop %v2210
  %v2212 = vadd.f32 %v2211, 1.0
  %v2213 = vrcp.pop %v2212
  %v2214 = vmul.f32 1.0, %v2213
  %2216 = vrot.lane.b32.xlu0 %v2205, 64
  %v2217 = vpop.permute.xlu0 %2216
  %v2219 = vmul.f32 %v2214, %v2217
  %2221 = vrot.lane.b32.xlu0 %v2219, 64
  %v2222 = vpop.permute.xlu0 %2221
  %v2224 = vadd.f32 %v2135, %v2222
  %v2225 = vtanh.pop %v2224
  %v2226 = vsub.f32 1.0, %v2214
  %2228 = vrot.lane.b32.xlu0 %v2225, 96
  %v2229 = vpop.permute.xlu0 %2228
  %v2231 = vmul.f32 %v2226, %v2229
  %v2232 = vmul.f32 %v2214, %v1764
  %v2233 = vadd.f32 %v2231, %v2232
  %s2234 = scalar_lea.vmem %s2, 32
  %v2235 = vld [vmem:[%s2234] sm:$0xff]
  %2237 = vrot.lane.b32.xlu0 %v2233, 96
  %v2238 = vpop.permute.xlu0 %2237
  %v2239 = vsel %vm89, %v2238, 0
  %2241 = vmatprep.subr.mxu0 0.0
  %2242 = vmatpush1.msra.mxu0 0.0
  %2243 = vmatprep.subr.mxu0 0.0
  %2244 = vmatpush1.msra.mxu0 0.0
  %2245 = vmatprep.subr.mxu0 0.0
  %2246 = vmatpush1.msra.mxu0 0.0
  %2247 = vmatprep.subr.mxu0 0.0
  %2248 = vmatpush1.msra.mxu0 0.0
  %2249 = vmatprep.subr.mxu0 0.0
  %2250 = vmatpush1.msra.mxu0 0.0
  %2251 = vmatprep.subr.mxu0 0.0
  %2252 = vmatpush1.msra.mxu0 0.0
  %2253 = vmatprep.subr.mxu0 0.0
  %2254 = vmatpush1.msra.mxu0 0.0
  %2255 = vmatprep.subr.mxu0 0.0
  %2256 = vmatpush1.msra.mxu0 0.0
  %2257 = vmatprep.subr.mxu0 0.0
  %2258 = vmatpush1.msra.mxu0 0.0
  %2259 = vmatprep.subr.mxu0 0.0
  %2260 = vmatpush1.msra.mxu0 0.0
  %2261 = vmatprep.subr.mxu0 0.0
  %2262 = vmatpush1.msra.mxu0 0.0
  %2263 = vmatprep.subr.mxu0 0.0
  %2264 = vmatpush1.msra.mxu0 0.0
  %2265 = vmatprep.subr.mxu0 0.0
  %2266 = vmatpush1.msra.mxu0 %v67
  %2267 = vmatprep.subr.mxu0 0.0
  %2268 = vmatpush1.msra.mxu0 %v66
  %2269 = vmatprep.subr.mxu0 0.0
  %2270 = vmatpush1.msra.mxu0 %v65
  %2271 = vmatprep.subr.mxu0 0.0
  %2272 = vmatpush1.msra.mxu0 %v64
  %2273 = vmatprep.subr.mxu0 0.0
  %2274 = vmatpush2.msra.mxu0 0.0
  %2275 = vmatprep.subr.mxu0 0.0
  %2276 = vmatpush2.msra.mxu0 0.0
  %2277 = vmatprep.subr.mxu0 0.0
  %2278 = vmatpush2.msra.mxu0 0.0
  %2279 = vmatprep.subr.mxu0 0.0
  %2280 = vmatpush2.msra.mxu0 0.0
  %2281 = vmatprep.subr.mxu0 0.0
  %2282 = vmatpush2.msra.mxu0 0.0
  %2283 = vmatprep.subr.mxu0 0.0
  %2284 = vmatpush2.msra.mxu0 0.0
  %2285 = vmatprep.subr.mxu0 0.0
  %2286 = vmatpush2.msra.mxu0 0.0
  %2287 = vmatprep.subr.mxu0 0.0
  %2288 = vmatpush2.msra.mxu0 0.0
  %2289 = vmatprep.subr.mxu0 0.0
  %2290 = vmatpush2.msra.mxu0 0.0
  %2291 = vmatprep.subr.mxu0 0.0
  %2292 = vmatpush2.msra.mxu0 0.0
  %2293 = vmatprep.subr.mxu0 0.0
  %2294 = vmatpush2.msra.mxu0 0.0
  %2295 = vmatprep.subr.mxu0 0.0
  %2296 = vmatpush2.msra.mxu0 0.0
  %2297 = vmatprep.subr.mxu0 0.0
  %2298 = vmatpush2.msra.mxu0 0.0
  %2299 = vmatprep.subr.mxu0 0.0
  %2300 = vmatpush2.msra.mxu0 0.0
  %2301 = vmatprep.subr.mxu0 0.0
  %2302 = vmatpush2.msra.mxu0 0.0
  %2303 = vmatprep.subr.mxu0 0.0
  %2304 = vmatpush2.msra.mxu0 0.0
  %2305 = vmatprep.mubr.f32.mxu0 0.0
  %2306 = vmatmul.mubr.f32.gmra.mxu0 %v2239
  %v2307 = vpop.f32.mrf.mxu0
  %v2308 = vadd.f32 %v2235, %v2307
  %v2309 = vpop.f32.mrf.mxu0
  %2310 = vdwg.mxu0
  %v2311 = vmax.f32 %v2308, 0.0
  %v2313 = vsel %vm434, %v2311, 0
  %2315 = vmatprep.subr.mxu0 0.0
  %2316 = vmatpush1.msra.mxu0 0.0
  %2317 = vmatprep.subr.mxu0 0.0
  %2318 = vmatpush1.msra.mxu0 0.0
  %2319 = vmatprep.subr.mxu0 0.0
  %2320 = vmatpush1.msra.mxu0 0.0
  %2321 = vmatprep.subr.mxu0 0.0
  %2322 = vmatpush1.msra.mxu0 0.0
  %2323 = vmatprep.subr.mxu0 0.0
  %2324 = vmatpush1.msra.mxu0 0.0
  %2325 = vmatprep.subr.mxu0 0.0
  %2326 = vmatpush1.msra.mxu0 0.0
  %2327 = vmatprep.subr.mxu0 0.0
  %2328 = vmatpush1.msra.mxu0 0.0
  %2329 = vmatprep.subr.mxu0 0.0
  %2330 = vmatpush1.msra.mxu0 0.0
  %2331 = vmatprep.subr.mxu0 0.0
  %2332 = vmatpush1.msra.mxu0 %v75
  %2333 = vmatprep.subr.mxu0 0.0
  %2334 = vmatpush1.msra.mxu0 %v74
  %2335 = vmatprep.subr.mxu0 0.0
  %2336 = vmatpush1.msra.mxu0 %v73
  %2337 = vmatprep.subr.mxu0 0.0
  %2338 = vmatpush1.msra.mxu0 %v72
  %2339 = vmatprep.subr.mxu0 0.0
  %2340 = vmatpush1.msra.mxu0 %v71
  %2341 = vmatprep.subr.mxu0 0.0
  %2342 = vmatpush1.msra.mxu0 %v70
  %2343 = vmatprep.subr.mxu0 0.0
  %2344 = vmatpush1.msra.mxu0 %v69
  %2345 = vmatprep.subr.mxu0 0.0
  %2346 = vmatpush1.msra.mxu0 %v68
  %2347 = vmatprep.subr.mxu0 0.0
  %2348 = vmatpush2.msra.mxu0 0.0
  %2349 = vmatprep.subr.mxu0 0.0
  %2350 = vmatpush2.msra.mxu0 0.0
  %2351 = vmatprep.subr.mxu0 0.0
  %2352 = vmatpush2.msra.mxu0 0.0
  %2353 = vmatprep.subr.mxu0 0.0
  %2354 = vmatpush2.msra.mxu0 0.0
  %2355 = vmatprep.subr.mxu0 0.0
  %2356 = vmatpush2.msra.mxu0 0.0
  %2357 = vmatprep.subr.mxu0 0.0
  %2358 = vmatpush2.msra.mxu0 0.0
  %2359 = vmatprep.subr.mxu0 0.0
  %2360 = vmatpush2.msra.mxu0 0.0
  %2361 = vmatprep.subr.mxu0 0.0
  %2362 = vmatpush2.msra.mxu0 0.0
  %2363 = vmatprep.subr.mxu0 0.0
  %2364 = vmatpush2.msra.mxu0 0.0
  %2365 = vmatprep.subr.mxu0 0.0
  %2366 = vmatpush2.msra.mxu0 0.0
  %2367 = vmatprep.subr.mxu0 0.0
  %2368 = vmatpush2.msra.mxu0 0.0
  %2369 = vmatprep.subr.mxu0 0.0
  %2370 = vmatpush2.msra.mxu0 0.0
  %2371 = vmatprep.subr.mxu0 0.0
  %2372 = vmatpush2.msra.mxu0 0.0
  %2373 = vmatprep.subr.mxu0 0.0
  %2374 = vmatpush2.msra.mxu0 0.0
  %2375 = vmatprep.subr.mxu0 0.0
  %2376 = vmatpush2.msra.mxu0 0.0
  %2377 = vmatprep.subr.mxu0 0.0
  %2378 = vmatpush2.msra.mxu0 0.0
  %2379 = vmatprep.mubr.f32.mxu0 0.0
  %2380 = vmatmul.mubr.f32.gmra.mxu0 %v2313
  %v2381 = vpop.f32.mrf.mxu0
  %v2382 = vadd.f32 %v432, %v2381
  %v2383 = vpop.f32.mrf.mxu0
  %2384 = vdwg.mxu0
  %v2385 = vmax.f32 %v2382, 0.0
  %vm2386 = vcmp.ne.f32.partialorder %v2382, %v2382
  %v2387 = vadd.f32 %v2382, 0.0
  %v2388 = vand.u32 2147483647, %v2382
  %v2389 = vsub.f32 0.0, %v2388
  %v2390 = vmul.f32 %v2389, 1.442695
  %v2391 = vpow.pop %v2390
  %v2392 = vadd.f32 %v2391, 1.0
  %v2393 = vlog2.pop %v2392
  %v2394 = vmul.f32 %v2393, 0.6931472
  %v2395 = vmul.f32 -0.5, %v2391
  %v2396 = vadd.f32 %v2395, 1.0
  %v2397 = vmul.f32 %v2396, %v2391
  %v2398 = vand.u32 2147483647, %v2391
  %vm2399 = vcmp.lt.f32.partialorder %v2398, 0.0004427343
  %v2400 = vsel %vm2399, %v2397, %v2394
  %v2401 = vadd.f32 %v2385, %v2400
  %v2402 = vsel %vm2386, %v2387, %v2401
  %v2403 = vadd.f32 %v2402, 0.1
  %s2404 = scalar_lea.vmem %s3, 32
  %v2405 = vld [vmem:[%s2404] sm:$0xff]
  %2407 = vrot.lane.b32.xlu0 %v2405, 16
  %v2408 = vpop.permute.xlu0 %2407
  %v2410 = vmul.f32 %v2403, %v2408
  %2412 = vrot.lane.b32.xlu0 %v2410, 112
  %v2413 = vpop.permute.xlu0 %2412
  %v2415 = vadd.f32 %v2382, %v2413
  %s2416 = scalar_lea.vmem %s4, 32
  %v2417 = vld [vmem:[%s2416] sm:$0xff]
  %2419 = vrot.lane.b32.xlu0 %v2417, 48
  %v2420 = vpop.permute.xlu0 %2419
  %v2422 = vmul.f32 %v2403, %v2420
  %2424 = vrot.lane.b32.xlu0 %v2422, 112
  %v2425 = vpop.permute.xlu0 %2424
  %v2427 = vadd.f32 %v2382, %v2425
  %2430 = vrot.lane.b32.xlu0 %v2382, 16
  %v2431 = vpop.permute.xlu0 %2430
  %2434 = vrot.lane.b32.xlu0 %v2403, 16
  %v2435 = vpop.permute.xlu0 %2434
  %2438 = vrot.lane.b32.xlu0 %v2415, 80
  %v2439 = vpop.permute.xlu0 %2438
  %2441 = vrot.lane.b32.xlu0 %v2382, 96
  %v2442 = vpop.permute.xlu0 %2441
  %2444 = vrot.lane.b32.xlu0 %v2403, 96
  %v2445 = vpop.permute.xlu0 %2444
  %v2447 = vsel %vm89, %v2238, %v2427
  %v2448 = vsel %vm569, %v2447, %v2431
  %v2449 = vsel %vm434, %v2448, %v2435
  %v2450 = vsel %vm572, %v2449, %v2439
  %v2451 = vsel %vm574, %v2450, %v2442
  %v2452 = vsel %vm576, %v2451, %v2445
  %s2453 = scalar_lea.vmem %s14, 32
  %2454 = vst [vmem:[%s2453] sm:$0xff] %v2452
  %2456 = vrot.lane.b32.xlu0 %v2427, 112
  %v2457 = vpop.permute.xlu0 %2456
  %v2459 = vsel %vm81, %v2415, %v2457
  %v2461 = vsel %vm89, %v2459, 0
  %2463 = vmatprep.subr.mxu0 0.0
  %2464 = vmatpush1.msra.mxu0 0.0
  %2465 = vmatprep.subr.mxu0 0.0
  %2466 = vmatpush1.msra.mxu0 0.0
  %2467 = vmatprep.subr.mxu0 0.0
  %2468 = vmatpush1.msra.mxu0 0.0
  %2469 = vmatprep.subr.mxu0 0.0
  %2470 = vmatpush1.msra.mxu0 0.0
  %2471 = vmatprep.subr.mxu0 0.0
  %2472 = vmatpush1.msra.mxu0 0.0
  %2473 = vmatprep.subr.mxu0 0.0
  %2474 = vmatpush1.msra.mxu0 0.0
  %2475 = vmatprep.subr.mxu0 0.0
  %2476 = vmatpush1.msra.mxu0 0.0
  %2477 = vmatprep.subr.mxu0 0.0
  %2478 = vmatpush1.msra.mxu0 0.0
  %2479 = vmatprep.subr.mxu0 0.0
  %2480 = vmatpush1.msra.mxu0 0.0
  %2481 = vmatprep.subr.mxu0 0.0
  %2482 = vmatpush1.msra.mxu0 0.0
  %2483 = vmatprep.subr.mxu0 0.0
  %2484 = vmatpush1.msra.mxu0 0.0
  %2485 = vmatprep.subr.mxu0 0.0
  %2486 = vmatpush1.msra.mxu0 0.0
  %2487 = vmatprep.subr.mxu0 0.0
  %2488 = vmatpush1.msra.mxu0 %v52
  %2489 = vmatprep.subr.mxu0 0.0
  %2490 = vmatpush1.msra.mxu0 %v51
  %2491 = vmatprep.subr.mxu0 0.0
  %2492 = vmatpush1.msra.mxu0 %v50
  %2493 = vmatprep.subr.mxu0 0.0
  %2494 = vmatpush1.msra.mxu0 %v49
  %2495 = vmatprep.subr.mxu0 0.0
  %2496 = vmatpush2.msra.mxu0 0.0
  %2497 = vmatprep.subr.mxu0 0.0
  %2498 = vmatpush2.msra.mxu0 0.0
  %2499 = vmatprep.subr.mxu0 0.0
  %2500 = vmatpush2.msra.mxu0 0.0
  %2501 = vmatprep.subr.mxu0 0.0
  %2502 = vmatpush2.msra.mxu0 0.0
  %2503 = vmatprep.subr.mxu0 0.0
  %2504 = vmatpush2.msra.mxu0 0.0
  %2505 = vmatprep.subr.mxu0 0.0
  %2506 = vmatpush2.msra.mxu0 0.0
  %2507 = vmatprep.subr.mxu0 0.0
  %2508 = vmatpush2.msra.mxu0 0.0
  %2509 = vmatprep.subr.mxu0 0.0
  %2510 = vmatpush2.msra.mxu0 0.0
  %2511 = vmatprep.subr.mxu0 0.0
  %2512 = vmatpush2.msra.mxu0 0.0
  %2513 = vmatprep.subr.mxu0 0.0
  %2514 = vmatpush2.msra.mxu0 0.0
  %2515 = vmatprep.subr.mxu0 0.0
  %2516 = vmatpush2.msra.mxu0 0.0
  %2517 = vmatprep.subr.mxu0 0.0
  %2518 = vmatpush2.msra.mxu0 0.0
  %2519 = vmatprep.subr.mxu0 0.0
  %2520 = vmatpush2.msra.mxu0 0.0
  %2521 = vmatprep.subr.mxu0 0.0
  %2522 = vmatpush2.msra.mxu0 0.0
  %2523 = vmatprep.subr.mxu0 0.0
  %2524 = vmatpush2.msra.mxu0 0.0
  %2525 = vmatprep.subr.mxu0 0.0
  %2526 = vmatpush2.msra.mxu0 0.0
  %2527 = vmatprep.mubr.f32.mxu0 0.0
  %2528 = vmatmul.mubr.f32.gmra.mxu0 %v2461
  %v2529 = vpop.f32.mrf.mxu0
  %v2530 = vadd.f32 %v87, %v2529
  %v2531 = vpop.f32.mrf.mxu0
  %2532 = vdwg.mxu0
  %v2533 = vmax.f32 %v2530, 0.0
  %v2535 = vsel %vm89, %v2533, 0
  %2537 = vmatprep.subr.mxu0 0.0
  %2538 = vmatpush1.msra.mxu0 0.0
  %2539 = vmatprep.subr.mxu0 0.0
  %2540 = vmatpush1.msra.mxu0 0.0
  %2541 = vmatprep.subr.mxu0 0.0
  %2542 = vmatpush1.msra.mxu0 0.0
  %2543 = vmatprep.subr.mxu0 0.0
  %2544 = vmatpush1.msra.mxu0 0.0
  %2545 = vmatprep.subr.mxu0 0.0
  %2546 = vmatpush1.msra.mxu0 0.0
  %2547 = vmatprep.subr.mxu0 0.0
  %2548 = vmatpush1.msra.mxu0 0.0
  %2549 = vmatprep.subr.mxu0 0.0
  %2550 = vmatpush1.msra.mxu0 0.0
  %2551 = vmatprep.subr.mxu0 0.0
  %2552 = vmatpush1.msra.mxu0 0.0
  %2553 = vmatprep.subr.mxu0 0.0
  %2554 = vmatpush1.msra.mxu0 0.0
  %2555 = vmatprep.subr.mxu0 0.0
  %2556 = vmatpush1.msra.mxu0 0.0
  %2557 = vmatprep.subr.mxu0 0.0
  %2558 = vmatpush1.msra.mxu0 0.0
  %2559 = vmatprep.subr.mxu0 0.0
  %2560 = vmatpush1.msra.mxu0 0.0
  %2561 = vmatprep.subr.mxu0 0.0
  %2562 = vmatpush1.msra.mxu0 %v57
  %2563 = vmatprep.subr.mxu0 0.0
  %2564 = vmatpush1.msra.mxu0 %v56
  %2565 = vmatprep.subr.mxu0 0.0
  %2566 = vmatpush1.msra.mxu0 %v55
  %2567 = vmatprep.subr.mxu0 0.0
  %2568 = vmatpush1.msra.mxu0 %v54
  %2569 = vmatprep.subr.mxu0 0.0
  %2570 = vmatpush2.msra.mxu0 0.0
  %2571 = vmatprep.subr.mxu0 0.0
  %2572 = vmatpush2.msra.mxu0 0.0
  %2573 = vmatprep.subr.mxu0 0.0
  %2574 = vmatpush2.msra.mxu0 0.0
  %2575 = vmatprep.subr.mxu0 0.0
  %2576 = vmatpush2.msra.mxu0 0.0
  %2577 = vmatprep.subr.mxu0 0.0
  %2578 = vmatpush2.msra.mxu0 0.0
  %2579 = vmatprep.subr.mxu0 0.0
  %2580 = vmatpush2.msra.mxu0 0.0
  %2581 = vmatprep.subr.mxu0 0.0
  %2582 = vmatpush2.msra.mxu0 0.0
  %2583 = vmatprep.subr.mxu0 0.0
  %2584 = vmatpush2.msra.mxu0 0.0
  %2585 = vmatprep.subr.mxu0 0.0
  %2586 = vmatpush2.msra.mxu0 0.0
  %2587 = vmatprep.subr.mxu0 0.0
  %2588 = vmatpush2.msra.mxu0 0.0
  %2589 = vmatprep.subr.mxu0 0.0
  %2590 = vmatpush2.msra.mxu0 0.0
  %2591 = vmatprep.subr.mxu0 0.0
  %2592 = vmatpush2.msra.mxu0 0.0
  %2593 = vmatprep.subr.mxu0 0.0
  %2594 = vmatpush2.msra.mxu0 0.0
  %2595 = vmatprep.subr.mxu0 0.0
  %2596 = vmatpush2.msra.mxu0 0.0
  %2597 = vmatprep.subr.mxu0 0.0
  %2598 = vmatpush2.msra.mxu0 0.0
  %2599 = vmatprep.subr.mxu0 0.0
  %2600 = vmatpush2.msra.mxu0 0.0
  %2601 = vmatprep.mubr.f32.mxu0 0.0
  %2602 = vmatmul.mubr.f32.gmra.mxu0 %v2535
  %v2603 = vpop.f32.mrf.mxu0
  %v2604 = vadd.f32 %v168, %v2603
  %v2605 = vpop.f32.mrf.mxu0
  %2606 = vdwg.mxu0
  %2607 = vmatprep.subr.mxu0 0.0
  %2608 = vmatpush1.msra.mxu0 0.0
  %2609 = vmatprep.subr.mxu0 0.0
  %2610 = vmatpush1.msra.mxu0 0.0
  %2611 = vmatprep.subr.mxu0 0.0
  %2612 = vmatpush1.msra.mxu0 0.0
  %2613 = vmatprep.subr.mxu0 0.0
  %2614 = vmatpush1.msra.mxu0 0.0
  %2615 = vmatprep.subr.mxu0 0.0
  %2616 = vmatpush1.msra.mxu0 0.0
  %2617 = vmatprep.subr.mxu0 0.0
  %2618 = vmatpush1.msra.mxu0 0.0
  %2619 = vmatprep.subr.mxu0 0.0
  %2620 = vmatpush1.msra.mxu0 0.0
  %2621 = vmatprep.subr.mxu0 0.0
  %2622 = vmatpush1.msra.mxu0 0.0
  %2623 = vmatprep.subr.mxu0 0.0
  %2624 = vmatpush1.msra.mxu0 0.0
  %2625 = vmatprep.subr.mxu0 0.0
  %2626 = vmatpush1.msra.mxu0 0.0
  %2627 = vmatprep.subr.mxu0 0.0
  %2628 = vmatpush1.msra.mxu0 0.0
  %2629 = vmatprep.subr.mxu0 0.0
  %2630 = vmatpush1.msra.mxu0 0.0
  %2631 = vmatprep.subr.mxu0 0.0
  %2632 = vmatpush1.msra.mxu0 %v62
  %2633 = vmatprep.subr.mxu0 0.0
  %2634 = vmatpush1.msra.mxu0 %v61
  %2635 = vmatprep.subr.mxu0 0.0
  %2636 = vmatpush1.msra.mxu0 %v60
  %2637 = vmatprep.subr.mxu0 0.0
  %2638 = vmatpush1.msra.mxu0 %v59
  %2639 = vmatprep.subr.mxu0 0.0
  %2640 = vmatpush2.msra.mxu0 0.0
  %2641 = vmatprep.subr.mxu0 0.0
  %2642 = vmatpush2.msra.mxu0 0.0
  %2643 = vmatprep.subr.mxu0 0.0
  %2644 = vmatpush2.msra.mxu0 0.0
  %2645 = vmatprep.subr.mxu0 0.0
  %2646 = vmatpush2.msra.mxu0 0.0
  %2647 = vmatprep.subr.mxu0 0.0
  %2648 = vmatpush2.msra.mxu0 0.0
  %2649 = vmatprep.subr.mxu0 0.0
  %2650 = vmatpush2.msra.mxu0 0.0
  %2651 = vmatprep.subr.mxu0 0.0
  %2652 = vmatpush2.msra.mxu0 0.0
  %2653 = vmatprep.subr.mxu0 0.0
  %2654 = vmatpush2.msra.mxu0 0.0
  %2655 = vmatprep.subr.mxu0 0.0
  %2656 = vmatpush2.msra.mxu0 0.0
  %2657 = vmatprep.subr.mxu0 0.0
  %2658 = vmatpush2.msra.mxu0 0.0
  %2659 = vmatprep.subr.mxu0 0.0
  %2660 = vmatpush2.msra.mxu0 0.0
  %2661 = vmatprep.subr.mxu0 0.0
  %2662 = vmatpush2.msra.mxu0 0.0
  %2663 = vmatprep.subr.mxu0 0.0
  %2664 = vmatpush2.msra.mxu0 0.0
  %2665 = vmatprep.subr.mxu0 0.0
  %2666 = vmatpush2.msra.mxu0 0.0
  %2667 = vmatprep.subr.mxu0 0.0
  %2668 = vmatpush2.msra.mxu0 0.0
  %2669 = vmatprep.subr.mxu0 0.0
  %2670 = vmatpush2.msra.mxu0 0.0
  %2671 = vmatprep.mubr.f32.mxu0 0.0
  %2672 = vmatmul.mubr.f32.gmra.mxu0 %v2239
  %v2673 = vpop.f32.mrf.mxu0
  %v2674 = vadd.f32 %v247, %v2673
  %v2675 = vpop.f32.mrf.mxu0
  %2676 = vdwg.mxu0
  %v2677 = vadd.f32 %v2604, %v2674
  %v2678 = vxor.u32 %v2677, 2147483648
  %v2679 = vmul.f32 %v2678, 1.442695
  %v2680 = vpow.pop %v2679
  %v2681 = vadd.f32 %v2680, 1.0
  %v2682 = vrcp.pop %v2681
  %v2683 = vmul.f32 1.0, %v2682
  %2685 = vrot.lane.b32.xlu0 %v2674, 64
  %v2686 = vpop.permute.xlu0 %2685
  %v2688 = vmul.f32 %v2683, %v2686
  %2690 = vrot.lane.b32.xlu0 %v2688, 64
  %v2691 = vpop.permute.xlu0 %2690
  %v2693 = vadd.f32 %v2604, %v2691
  %v2694 = vtanh.pop %v2693
  %v2695 = vsub.f32 1.0, %v2683
  %2697 = vrot.lane.b32.xlu0 %v2694, 96
  %v2698 = vpop.permute.xlu0 %2697
  %v2700 = vmul.f32 %v2695, %v2698
  %v2701 = vmul.f32 %v2683, %v2233
  %v2702 = vadd.f32 %v2700, %v2701
  %s2703 = scalar_lea.vmem %s2, 40
  %v2704 = vld [vmem:[%s2703] sm:$0xff]
  %2706 = vrot.lane.b32.xlu0 %v2702, 96
  %v2707 = vpop.permute.xlu0 %2706
  %v2708 = vsel %vm89, %v2707, 0
  %2710 = vmatprep.subr.mxu0 0.0
  %2711 = vmatpush1.msra.mxu0 0.0
  %2712 = vmatprep.subr.mxu0 0.0
  %2713 = vmatpush1.msra.mxu0 0.0
  %2714 = vmatprep.subr.mxu0 0.0
  %2715 = vmatpush1.msra.mxu0 0.0
  %2716 = vmatprep.subr.mxu0 0.0
  %2717 = vmatpush1.msra.mxu0 0.0
  %2718 = vmatprep.subr.mxu0 0.0
  %2719 = vmatpush1.msra.mxu0 0.0
  %2720 = vmatprep.subr.mxu0 0.0
  %2721 = vmatpush1.msra.mxu0 0.0
  %2722 = vmatprep.subr.mxu0 0.0
  %2723 = vmatpush1.msra.mxu0 0.0
  %2724 = vmatprep.subr.mxu0 0.0
  %2725 = vmatpush1.msra.mxu0 0.0
  %2726 = vmatprep.subr.mxu0 0.0
  %2727 = vmatpush1.msra.mxu0 0.0
  %2728 = vmatprep.subr.mxu0 0.0
  %2729 = vmatpush1.msra.mxu0 0.0
  %2730 = vmatprep.subr.mxu0 0.0
  %2731 = vmatpush1.msra.mxu0 0.0
  %2732 = vmatprep.subr.mxu0 0.0
  %2733 = vmatpush1.msra.mxu0 0.0
  %2734 = vmatprep.subr.mxu0 0.0
  %2735 = vmatpush1.msra.mxu0 %v67
  %2736 = vmatprep.subr.mxu0 0.0
  %2737 = vmatpush1.msra.mxu0 %v66
  %2738 = vmatprep.subr.mxu0 0.0
  %2739 = vmatpush1.msra.mxu0 %v65
  %2740 = vmatprep.subr.mxu0 0.0
  %2741 = vmatpush1.msra.mxu0 %v64
  %2742 = vmatprep.subr.mxu0 0.0
  %2743 = vmatpush2.msra.mxu0 0.0
  %2744 = vmatprep.subr.mxu0 0.0
  %2745 = vmatpush2.msra.mxu0 0.0
  %2746 = vmatprep.subr.mxu0 0.0
  %2747 = vmatpush2.msra.mxu0 0.0
  %2748 = vmatprep.subr.mxu0 0.0
  %2749 = vmatpush2.msra.mxu0 0.0
  %2750 = vmatprep.subr.mxu0 0.0
  %2751 = vmatpush2.msra.mxu0 0.0
  %2752 = vmatprep.subr.mxu0 0.0
  %2753 = vmatpush2.msra.mxu0 0.0
  %2754 = vmatprep.subr.mxu0 0.0
  %2755 = vmatpush2.msra.mxu0 0.0
  %2756 = vmatprep.subr.mxu0 0.0
  %2757 = vmatpush2.msra.mxu0 0.0
  %2758 = vmatprep.subr.mxu0 0.0
  %2759 = vmatpush2.msra.mxu0 0.0
  %2760 = vmatprep.subr.mxu0 0.0
  %2761 = vmatpush2.msra.mxu0 0.0
  %2762 = vmatprep.subr.mxu0 0.0
  %2763 = vmatpush2.msra.mxu0 0.0
  %2764 = vmatprep.subr.mxu0 0.0
  %2765 = vmatpush2.msra.mxu0 0.0
  %2766 = vmatprep.subr.mxu0 0.0
  %2767 = vmatpush2.msra.mxu0 0.0
  %2768 = vmatprep.subr.mxu0 0.0
  %2769 = vmatpush2.msra.mxu0 0.0
  %2770 = vmatprep.subr.mxu0 0.0
  %2771 = vmatpush2.msra.mxu0 0.0
  %2772 = vmatprep.subr.mxu0 0.0
  %2773 = vmatpush2.msra.mxu0 0.0
  %2774 = vmatprep.mubr.f32.mxu0 0.0
  %2775 = vmatmul.mubr.f32.gmra.mxu0 %v2708
  %v2776 = vpop.f32.mrf.mxu0
  %v2777 = vadd.f32 %v2704, %v2776
  %v2778 = vpop.f32.mrf.mxu0
  %2779 = vdwg.mxu0
  %v2780 = vmax.f32 %v2777, 0.0
  %v2782 = vsel %vm434, %v2780, 0
  %2784 = vmatprep.subr.mxu0 0.0
  %2785 = vmatpush1.msra.mxu0 0.0
  %2786 = vmatprep.subr.mxu0 0.0
  %2787 = vmatpush1.msra.mxu0 0.0
  %2788 = vmatprep.subr.mxu0 0.0
  %2789 = vmatpush1.msra.mxu0 0.0
  %2790 = vmatprep.subr.mxu0 0.0
  %2791 = vmatpush1.msra.mxu0 0.0
  %2792 = vmatprep.subr.mxu0 0.0
  %2793 = vmatpush1.msra.mxu0 0.0
  %2794 = vmatprep.subr.mxu0 0.0
  %2795 = vmatpush1.msra.mxu0 0.0
  %2796 = vmatprep.subr.mxu0 0.0
  %2797 = vmatpush1.msra.mxu0 0.0
  %2798 = vmatprep.subr.mxu0 0.0
  %2799 = vmatpush1.msra.mxu0 0.0
  %2800 = vmatprep.subr.mxu0 0.0
  %2801 = vmatpush1.msra.mxu0 %v75
  %2802 = vmatprep.subr.mxu0 0.0
  %2803 = vmatpush1.msra.mxu0 %v74
  %2804 = vmatprep.subr.mxu0 0.0
  %2805 = vmatpush1.msra.mxu0 %v73
  %2806 = vmatprep.subr.mxu0 0.0
  %2807 = vmatpush1.msra.mxu0 %v72
  %2808 = vmatprep.subr.mxu0 0.0
  %2809 = vmatpush1.msra.mxu0 %v71
  %2810 = vmatprep.subr.mxu0 0.0
  %2811 = vmatpush1.msra.mxu0 %v70
  %2812 = vmatprep.subr.mxu0 0.0
  %2813 = vmatpush1.msra.mxu0 %v69
  %2814 = vmatprep.subr.mxu0 0.0
  %2815 = vmatpush1.msra.mxu0 %v68
  %2816 = vmatprep.subr.mxu0 0.0
  %2817 = vmatpush2.msra.mxu0 0.0
  %2818 = vmatprep.subr.mxu0 0.0
  %2819 = vmatpush2.msra.mxu0 0.0
  %2820 = vmatprep.subr.mxu0 0.0
  %2821 = vmatpush2.msra.mxu0 0.0
  %2822 = vmatprep.subr.mxu0 0.0
  %2823 = vmatpush2.msra.mxu0 0.0
  %2824 = vmatprep.subr.mxu0 0.0
  %2825 = vmatpush2.msra.mxu0 0.0
  %2826 = vmatprep.subr.mxu0 0.0
  %2827 = vmatpush2.msra.mxu0 0.0
  %2828 = vmatprep.subr.mxu0 0.0
  %2829 = vmatpush2.msra.mxu0 0.0
  %2830 = vmatprep.subr.mxu0 0.0
  %2831 = vmatpush2.msra.mxu0 0.0
  %2832 = vmatprep.subr.mxu0 0.0
  %2833 = vmatpush2.msra.mxu0 0.0
  %2834 = vmatprep.subr.mxu0 0.0
  %2835 = vmatpush2.msra.mxu0 0.0
  %2836 = vmatprep.subr.mxu0 0.0
  %2837 = vmatpush2.msra.mxu0 0.0
  %2838 = vmatprep.subr.mxu0 0.0
  %2839 = vmatpush2.msra.mxu0 0.0
  %2840 = vmatprep.subr.mxu0 0.0
  %2841 = vmatpush2.msra.mxu0 0.0
  %2842 = vmatprep.subr.mxu0 0.0
  %2843 = vmatpush2.msra.mxu0 0.0
  %2844 = vmatprep.subr.mxu0 0.0
  %2845 = vmatpush2.msra.mxu0 0.0
  %2846 = vmatprep.subr.mxu0 0.0
  %2847 = vmatpush2.msra.mxu0 0.0
  %2848 = vmatprep.mubr.f32.mxu0 0.0
  %2849 = vmatmul.mubr.f32.gmra.mxu0 %v2782
  %v2850 = vpop.f32.mrf.mxu0
  %v2851 = vadd.f32 %v432, %v2850
  %v2852 = vpop.f32.mrf.mxu0
  %2853 = vdwg.mxu0
  %v2854 = vmax.f32 %v2851, 0.0
  %vm2855 = vcmp.ne.f32.partialorder %v2851, %v2851
  %v2856 = vadd.f32 %v2851, 0.0
  %v2857 = vand.u32 2147483647, %v2851
  %v2858 = vsub.f32 0.0, %v2857
  %v2859 = vmul.f32 %v2858, 1.442695
  %v2860 = vpow.pop %v2859
  %v2861 = vadd.f32 %v2860, 1.0
  %v2862 = vlog2.pop %v2861
  %v2863 = vmul.f32 %v2862, 0.6931472
  %v2864 = vmul.f32 -0.5, %v2860
  %v2865 = vadd.f32 %v2864, 1.0
  %v2866 = vmul.f32 %v2865, %v2860
  %v2867 = vand.u32 2147483647, %v2860
  %vm2868 = vcmp.lt.f32.partialorder %v2867, 0.0004427343
  %v2869 = vsel %vm2868, %v2866, %v2863
  %v2870 = vadd.f32 %v2854, %v2869
  %v2871 = vsel %vm2855, %v2856, %v2870
  %v2872 = vadd.f32 %v2871, 0.1
  %s2873 = scalar_lea.vmem %s3, 40
  %v2874 = vld [vmem:[%s2873] sm:$0xff]
  %2876 = vrot.lane.b32.xlu0 %v2874, 16
  %v2877 = vpop.permute.xlu0 %2876
  %v2879 = vmul.f32 %v2872, %v2877
  %2881 = vrot.lane.b32.xlu0 %v2879, 112
  %v2882 = vpop.permute.xlu0 %2881
  %v2884 = vadd.f32 %v2851, %v2882
  %s2885 = scalar_lea.vmem %s4, 40
  %v2886 = vld [vmem:[%s2885] sm:$0xff]
  %2888 = vrot.lane.b32.xlu0 %v2886, 48
  %v2889 = vpop.permute.xlu0 %2888
  %v2891 = vmul.f32 %v2872, %v2889
  %2893 = vrot.lane.b32.xlu0 %v2891, 112
  %v2894 = vpop.permute.xlu0 %2893
  %v2896 = vadd.f32 %v2851, %v2894
  %2899 = vrot.lane.b32.xlu0 %v2851, 16
  %v2900 = vpop.permute.xlu0 %2899
  %2903 = vrot.lane.b32.xlu0 %v2872, 16
  %v2904 = vpop.permute.xlu0 %2903
  %2907 = vrot.lane.b32.xlu0 %v2884, 80
  %v2908 = vpop.permute.xlu0 %2907
  %2910 = vrot.lane.b32.xlu0 %v2851, 96
  %v2911 = vpop.permute.xlu0 %2910
  %2913 = vrot.lane.b32.xlu0 %v2872, 96
  %v2914 = vpop.permute.xlu0 %2913
  %v2916 = vsel %vm89, %v2707, %v2896
  %v2917 = vsel %vm569, %v2916, %v2900
  %v2918 = vsel %vm434, %v2917, %v2904
  %v2919 = vsel %vm572, %v2918, %v2908
  %v2920 = vsel %vm574, %v2919, %v2911
  %v2921 = vsel %vm576, %v2920, %v2914
  %s2922 = scalar_lea.vmem %s14, 40
  %2923 = vst [vmem:[%s2922] sm:$0xff] %v2921
  %2925 = vrot.lane.b32.xlu0 %v2896, 112
  %v2926 = vpop.permute.xlu0 %2925
  %v2928 = vsel %vm81, %v2884, %v2926
  %v2930 = vsel %vm89, %v2928, 0
  %2932 = vmatprep.subr.mxu0 0.0
  %2933 = vmatpush1.msra.mxu0 0.0
  %2934 = vmatprep.subr.mxu0 0.0
  %2935 = vmatpush1.msra.mxu0 0.0
  %2936 = vmatprep.subr.mxu0 0.0
  %2937 = vmatpush1.msra.mxu0 0.0
  %2938 = vmatprep.subr.mxu0 0.0
  %2939 = vmatpush1.msra.mxu0 0.0
  %2940 = vmatprep.subr.mxu0 0.0
  %2941 = vmatpush1.msra.mxu0 0.0
  %2942 = vmatprep.subr.mxu0 0.0
  %2943 = vmatpush1.msra.mxu0 0.0
  %2944 = vmatprep.subr.mxu0 0.0
  %2945 = vmatpush1.msra.mxu0 0.0
  %2946 = vmatprep.subr.mxu0 0.0
  %2947 = vmatpush1.msra.mxu0 0.0
  %2948 = vmatprep.subr.mxu0 0.0
  %2949 = vmatpush1.msra.mxu0 0.0
  %2950 = vmatprep.subr.mxu0 0.0
  %2951 = vmatpush1.msra.mxu0 0.0
  %2952 = vmatprep.subr.mxu0 0.0
  %2953 = vmatpush1.msra.mxu0 0.0
  %2954 = vmatprep.subr.mxu0 0.0
  %2955 = vmatpush1.msra.mxu0 0.0
  %2956 = vmatprep.subr.mxu0 0.0
  %2957 = vmatpush1.msra.mxu0 %v52
  %2958 = vmatprep.subr.mxu0 0.0
  %2959 = vmatpush1.msra.mxu0 %v51
  %2960 = vmatprep.subr.mxu0 0.0
  %2961 = vmatpush1.msra.mxu0 %v50
  %2962 = vmatprep.subr.mxu0 0.0
  %2963 = vmatpush1.msra.mxu0 %v49
  %2964 = vmatprep.subr.mxu0 0.0
  %2965 = vmatpush2.msra.mxu0 0.0
  %2966 = vmatprep.subr.mxu0 0.0
  %2967 = vmatpush2.msra.mxu0 0.0
  %2968 = vmatprep.subr.mxu0 0.0
  %2969 = vmatpush2.msra.mxu0 0.0
  %2970 = vmatprep.subr.mxu0 0.0
  %2971 = vmatpush2.msra.mxu0 0.0
  %2972 = vmatprep.subr.mxu0 0.0
  %2973 = vmatpush2.msra.mxu0 0.0
  %2974 = vmatprep.subr.mxu0 0.0
  %2975 = vmatpush2.msra.mxu0 0.0
  %2976 = vmatprep.subr.mxu0 0.0
  %2977 = vmatpush2.msra.mxu0 0.0
  %2978 = vmatprep.subr.mxu0 0.0
  %2979 = vmatpush2.msra.mxu0 0.0
  %2980 = vmatprep.subr.mxu0 0.0
  %2981 = vmatpush2.msra.mxu0 0.0
  %2982 = vmatprep.subr.mxu0 0.0
  %2983 = vmatpush2.msra.mxu0 0.0
  %2984 = vmatprep.subr.mxu0 0.0
  %2985 = vmatpush2.msra.mxu0 0.0
  %2986 = vmatprep.subr.mxu0 0.0
  %2987 = vmatpush2.msra.mxu0 0.0
  %2988 = vmatprep.subr.mxu0 0.0
  %2989 = vmatpush2.msra.mxu0 0.0
  %2990 = vmatprep.subr.mxu0 0.0
  %2991 = vmatpush2.msra.mxu0 0.0
  %2992 = vmatprep.subr.mxu0 0.0
  %2993 = vmatpush2.msra.mxu0 0.0
  %2994 = vmatprep.subr.mxu0 0.0
  %2995 = vmatpush2.msra.mxu0 0.0
  %2996 = vmatprep.mubr.f32.mxu0 0.0
  %2997 = vmatmul.mubr.f32.gmra.mxu0 %v2930
  %v2998 = vpop.f32.mrf.mxu0
  %v2999 = vadd.f32 %v87, %v2998
  %v3000 = vpop.f32.mrf.mxu0
  %3001 = vdwg.mxu0
  %v3002 = vmax.f32 %v2999, 0.0
  %v3004 = vsel %vm89, %v3002, 0
  %3006 = vmatprep.subr.mxu0 0.0
  %3007 = vmatpush1.msra.mxu0 0.0
  %3008 = vmatprep.subr.mxu0 0.0
  %3009 = vmatpush1.msra.mxu0 0.0
  %3010 = vmatprep.subr.mxu0 0.0
  %3011 = vmatpush1.msra.mxu0 0.0
  %3012 = vmatprep.subr.mxu0 0.0
  %3013 = vmatpush1.msra.mxu0 0.0
  %3014 = vmatprep.subr.mxu0 0.0
  %3015 = vmatpush1.msra.mxu0 0.0
  %3016 = vmatprep.subr.mxu0 0.0
  %3017 = vmatpush1.msra.mxu0 0.0
  %3018 = vmatprep.subr.mxu0 0.0
  %3019 = vmatpush1.msra.mxu0 0.0
  %3020 = vmatprep.subr.mxu0 0.0
  %3021 = vmatpush1.msra.mxu0 0.0
  %3022 = vmatprep.subr.mxu0 0.0
  %3023 = vmatpush1.msra.mxu0 0.0
  %3024 = vmatprep.subr.mxu0 0.0
  %3025 = vmatpush1.msra.mxu0 0.0
  %3026 = vmatprep.subr.mxu0 0.0
  %3027 = vmatpush1.msra.mxu0 0.0
  %3028 = vmatprep.subr.mxu0 0.0
  %3029 = vmatpush1.msra.mxu0 0.0
  %3030 = vmatprep.subr.mxu0 0.0
  %3031 = vmatpush1.msra.mxu0 %v57
  %3032 = vmatprep.subr.mxu0 0.0
  %3033 = vmatpush1.msra.mxu0 %v56
  %3034 = vmatprep.subr.mxu0 0.0
  %3035 = vmatpush1.msra.mxu0 %v55
  %3036 = vmatprep.subr.mxu0 0.0
  %3037 = vmatpush1.msra.mxu0 %v54
  %3038 = vmatprep.subr.mxu0 0.0
  %3039 = vmatpush2.msra.mxu0 0.0
  %3040 = vmatprep.subr.mxu0 0.0
  %3041 = vmatpush2.msra.mxu0 0.0
  %3042 = vmatprep.subr.mxu0 0.0
  %3043 = vmatpush2.msra.mxu0 0.0
  %3044 = vmatprep.subr.mxu0 0.0
  %3045 = vmatpush2.msra.mxu0 0.0
  %3046 = vmatprep.subr.mxu0 0.0
  %3047 = vmatpush2.msra.mxu0 0.0
  %3048 = vmatprep.subr.mxu0 0.0
  %3049 = vmatpush2.msra.mxu0 0.0
  %3050 = vmatprep.subr.mxu0 0.0
  %3051 = vmatpush2.msra.mxu0 0.0
  %3052 = vmatprep.subr.mxu0 0.0
  %3053 = vmatpush2.msra.mxu0 0.0
  %3054 = vmatprep.subr.mxu0 0.0
  %3055 = vmatpush2.msra.mxu0 0.0
  %3056 = vmatprep.subr.mxu0 0.0
  %3057 = vmatpush2.msra.mxu0 0.0
  %3058 = vmatprep.subr.mxu0 0.0
  %3059 = vmatpush2.msra.mxu0 0.0
  %3060 = vmatprep.subr.mxu0 0.0
  %3061 = vmatpush2.msra.mxu0 0.0
  %3062 = vmatprep.subr.mxu0 0.0
  %3063 = vmatpush2.msra.mxu0 0.0
  %3064 = vmatprep.subr.mxu0 0.0
  %3065 = vmatpush2.msra.mxu0 0.0
  %3066 = vmatprep.subr.mxu0 0.0
  %3067 = vmatpush2.msra.mxu0 0.0
  %3068 = vmatprep.subr.mxu0 0.0
  %3069 = vmatpush2.msra.mxu0 0.0
  %3070 = vmatprep.mubr.f32.mxu0 0.0
  %3071 = vmatmul.mubr.f32.gmra.mxu0 %v3004
  %v3072 = vpop.f32.mrf.mxu0
  %v3073 = vadd.f32 %v168, %v3072
  %v3074 = vpop.f32.mrf.mxu0
  %3075 = vdwg.mxu0
  %3076 = vmatprep.subr.mxu0 0.0
  %3077 = vmatpush1.msra.mxu0 0.0
  %3078 = vmatprep.subr.mxu0 0.0
  %3079 = vmatpush1.msra.mxu0 0.0
  %3080 = vmatprep.subr.mxu0 0.0
  %3081 = vmatpush1.msra.mxu0 0.0
  %3082 = vmatprep.subr.mxu0 0.0
  %3083 = vmatpush1.msra.mxu0 0.0
  %3084 = vmatprep.subr.mxu0 0.0
  %3085 = vmatpush1.msra.mxu0 0.0
  %3086 = vmatprep.subr.mxu0 0.0
  %3087 = vmatpush1.msra.mxu0 0.0
  %3088 = vmatprep.subr.mxu0 0.0
  %3089 = vmatpush1.msra.mxu0 0.0
  %3090 = vmatprep.subr.mxu0 0.0
  %3091 = vmatpush1.msra.mxu0 0.0
  %3092 = vmatprep.subr.mxu0 0.0
  %3093 = vmatpush1.msra.mxu0 0.0
  %3094 = vmatprep.subr.mxu0 0.0
  %3095 = vmatpush1.msra.mxu0 0.0
  %3096 = vmatprep.subr.mxu0 0.0
  %3097 = vmatpush1.msra.mxu0 0.0
  %3098 = vmatprep.subr.mxu0 0.0
  %3099 = vmatpush1.msra.mxu0 0.0
  %3100 = vmatprep.subr.mxu0 0.0
  %3101 = vmatpush1.msra.mxu0 %v62
  %3102 = vmatprep.subr.mxu0 0.0
  %3103 = vmatpush1.msra.mxu0 %v61
  %3104 = vmatprep.subr.mxu0 0.0
  %3105 = vmatpush1.msra.mxu0 %v60
  %3106 = vmatprep.subr.mxu0 0.0
  %3107 = vmatpush1.msra.mxu0 %v59
  %3108 = vmatprep.subr.mxu0 0.0
  %3109 = vmatpush2.msra.mxu0 0.0
  %3110 = vmatprep.subr.mxu0 0.0
  %3111 = vmatpush2.msra.mxu0 0.0
  %3112 = vmatprep.subr.mxu0 0.0
  %3113 = vmatpush2.msra.mxu0 0.0
  %3114 = vmatprep.subr.mxu0 0.0
  %3115 = vmatpush2.msra.mxu0 0.0
  %3116 = vmatprep.subr.mxu0 0.0
  %3117 = vmatpush2.msra.mxu0 0.0
  %3118 = vmatprep.subr.mxu0 0.0
  %3119 = vmatpush2.msra.mxu0 0.0
  %3120 = vmatprep.subr.mxu0 0.0
  %3121 = vmatpush2.msra.mxu0 0.0
  %3122 = vmatprep.subr.mxu0 0.0
  %3123 = vmatpush2.msra.mxu0 0.0
  %3124 = vmatprep.subr.mxu0 0.0
  %3125 = vmatpush2.msra.mxu0 0.0
  %3126 = vmatprep.subr.mxu0 0.0
  %3127 = vmatpush2.msra.mxu0 0.0
  %3128 = vmatprep.subr.mxu0 0.0
  %3129 = vmatpush2.msra.mxu0 0.0
  %3130 = vmatprep.subr.mxu0 0.0
  %3131 = vmatpush2.msra.mxu0 0.0
  %3132 = vmatprep.subr.mxu0 0.0
  %3133 = vmatpush2.msra.mxu0 0.0
  %3134 = vmatprep.subr.mxu0 0.0
  %3135 = vmatpush2.msra.mxu0 0.0
  %3136 = vmatprep.subr.mxu0 0.0
  %3137 = vmatpush2.msra.mxu0 0.0
  %3138 = vmatprep.subr.mxu0 0.0
  %3139 = vmatpush2.msra.mxu0 0.0
  %3140 = vmatprep.mubr.f32.mxu0 0.0
  %3141 = vmatmul.mubr.f32.gmra.mxu0 %v2708
  %v3142 = vpop.f32.mrf.mxu0
  %v3143 = vadd.f32 %v247, %v3142
  %v3144 = vpop.f32.mrf.mxu0
  %3145 = vdwg.mxu0
  %v3146 = vadd.f32 %v3073, %v3143
  %v3147 = vxor.u32 %v3146, 2147483648
  %v3148 = vmul.f32 %v3147, 1.442695
  %v3149 = vpow.pop %v3148
  %v3150 = vadd.f32 %v3149, 1.0
  %v3151 = vrcp.pop %v3150
  %v3152 = vmul.f32 1.0, %v3151
  %3154 = vrot.lane.b32.xlu0 %v3143, 64
  %v3155 = vpop.permute.xlu0 %3154
  %v3157 = vmul.f32 %v3152, %v3155
  %3159 = vrot.lane.b32.xlu0 %v3157, 64
  %v3160 = vpop.permute.xlu0 %3159
  %v3162 = vadd.f32 %v3073, %v3160
  %v3163 = vtanh.pop %v3162
  %v3164 = vsub.f32 1.0, %v3152
  %3166 = vrot.lane.b32.xlu0 %v3163, 96
  %v3167 = vpop.permute.xlu0 %3166
  %v3169 = vmul.f32 %v3164, %v3167
  %v3170 = vmul.f32 %v3152, %v2702
  %v3171 = vadd.f32 %v3169, %v3170
  %s3172 = scalar_lea.vmem %s2, 48
  %v3173 = vld [vmem:[%s3172] sm:$0xff]
  %3175 = vrot.lane.b32.xlu0 %v3171, 96
  %v3176 = vpop.permute.xlu0 %3175
  %v3177 = vsel %vm89, %v3176, 0
  %3179 = vmatprep.subr.mxu0 0.0
  %3180 = vmatpush1.msra.mxu0 0.0
  %3181 = vmatprep.subr.mxu0 0.0
  %3182 = vmatpush1.msra.mxu0 0.0
  %3183 = vmatprep.subr.mxu0 0.0
  %3184 = vmatpush1.msra.mxu0 0.0
  %3185 = vmatprep.subr.mxu0 0.0
  %3186 = vmatpush1.msra.mxu0 0.0
  %3187 = vmatprep.subr.mxu0 0.0
  %3188 = vmatpush1.msra.mxu0 0.0
  %3189 = vmatprep.subr.mxu0 0.0
  %3190 = vmatpush1.msra.mxu0 0.0
  %3191 = vmatprep.subr.mxu0 0.0
  %3192 = vmatpush1.msra.mxu0 0.0
  %3193 = vmatprep.subr.mxu0 0.0
  %3194 = vmatpush1.msra.mxu0 0.0
  %3195 = vmatprep.subr.mxu0 0.0
  %3196 = vmatpush1.msra.mxu0 0.0
  %3197 = vmatprep.subr.mxu0 0.0
  %3198 = vmatpush1.msra.mxu0 0.0
  %3199 = vmatprep.subr.mxu0 0.0
  %3200 = vmatpush1.msra.mxu0 0.0
  %3201 = vmatprep.subr.mxu0 0.0
  %3202 = vmatpush1.msra.mxu0 0.0
  %3203 = vmatprep.subr.mxu0 0.0
  %3204 = vmatpush1.msra.mxu0 %v67
  %3205 = vmatprep.subr.mxu0 0.0
  %3206 = vmatpush1.msra.mxu0 %v66
  %3207 = vmatprep.subr.mxu0 0.0
  %3208 = vmatpush1.msra.mxu0 %v65
  %3209 = vmatprep.subr.mxu0 0.0
  %3210 = vmatpush1.msra.mxu0 %v64
  %3211 = vmatprep.subr.mxu0 0.0
  %3212 = vmatpush2.msra.mxu0 0.0
  %3213 = vmatprep.subr.mxu0 0.0
  %3214 = vmatpush2.msra.mxu0 0.0
  %3215 = vmatprep.subr.mxu0 0.0
  %3216 = vmatpush2.msra.mxu0 0.0
  %3217 = vmatprep.subr.mxu0 0.0
  %3218 = vmatpush2.msra.mxu0 0.0
  %3219 = vmatprep.subr.mxu0 0.0
  %3220 = vmatpush2.msra.mxu0 0.0
  %3221 = vmatprep.subr.mxu0 0.0
  %3222 = vmatpush2.msra.mxu0 0.0
  %3223 = vmatprep.subr.mxu0 0.0
  %3224 = vmatpush2.msra.mxu0 0.0
  %3225 = vmatprep.subr.mxu0 0.0
  %3226 = vmatpush2.msra.mxu0 0.0
  %3227 = vmatprep.subr.mxu0 0.0
  %3228 = vmatpush2.msra.mxu0 0.0
  %3229 = vmatprep.subr.mxu0 0.0
  %3230 = vmatpush2.msra.mxu0 0.0
  %3231 = vmatprep.subr.mxu0 0.0
  %3232 = vmatpush2.msra.mxu0 0.0
  %3233 = vmatprep.subr.mxu0 0.0
  %3234 = vmatpush2.msra.mxu0 0.0
  %3235 = vmatprep.subr.mxu0 0.0
  %3236 = vmatpush2.msra.mxu0 0.0
  %3237 = vmatprep.subr.mxu0 0.0
  %3238 = vmatpush2.msra.mxu0 0.0
  %3239 = vmatprep.subr.mxu0 0.0
  %3240 = vmatpush2.msra.mxu0 0.0
  %3241 = vmatprep.subr.mxu0 0.0
  %3242 = vmatpush2.msra.mxu0 0.0
  %3243 = vmatprep.mubr.f32.mxu0 0.0
  %3244 = vmatmul.mubr.f32.gmra.mxu0 %v3177
  %v3245 = vpop.f32.mrf.mxu0
  %v3246 = vadd.f32 %v3173, %v3245
  %v3247 = vpop.f32.mrf.mxu0
  %3248 = vdwg.mxu0
  %v3249 = vmax.f32 %v3246, 0.0
  %v3251 = vsel %vm434, %v3249, 0
  %3253 = vmatprep.subr.mxu0 0.0
  %3254 = vmatpush1.msra.mxu0 0.0
  %3255 = vmatprep.subr.mxu0 0.0
  %3256 = vmatpush1.msra.mxu0 0.0
  %3257 = vmatprep.subr.mxu0 0.0
  %3258 = vmatpush1.msra.mxu0 0.0
  %3259 = vmatprep.subr.mxu0 0.0
  %3260 = vmatpush1.msra.mxu0 0.0
  %3261 = vmatprep.subr.mxu0 0.0
  %3262 = vmatpush1.msra.mxu0 0.0
  %3263 = vmatprep.subr.mxu0 0.0
  %3264 = vmatpush1.msra.mxu0 0.0
  %3265 = vmatprep.subr.mxu0 0.0
  %3266 = vmatpush1.msra.mxu0 0.0
  %3267 = vmatprep.subr.mxu0 0.0
  %3268 = vmatpush1.msra.mxu0 0.0
  %3269 = vmatprep.subr.mxu0 0.0
  %3270 = vmatpush1.msra.mxu0 %v75
  %3271 = vmatprep.subr.mxu0 0.0
  %3272 = vmatpush1.msra.mxu0 %v74
  %3273 = vmatprep.subr.mxu0 0.0
  %3274 = vmatpush1.msra.mxu0 %v73
  %3275 = vmatprep.subr.mxu0 0.0
  %3276 = vmatpush1.msra.mxu0 %v72
  %3277 = vmatprep.subr.mxu0 0.0
  %3278 = vmatpush1.msra.mxu0 %v71
  %3279 = vmatprep.subr.mxu0 0.0
  %3280 = vmatpush1.msra.mxu0 %v70
  %3281 = vmatprep.subr.mxu0 0.0
  %3282 = vmatpush1.msra.mxu0 %v69
  %3283 = vmatprep.subr.mxu0 0.0
  %3284 = vmatpush1.msra.mxu0 %v68
  %3285 = vmatprep.subr.mxu0 0.0
  %3286 = vmatpush2.msra.mxu0 0.0
  %3287 = vmatprep.subr.mxu0 0.0
  %3288 = vmatpush2.msra.mxu0 0.0
  %3289 = vmatprep.subr.mxu0 0.0
  %3290 = vmatpush2.msra.mxu0 0.0
  %3291 = vmatprep.subr.mxu0 0.0
  %3292 = vmatpush2.msra.mxu0 0.0
  %3293 = vmatprep.subr.mxu0 0.0
  %3294 = vmatpush2.msra.mxu0 0.0
  %3295 = vmatprep.subr.mxu0 0.0
  %3296 = vmatpush2.msra.mxu0 0.0
  %3297 = vmatprep.subr.mxu0 0.0
  %3298 = vmatpush2.msra.mxu0 0.0
  %3299 = vmatprep.subr.mxu0 0.0
  %3300 = vmatpush2.msra.mxu0 0.0
  %3301 = vmatprep.subr.mxu0 0.0
  %3302 = vmatpush2.msra.mxu0 0.0
  %3303 = vmatprep.subr.mxu0 0.0
  %3304 = vmatpush2.msra.mxu0 0.0
  %3305 = vmatprep.subr.mxu0 0.0
  %3306 = vmatpush2.msra.mxu0 0.0
  %3307 = vmatprep.subr.mxu0 0.0
  %3308 = vmatpush2.msra.mxu0 0.0
  %3309 = vmatprep.subr.mxu0 0.0
  %3310 = vmatpush2.msra.mxu0 0.0
  %3311 = vmatprep.subr.mxu0 0.0
  %3312 = vmatpush2.msra.mxu0 0.0
  %3313 = vmatprep.subr.mxu0 0.0
  %3314 = vmatpush2.msra.mxu0 0.0
  %3315 = vmatprep.subr.mxu0 0.0
  %3316 = vmatpush2.msra.mxu0 0.0
  %3317 = vmatprep.mubr.f32.mxu0 0.0
  %3318 = vmatmul.mubr.f32.gmra.mxu0 %v3251
  %v3319 = vpop.f32.mrf.mxu0
  %v3320 = vadd.f32 %v432, %v3319
  %v3321 = vpop.f32.mrf.mxu0
  %3322 = vdwg.mxu0
  %v3323 = vmax.f32 %v3320, 0.0
  %vm3324 = vcmp.ne.f32.partialorder %v3320, %v3320
  %v3325 = vadd.f32 %v3320, 0.0
  %v3326 = vand.u32 2147483647, %v3320
  %v3327 = vsub.f32 0.0, %v3326
  %v3328 = vmul.f32 %v3327, 1.442695
  %v3329 = vpow.pop %v3328
  %v3330 = vadd.f32 %v3329, 1.0
  %v3331 = vlog2.pop %v3330
  %v3332 = vmul.f32 %v3331, 0.6931472
  %v3333 = vmul.f32 -0.5, %v3329
  %v3334 = vadd.f32 %v3333, 1.0
  %v3335 = vmul.f32 %v3334, %v3329
  %v3336 = vand.u32 2147483647, %v3329
  %vm3337 = vcmp.lt.f32.partialorder %v3336, 0.0004427343
  %v3338 = vsel %vm3337, %v3335, %v3332
  %v3339 = vadd.f32 %v3323, %v3338
  %v3340 = vsel %vm3324, %v3325, %v3339
  %v3341 = vadd.f32 %v3340, 0.1
  %s3342 = scalar_lea.vmem %s3, 48
  %v3343 = vld [vmem:[%s3342] sm:$0xff]
  %3345 = vrot.lane.b32.xlu0 %v3343, 16
  %v3346 = vpop.permute.xlu0 %3345
  %v3348 = vmul.f32 %v3341, %v3346
  %3350 = vrot.lane.b32.xlu0 %v3348, 112
  %v3351 = vpop.permute.xlu0 %3350
  %v3353 = vadd.f32 %v3320, %v3351
  %s3354 = scalar_lea.vmem %s4, 48
  %v3355 = vld [vmem:[%s3354] sm:$0xff]
  %3357 = vrot.lane.b32.xlu0 %v3355, 48
  %v3358 = vpop.permute.xlu0 %3357
  %v3360 = vmul.f32 %v3341, %v3358
  %3362 = vrot.lane.b32.xlu0 %v3360, 112
  %v3363 = vpop.permute.xlu0 %3362
  %v3365 = vadd.f32 %v3320, %v3363
  %3368 = vrot.lane.b32.xlu0 %v3320, 16
  %v3369 = vpop.permute.xlu0 %3368
  %3372 = vrot.lane.b32.xlu0 %v3341, 16
  %v3373 = vpop.permute.xlu0 %3372
  %3376 = vrot.lane.b32.xlu0 %v3353, 80
  %v3377 = vpop.permute.xlu0 %3376
  %3379 = vrot.lane.b32.xlu0 %v3320, 96
  %v3380 = vpop.permute.xlu0 %3379
  %3382 = vrot.lane.b32.xlu0 %v3341, 96
  %v3383 = vpop.permute.xlu0 %3382
  %v3385 = vsel %vm89, %v3176, %v3365
  %v3386 = vsel %vm569, %v3385, %v3369
  %v3387 = vsel %vm434, %v3386, %v3373
  %v3388 = vsel %vm572, %v3387, %v3377
  %v3389 = vsel %vm574, %v3388, %v3380
  %v3390 = vsel %vm576, %v3389, %v3383
  %s3391 = scalar_lea.vmem %s14, 48
  %3392 = vst [vmem:[%s3391] sm:$0xff] %v3390
  // Predicated region
  $region58: #{single_hidden_transition.1} parent=0 // pred_check
    _
  $region59: #{single_hidden_transition.1} parent=0 // pred_check_branch
    %3394 = sbr.rel (0) target = $region61
  $region60: #{single_hidden_transition.1} parent=0 // pred_region
    _
  $region61: #{single_hidden_transition.1} parent=0 // pred_fallthru
    _
  // Predicated region
  $region62: #{single_hidden_transition.1} parent=0 // pred_check
    _
  $region63: #{single_hidden_transition.1} parent=0 // pred_check_branch
    %3396 = sbr.rel (0) target = $region65
  $region64: #{single_hidden_transition.1} parent=0 // pred_region
    _
  $region65: #{single_hidden_transition.1} parent=0 // pred_fallthru
    _

</llo_original>
